<compile_context>
chip_gen: v7x
topology: tpu7x:2x2x1
jax: 0.10.0
libtpu: 0.0.40
codegen_flags: <defaults>
</compile_context>

<pallas_src>
import functools

import jax
import jax.numpy as jnp
from jax.experimental import pallas as pl
from jax.experimental.pallas import tpu as pltpu


# 8-connected neighbourhood offsets (dy, dx)
OFFSETS = ((-1, -1), (-1, 0), (-1, 1), (0, -1), (0, 1), (1, -1), (1, 0), (1, 1))
IDX_RIGHT = OFFSETS.index((0, 1))
IDX_DOWN = OFFSETS.index((1, 0))
K_NEIGH = 8


def _sigmoid_fast(x):
    # sigmoid(x) = 0.5*(tanh(x/2) + 1): a single EUP push instead of exp + divide.
    return 0.5 * jnp.tanh(0.5 * x) + 0.5


def _row_tile(h, w, max_elems):
    """Largest row tile that is a multiple of 8, divides h and keeps th*w bounded."""
    cap = max(8, min(256, max_elems // max(w, 1)))
    if h <= cap:
        return h
    t = (cap // 8) * 8
    while t >= 8:
        if h % t == 0:
            return t
        t -= 8
    return h  # no suitable divisor -> whole image per tile (still correct)


def _shift_cols(x, dx, boundary, w):
    """x[..., col] -> x[..., col + dx]; out-of-image column filled with `boundary`.
    Lane shift via pltpu.roll (XLU slot, idle in these kernels) + iota fix-up."""
    if dx == 0:
        return x
    rolled = pltpu.roll(x, shift=(-dx) % w, axis=x.ndim - 1)
    lane = jax.lax.broadcasted_iota(jnp.int32, x.shape, x.ndim - 1)
    bad = lane == (0 if dx < 0 else w - 1)
    return jnp.where(bad, boundary, rolled)


# ----------------------------------------------------------------------------
# Kernel 1: fused RCF head (conv1 + conv2 on the MXU + side/fuse heads + sigmoids)
# ----------------------------------------------------------------------------

def _rcf_head_kernel(xp_ref, w1_ref, w2_ref, bvec_ref, theta_ref, o_ref,
                     taps1_ref, taps2_ref, h1_ref, h2_ref,
                     *, cin, c1, H, W, th):
    """xp_ref:   (1, H+4, cin, W) zero-row-padded input, rows-major (resident per n).
       w1_ref:   (c1, 9*cin) bf16 conv1 weights, columns ordered (ky, kx, ci).
       w2_ref:   (c1, 9*c1)  bf16 conv2 weights.
       bvec_ref: (2, c1, 1)  f32 conv biases [b1, b2] for broadcast-add.
       theta_ref: SMEM f32 [ws1(c1), bs1, ws2(c1), bs2, wf(2), bf] scalar head params.
       o_ref:    (1, 3, th, W) [side1, side2, fuse] probability planes for this tile.
       taps1/2:  f32 im2col row-slabs, h1/h2: conv activations (VMEM scratch)."""
    th2 = th + 2
    k1 = 9 * cin
    k2 = 9 * c1
    o_ws1, o_bs1 = 0, c1
    o_ws2, o_bs2 = c1 + 1, 2 * c1 + 1
    o_wf, o_bf = 2 * c1 + 2, 2 * c1 + 4

    i = pl.program_id(1)
    r0 = pl.multiple_of(i * th, 8)                 # first output row of this tile

    # input window: image rows [r0-2, r0+th+2) of the 2-row zero-padded input
    xwin = xp_ref[0, pl.ds(r0, th + 4)]            # (th+4, cin, W)

    # ---- conv1 im2col slab: (th2, 9*cin, W); column zero-pad via roll + mask ----
    for j, dx in enumerate((-1, 0, 1)):            # j == kx (PyTorch cross-correlation)
        xs = _shift_cols(xwin, dx, 0.0, W)
        for ky in range(3):
            t = ky * 3 + j
            taps1_ref[:, t * cin:(t + 1) * cin, :] = xs[ky:ky + th2]

    # ---- conv1 on the MXU: (th2, c1, k1) @ (th2, k1, W) -> (th2, c1, W) ----
    a1 = taps1_ref[...].astype(jnp.bfloat16)
    z1 = jnp.einsum("bmk,bkn->bmn",
                    jnp.broadcast_to(w1_ref[...], (th2, c1, k1)), a1,
                    preferred_element_type=jnp.float32)
    z1 = z1 + bvec_ref[0:1]                        # (1, c1, 1) bias broadcast
    # conv2 consumes zero-padded h1: rows outside [0, H) must be exactly zero.
    row = jax.lax.broadcasted_iota(jnp.int32, (th2, c1, W), 0) + (r0 - 1)
    h1_ref[...] = jnp.where((row >= 0) & (row < H), jnp.maximum(z1, 0.0), 0.0)

    # ---- side-1 logit (1x1 conv on h1 interior rows), scalar weights from SMEM ----
    s1 = theta_ref[o_ws1] * h1_ref[1:th + 1, 0, :]
    for c in range(1, c1):
        s1 = s1 + theta_ref[o_ws1 + c] * h1_ref[1:th + 1, c, :]
    s1 = s1 + theta_ref[o_bs1]

    # ---- conv2 im2col slab: (th, 9*c1, W) ----
    h1full = h1_ref[...]
    for j, dx in enumerate((-1, 0, 1)):
        hs = _shift_cols(h1full, dx, 0.0, W)
        for ky in range(3):
            t = ky * 3 + j
            taps2_ref[:, t * c1:(t + 1) * c1, :] = hs[ky:ky + th]

    a2 = taps2_ref[...].astype(jnp.bfloat16)
    z2 = jnp.einsum("bmk,bkn->bmn",
                    jnp.broadcast_to(w2_ref[...], (th, c1, k2)), a2,
                    preferred_element_type=jnp.float32)
    h2_ref[...] = jnp.maximum(z2 + bvec_ref[1:2], 0.0)

    # ---- side-2 logit ----
    s2 = theta_ref[o_ws2] * h2_ref[:, 0, :]
    for c in range(1, c1):
        s2 = s2 + theta_ref[o_ws2 + c] * h2_ref[:, c, :]
    s2 = s2 + theta_ref[o_bs2]

    # ---- fusion on the pre-sigmoid side score maps (RCF convention), then sigmoids
    fz = theta_ref[o_wf] * s1 + theta_ref[o_wf + 1] * s2 + theta_ref[o_bf]
    o_ref[0, 0] = _sigmoid_fast(s1)
    o_ref[0, 1] = _sigmoid_fast(s2)
    o_ref[0, 2] = _sigmoid_fast(fz)


def _conv_weight_matrix(w):
    """PyTorch Conv2d weight (O, I, 3, 3) -> (O, 9*I), columns ordered (ky, kx, ci)
    to match the in-kernel im2col tap layout."""
    o, i, kh, kw = w.shape
    wt = jnp.transpose(jnp.asarray(w, jnp.float32), (0, 2, 3, 1))
    return wt.reshape(o, kh * kw * i)


def _prepare_rcf_params(params):
    c1 = int(params["conv1_w"].shape[0])
    cin = int(params["conv1_w"].shape[1])
    w1m = _conv_weight_matrix(params["conv1_w"]).astype(jnp.bfloat16)
    w2m = _conv_weight_matrix(params["conv2_w"]).astype(jnp.bfloat16)
    bvec = jnp.stack(
        [jnp.asarray(params["conv1_b"], jnp.float32).reshape(c1),
         jnp.asarray(params["conv2_b"], jnp.float32).reshape(c1)]).reshape(2, c1, 1)
    theta = jnp.concatenate([
        jnp.asarray(params["side1_w"], jnp.float32).reshape(c1),
        jnp.asarray(params["side1_b"], jnp.float32).reshape(1),
        jnp.asarray(params["side2_w"], jnp.float32).reshape(c1),
        jnp.asarray(params["side2_b"], jnp.float32).reshape(1),
        jnp.asarray(params["fuse_w"], jnp.float32).reshape(2),
        jnp.asarray(params["fuse_b"], jnp.float32).reshape(1)])
    return w1m, w2m, bvec, theta, c1, cin


def rcf_fused(x, w1m, w2m, bvec, theta, *, c1):
    """x: (N, Cin, H, W) -> (N, 3, H, W) [side1, side2, fuse] probabilities."""
    N, cin, H, W = x.shape
    th = _row_tile(H, W, max_elems=16 * 1024)
    xr = jnp.transpose(x, (0, 2, 1, 3))                       # (N, H, cin, W)
    xp = jnp.pad(xr, ((0, 0), (2, 2), (0, 0), (0, 0)))        # 2-row conv zero halo
    kern = functools.partial(_rcf_head_kernel, cin=cin, c1=c1, H=H, W=W, th=th)
    return pl.pallas_call(
        kern,
        out_shape=jax.ShapeDtypeStruct((N, 3, H, W), jnp.float32),
        grid=(N, H // th),
        in_specs=[
            # Whole padded image per n (only Cin planes) stays resident across the
            # inner row-tile sweep; the (th+4)-row halo window is sliced in-kernel.
            # TODO(synk): for very large images DMA a (th+4)-row window manually.
            pl.BlockSpec((1, H + 4, cin, W), lambda n, i: (n, 0, 0, 0)),
            pl.BlockSpec((c1, 9 * cin), lambda n, i: (0, 0)),
            pl.BlockSpec((c1, 9 * c1), lambda n, i: (0, 0)),
            pl.BlockSpec((2, c1, 1), lambda n, i: (0, 0, 0)),
            pl.BlockSpec(memory_space=pltpu.MemorySpace.SMEM),
        ],
        # W stays the lane dim (unmasked stores when W % 128 == 0).
        # TODO(synk): a flattened (N, 3, H*W) out layout would avoid masked vst for
        # W not a multiple of 128 but requires an in-kernel lane relayout.
        out_specs=pl.BlockSpec((1, 3, th, W), lambda n, i: (n, 0, i, 0)),
        scratch_shapes=[
            pltpu.VMEM((th + 2, 9 * cin, W), jnp.float32),    # conv1 im2col slab
            pltpu.VMEM((th, 9 * c1, W), jnp.float32),         # conv2 im2col slab
            pltpu.VMEM((th + 2, c1, W), jnp.float32),         # h1 (1-row halo)
            pltpu.VMEM((th, c1, W), jnp.float32),             # h2
        ],
        compiler_params=pltpu.CompilerParams(
            dimension_semantics=("parallel", "parallel"),
            # raise above the 16/32 MiB scoped defaults; drop toward 48 MiB on v7x.
            vmem_limit_bytes=64 * 1024 * 1024),
    )(xp, w1m, w2m, bvec, theta)


# ----------------------------------------------------------------------------
# Kernel 2: fused mask_nms + 8-neighbour affinities + CRF-as-RNN mean field
# ----------------------------------------------------------------------------

def _edge_chain_kernel(ep_ref, nm_ref, un_ref, q_ref, *, W, th, iters, w_pair, eps):
    """ep_ref: (1, H+2, W) fuse edge map padded with 1.0 rows (resident per image).
       nm_ref: (H+2, W)    NMS mask padded with 1.0 rows (fetched exactly once).
       un_ref: (1, 8, th, W) unclipped affinities (`unaries`).
       q_ref:  (1, 8, th, W) clipped affinities after `iters` mean-field iterations."""
    i = pl.program_id(1)
    r0 = pl.multiple_of(i * th, 8)
    ewin = ep_ref[0, pl.ds(r0, th + 2)]            # rows r0-1 .. r0+th (1-row halo)
    nwin = nm_ref[pl.ds(r0, th + 2)]
    # mask_nms fused: thinned edge = edge * (nms > 0.5); out-of-image halo stays 1.0
    thin = ewin * (nwin > 0.5).astype(jnp.float32)
    shifted = {-1: _shift_cols(thin, -1, 1.0, W),
               0: thin,
               1: _shift_cols(thin, 1, 1.0, W)}
    center = thin[1:1 + th]

    # intervening-contour cue: cut probability to each of the 8 neighbours
    u = []
    for k, (dy, dx) in enumerate(OFFSETS):
        nbr = shifted[dx][1 + dy:1 + dy + th]
        aff = jnp.maximum(center, nbr)
        un_ref[0, k] = aff
        u.append(jnp.clip(aff, eps, 1.0 - eps))

    # CRF-as-RNN: q <- sigmoid(logit(u) - 0.5*w_pair + (w_pair/8)*sum_k q_k)
    q = u
    if iters > 0:
        logit_adj = [jnp.log(a) - jnp.log1p(-a) - 0.5 * w_pair for a in u]
        scale = w_pair / float(K_NEIGH)
        for _ in range(iters):
            msg = q[0]
            for qk in q[1:]:
                msg = msg + qk
            wm = scale * msg                       # hoisted: one mul shared by all 8
            q = [_sigmoid_fast(la + wm) for la in logit_adj]

    for k in range(K_NEIGH):
        q_ref[0, k] = q[k]


def edge_chain_fused(edgemap, nms0, *, iters, w_pair, eps=1e-4):
    """edgemap: (N, H, W) fused edge map; nms0: (H, W) shared NMS mask.
    Returns (unaries, q) each (N, 8, H, W); q == clipped unaries if iters == 0."""
    N, H, W = edgemap.shape
    th = _row_tile(H, W, max_elems=128 * 1024)
    ep = jnp.pad(edgemap, ((0, 0), (1, 1), (0, 0)), constant_values=1.0)
    nm = jnp.pad(nms0, ((1, 1), (0, 0)), constant_values=1.0)
    kern = functools.partial(_edge_chain_kernel, W=W, th=th, iters=iters,
                             w_pair=float(w_pair), eps=float(eps))
    o_spec = pl.BlockSpec((1, K_NEIGH, th, W), lambda n, i: (n, 0, i, 0))
    return pl.pallas_call(
        kern,
        out_shape=(jax.ShapeDtypeStruct((N, K_NEIGH, H, W), jnp.float32),
                   jax.ShapeDtypeStruct((N, K_NEIGH, H, W), jnp.float32)),
        grid=(N, H // th),
        in_specs=[
            pl.BlockSpec((1, H + 2, W), lambda n, i: (n, 0, 0)),   # per-image edges
            pl.BlockSpec((H + 2, W), lambda n, i: (0, 0)),         # shared NMS mask
        ],
        out_specs=(o_spec, o_spec),
        compiler_params=pltpu.CompilerParams(
            dimension_semantics=("parallel", "parallel"),
            vmem_limit_bytes=64 * 1024 * 1024),
    )(ep, nm)


# ----------------------------------------------------------------------------
# Plain-JAX glue
# ----------------------------------------------------------------------------

def check_cycles_simplified(q):
    """q: (N, 8, H, W) edge-cut probabilities -> (rounded_count, soft_count)."""
    # TODO(synk): the real check_cycles walks data-dependent clique index lists
    # (cliques_ints); here we check the cycle inequality on dense 2x2 grid cycles.
    r = q[:, IDX_RIGHT]
    d = q[:, IDX_DOWN]
    e1 = r[:, :-1, :-1]
    e2 = d[:, :-1, 1:]
    e3 = r[:, 1:, :-1]
    e4 = d[:, :-1, :-1]
    edges4 = jnp.stack([e1, e2, e3, e4], axis=0)
    total = edges4.sum(axis=0, keepdims=True)
    viol_soft = jnp.maximum(edges4 - (total - edges4), 0.0)
    cycle_counts = viol_soft.sum()
    xb = (edges4 > 0.5).astype(jnp.float32)
    tb = xb.sum(axis=0, keepdims=True)
    viol_round = jnp.any(xb - (tb - xb) > 0.5, axis=0)
    cycle_counts_rounded = viol_round.sum()
    return cycle_counts_rounded, cycle_counts


# ----------------------------------------------------------------------------
# RCF + CRF-as-RNN module (Pallas version)
# ----------------------------------------------------------------------------

class RCF_CRFasRNN_Pallas:
    """Synthetic RCF backbone (2 conv stages, 2 side outputs, 1 fusion) + CRF-as-RNN."""

    def __init__(self, params, only_rcf=False, only_edgemap=False,
                 rcf_backbone="Resnet", k=8, crf_iters=3):
        assert k == K_NEIGH, "k=8 neighbourhood supported"
        self.params = params
        self.only_rcf = only_rcf
        self.only_edgemap = only_edgemap
        self.rcf_backbone = rcf_backbone
        self.k = k
        self.crf_iters = crf_iters
        (self._w1m, self._w2m, self._bvec, self._theta,
         self._c1, self._cin) = _prepare_rcf_params(params)

    def _rcf(self, img_nchw, out_hw):
        x = jnp.asarray(img_nchw, jnp.float32)                 # NCHW like PyTorch
        N, Cin, H, W = x.shape
        # 'Resnet' backbone resizes side outputs to (h, w); spatial dims already match.
        assert (H, W) == tuple(out_hw)
        return rcf_fused(x, self._w1m, self._w2m, self._bvec, self._theta,
                         c1=self._c1)                          # (N, 3, H, W)

    def __call__(self, img, nms, edge_gt=None, shape_dict=None, contour_cue_dict=None):
        h, w = nms.shape[1:]
        sides = self._rcf(img, (h, w))                         # (N, 3, H, W)
        rcf_outputs = [sides[:, c][..., None] for c in range(3)]   # (N, H, W, 1) maps
        if self.only_edgemap:
            return rcf_outputs

        edgemap = sides[:, 2]                                  # (N, H, W) fused map
        # NOTE: like the reference module, only nms[0] is used (mask shared over batch).
        iters = 0 if self.only_rcf else self.crf_iters
        unaries, q = edge_chain_fused(edgemap, nms[0], iters=iters,
                                      w_pair=self.params["crf_w_pair"])

        # TODO(synk): edges / edges_c / cliques / seg_labels and the shape_dict /
        # contour_cue_dict caching are data-dependent Python graph structures with
        # no Pallas equivalent; represented as None / pass-through below.
        edges = edges_c = cliques = seg_labels = None
        cycle_counts_rounded, cycle_counts = check_cycles_simplified(q)

        # only_rcf: iters == 0, so q == unaries_c; otherwise q == updated_unaries_c.
        return (rcf_outputs, edges, unaries, edges_c, q, cliques, seg_labels,
                cycle_counts_rounded, cycle_counts, shape_dict, contour_cue_dict)


def init_params(key, c_img=3, c_hid=8):
    """Parameters in PyTorch Conv2d layouts: (O, I, kH, kW) weights, (O,) biases."""
    ks = jax.random.split(key, 8)
    s = 0.1
    return {
        "conv1_w": s * jax.random.normal(ks[0], (c_hid, c_img, 3, 3), jnp.float32),
        "conv1_b": jnp.zeros((c_hid,), jnp.float32),
        "conv2_w": s * jax.random.normal(ks[1], (c_hid, c_hid, 3, 3), jnp.float32),
        "conv2_b": jnp.zeros((c_hid,), jnp.float32),
        "side1_w": s * jax.random.normal(ks[2], (1, c_hid, 1, 1), jnp.float32),
        "side1_b": jnp.zeros((1,), jnp.float32),
        "side2_w": s * jax.random.normal(ks[3], (1, c_hid, 1, 1), jnp.float32),
        "side2_b": jnp.zeros((1,), jnp.float32),
        "fuse_w": s * jax.random.normal(ks[4], (1, 2, 1, 1), jnp.float32),
        "fuse_b": jnp.zeros((1,), jnp.float32),
        "crf_w_pair": -2.0,
    }


if __name__ == "__main__":
    key = jax.random.PRNGKey(0)
    k_img, k_nms, k_par = jax.random.split(key, 3)

    B, C, H, W = 2, 3, 16, 16
    img = jax.random.normal(k_img, (B, C, H, W), jnp.float32)          # NCHW
    nms = (jax.random.uniform(k_nms, (1, H, W)) > 0.3).astype(jnp.float32)

    params = init_params(k_par)
    model = RCF_CRFasRNN_Pallas(params, k=8, crf_iters=3)

    out = model(img, nms)
    out = jax.block_until_ready(out)

    rcf_outputs = out[0]
    unaries = out[2]
    updated_unaries_c = out[4]
    assert rcf_outputs[-1].shape == (B, H, W, 1)
    assert unaries.shape == (B, 8, H, W)
    assert updated_unaries_c.shape == (B, 8, H, W)
    assert bool(jnp.all(jnp.isfinite(unaries)))
    assert bool(jnp.all(jnp.isfinite(updated_unaries_c)))
    print("KERNEL_OK")
</pallas_src>

<mosaic_0001>
module attributes {stable_mosaic.version = 11 : i64} {
  func.func @_rcf_head_kernel(%arg0: i32, %arg1: i32, %arg2: memref<1x20x3x16xf32, #tpu.memory_space<vmem>>, %arg3: memref<8x27xbf16, #tpu.memory_space<vmem>>, %arg4: memref<8x72xbf16, #tpu.memory_space<vmem>>, %arg5: memref<2x8x1xf32, #tpu.memory_space<vmem>>, %arg6: memref<21xf32, #tpu.memory_space<smem>>, %arg7: memref<1x3x16x16xf32, #tpu.memory_space<vmem>>, %arg8: memref<18x27x16xf32, #tpu.memory_space<vmem>>, %arg9: memref<16x72x16xf32, #tpu.memory_space<vmem>>, %arg10: memref<18x8x16xf32, #tpu.memory_space<vmem>>, %arg11: memref<16x8x16xf32, #tpu.memory_space<vmem>>) attributes {dimension_semantics = [#tpu.dimension_semantics<parallel>, #tpu.dimension_semantics<parallel>], iteration_bounds = array<i64: 2, 1>, scalar_prefetch = 0 : i64, scratch_operands = 4 : i64, tpu.core_type = #tpu.core_type<tc>, window_params = [{transform_indices = @transform_0, window_bounds = array<i64: 1, 20, 3, 16>}, {pipeline_mode = #tpu.pipeline_mode<synchronous>, transform_indices = @transform_1, window_bounds = array<i64: 8, 27>}, {pipeline_mode = #tpu.pipeline_mode<synchronous>, transform_indices = @transform_2, window_bounds = array<i64: 8, 72>}, {pipeline_mode = #tpu.pipeline_mode<synchronous>, transform_indices = @transform_3, window_bounds = array<i64: 2, 8, 1>}, {transform_indices = @transform_4, window_bounds = array<i64: 21>}, {transform_indices = @transform_5, window_bounds = array<i64: 1, 3, 16, 16>}]} {
    %c16_i32 = arith.constant 16 : i32
    %0 = arith.muli %arg1, %c16_i32 : i32
    %1 = tpu.assume_multiple %0, 8 : i32
    %c0 = arith.constant 0 : index
    %2 = arith.index_cast %1 : i32 to index
    %c0_0 = arith.constant 0 : index
    %c0_1 = arith.constant 0 : index
    %3 = vector.load %arg2[%c0, %2, %c0_0, %c0_1] : memref<1x20x3x16xf32, #tpu.memory_space<vmem>>, vector<1x20x3x16xf32>
    %4 = vector.shape_cast %3 : vector<1x20x3x16xf32> to vector<20x3x16xf32>
    %c1_i32 = arith.constant 1 : i32
    %5 = tpu.dynamic_rotate %4 by %c1_i32 dim 2 : vector<20x3x16xf32>, i32 -> vector<20x3x16xf32>
    %6 = tpu.iota {dimensions = array<i32: 2>} : vector<20x3x16xi32>
    %c0_i32 = arith.constant 0 : i32
    %7 = vector.broadcast %c0_i32 : i32 to vector<20x3x16xi32>
    %8 = arith.cmpi eq, %6, %7 : vector<20x3x16xi32>
    %cst = arith.constant 0.000000e+00 : f32
    %9 = vector.broadcast %cst : f32 to vector<20x3x16xf32>
    %10 = arith.select %8, %9, %5 : vector<20x3x16xi1>, vector<20x3x16xf32>
    %11 = vector.extract_strided_slice %10 {offsets = [0, 0, 0], sizes = [18, 3, 16], strides = [1, 1, 1]} : vector<20x3x16xf32> to vector<18x3x16xf32>
    %c0_2 = arith.constant 0 : index
    %c0_3 = arith.constant 0 : index
    %c0_4 = arith.constant 0 : index
    %12 = vector.load %arg8[%c0_2, %c0_3, %c0_4] : memref<18x27x16xf32, #tpu.memory_space<vmem>>, vector<18x3x16xf32>
    tpu.vector_store %arg8[%c0_2, %c0_3, %c0_4], %11 {strides = array<i32>} : memref<18x27x16xf32, #tpu.memory_space<vmem>>, vector<18x3x16xf32>,
    %13 = vector.extract_strided_slice %10 {offsets = [1, 0, 0], sizes = [18, 3, 16], strides = [1, 1, 1]} : vector<20x3x16xf32> to vector<18x3x16xf32>
    %c0_5 = arith.constant 0 : index
    %c9 = arith.constant 9 : index
    %c0_6 = arith.constant 0 : index
    %14 = vector.load %arg8[%c0_5, %c9, %c0_6] : memref<18x27x16xf32, #tpu.memory_space<vmem>>, vector<18x3x16xf32>
    tpu.vector_store %arg8[%c0_5, %c9, %c0_6], %13 {strides = array<i32>} : memref<18x27x16xf32, #tpu.memory_space<vmem>>, vector<18x3x16xf32>,
    %15 = vector.extract_strided_slice %10 {offsets = [2, 0, 0], sizes = [18, 3, 16], strides = [1, 1, 1]} : vector<20x3x16xf32> to vector<18x3x16xf32>
    %c0_7 = arith.constant 0 : index
    %c18 = arith.constant 18 : index
    %c0_8 = arith.constant 0 : index
    %16 = vector.load %arg8[%c0_7, %c18, %c0_8] : memref<18x27x16xf32, #tpu.memory_space<vmem>>, vector<18x3x16xf32>
    tpu.vector_store %arg8[%c0_7, %c18, %c0_8], %15 {strides = array<i32>} : memref<18x27x16xf32, #tpu.memory_space<vmem>>, vector<18x3x16xf32>,
    %17 = vector.extract_strided_slice %4 {offsets = [0, 0, 0], sizes = [18, 3, 16], strides = [1, 1, 1]} : vector<20x3x16xf32> to vector<18x3x16xf32>
    %c0_9 = arith.constant 0 : index
    %c3 = arith.constant 3 : index
    %c0_10 = arith.constant 0 : index
    %18 = vector.load %arg8[%c0_9, %c3, %c0_10] : memref<18x27x16xf32, #tpu.memory_space<vmem>>, vector<18x3x16xf32>
    tpu.vector_store %arg8[%c0_9, %c3, %c0_10], %17 {strides = array<i32>} : memref<18x27x16xf32, #tpu.memory_space<vmem>>, vector<18x3x16xf32>,
    %19 = vector.extract_strided_slice %4 {offsets = [1, 0, 0], sizes = [18, 3, 16], strides = [1, 1, 1]} : vector<20x3x16xf32> to vector<18x3x16xf32>
    %c0_11 = arith.constant 0 : index
    %c12 = arith.constant 12 : index
    %c0_12 = arith.constant 0 : index
    %20 = vector.load %arg8[%c0_11, %c12, %c0_12] : memref<18x27x16xf32, #tpu.memory_space<vmem>>, vector<18x3x16xf32>
    tpu.vector_store %arg8[%c0_11, %c12, %c0_12], %19 {strides = array<i32>} : memref<18x27x16xf32, #tpu.memory_space<vmem>>, vector<18x3x16xf32>,
    %21 = vector.extract_strided_slice %4 {offsets = [2, 0, 0], sizes = [18, 3, 16], strides = [1, 1, 1]} : vector<20x3x16xf32> to vector<18x3x16xf32>
    %c0_13 = arith.constant 0 : index
    %c21 = arith.constant 21 : index
    %c0_14 = arith.constant 0 : index
    %22 = vector.load %arg8[%c0_13, %c21, %c0_14] : memref<18x27x16xf32, #tpu.memory_space<vmem>>, vector<18x3x16xf32>
    tpu.vector_store %arg8[%c0_13, %c21, %c0_14], %21 {strides = array<i32>} : memref<18x27x16xf32, #tpu.memory_space<vmem>>, vector<18x3x16xf32>,
    %c15_i32 = arith.constant 15 : i32
    %23 = tpu.dynamic_rotate %4 by %c15_i32 dim 2 : vector<20x3x16xf32>, i32 -> vector<20x3x16xf32>
    %24 = tpu.iota {dimensions = array<i32: 2>} : vector<20x3x16xi32>
    %c15_i32_15 = arith.constant 15 : i32
    %25 = vector.broadcast %c15_i32_15 : i32 to vector<20x3x16xi32>
    %26 = arith.cmpi eq, %24, %25 : vector<20x3x16xi32>
    %cst_16 = arith.constant 0.000000e+00 : f32
    %27 = vector.broadcast %cst_16 : f32 to vector<20x3x16xf32>
    %28 = arith.select %26, %27, %23 : vector<20x3x16xi1>, vector<20x3x16xf32>
    %29 = vector.extract_strided_slice %28 {offsets = [0, 0, 0], sizes = [18, 3, 16], strides = [1, 1, 1]} : vector<20x3x16xf32> to vector<18x3x16xf32>
    %c0_17 = arith.constant 0 : index
    %c6 = arith.constant 6 : index
    %c0_18 = arith.constant 0 : index
    %30 = vector.load %arg8[%c0_17, %c6, %c0_18] : memref<18x27x16xf32, #tpu.memory_space<vmem>>, vector<18x3x16xf32>
    tpu.vector_store %arg8[%c0_17, %c6, %c0_18], %29 {strides = array<i32>} : memref<18x27x16xf32, #tpu.memory_space<vmem>>, vector<18x3x16xf32>,
    %31 = vector.extract_strided_slice %28 {offsets = [1, 0, 0], sizes = [18, 3, 16], strides = [1, 1, 1]} : vector<20x3x16xf32> to vector<18x3x16xf32>
    %c0_19 = arith.constant 0 : index
    %c15 = arith.constant 15 : index
    %c0_20 = arith.constant 0 : index
    %32 = vector.load %arg8[%c0_19, %c15, %c0_20] : memref<18x27x16xf32, #tpu.memory_space<vmem>>, vector<18x3x16xf32>
    tpu.vector_store %arg8[%c0_19, %c15, %c0_20], %31 {strides = array<i32>} : memref<18x27x16xf32, #tpu.memory_space<vmem>>, vector<18x3x16xf32>,
    %33 = vector.extract_strided_slice %28 {offsets = [2, 0, 0], sizes = [18, 3, 16], strides = [1, 1, 1]} : vector<20x3x16xf32> to vector<18x3x16xf32>
    %c0_21 = arith.constant 0 : index
    %c24 = arith.constant 24 : index
    %c0_22 = arith.constant 0 : index
    %34 = vector.load %arg8[%c0_21, %c24, %c0_22] : memref<18x27x16xf32, #tpu.memory_space<vmem>>, vector<18x3x16xf32>
    tpu.vector_store %arg8[%c0_21, %c24, %c0_22], %33 {strides = array<i32>} : memref<18x27x16xf32, #tpu.memory_space<vmem>>, vector<18x3x16xf32>,
    %c0_23 = arith.constant 0 : index
    %c0_24 = arith.constant 0 : index
    %c0_25 = arith.constant 0 : index
    %35 = vector.load %arg8[%c0_23, %c0_24, %c0_25] : memref<18x27x16xf32, #tpu.memory_space<vmem>>, vector<18x27x16xf32>
    %36 = arith.truncf %35 : vector<18x27x16xf32> to vector<18x27x16xbf16>
    %c0_26 = arith.constant 0 : index
    %c0_27 = arith.constant 0 : index
    %37 = vector.load %arg3[%c0_26, %c0_27] : memref<8x27xbf16, #tpu.memory_space<vmem>>, vector<8x27xbf16>
    %38 = vector.shape_cast %37 : vector<8x27xbf16> to vector<1x8x27xbf16>
    %39 = vector.broadcast %38 : vector<1x8x27xbf16> to vector<18x8x27xbf16>
    "tpu.trace_start"() <{level = 10 : i32, message = "bmk,bkn->bmn"}> : () -> ()
    %cst_28 = arith.constant dense<0.000000e+00> : vector<18x8x16xf32>
    %40 = tpu.matmul %39, %36, %cst_28 {dimension_numbers = #tpu.dot_dimension_numbers<[2], [1], [1], [2], [0, 0, 0, 1, 1, 2], [0], [0]>} : vector<18x8x27xbf16>, vector<18x27x16xbf16>, vector<18x8x16xf32> -> vector<18x8x16xf32>
    "tpu.trace_stop"() : () -> ()
    %c0_29 = arith.constant 0 : index
    %c0_30 = arith.constant 0 : index
    %c0_31 = arith.constant 0 : index
    %41 = vector.load %arg5[%c0_29, %c0_30, %c0_31] : memref<2x8x1xf32, #tpu.memory_space<vmem>>, vector<1x8x1xf32>
    %42 = vector.broadcast %41 : vector<1x8x1xf32> to vector<18x8x16xf32>
    %43 = arith.addf %40, %42 : vector<18x8x16xf32>
    %44 = tpu.iota {dimensions = array<i32: 0>} : vector<18x8x16xi32>
    %c1_i32_32 = arith.constant 1 : i32
    %45 = arith.subi %1, %c1_i32_32 : i32
    %46 = vector.broadcast %45 : i32 to vector<18x8x16xi32>
    %47 = arith.addi %44, %46 : vector<18x8x16xi32>
    %c0_i32_33 = arith.constant 0 : i32
    %48 = vector.broadcast %c0_i32_33 : i32 to vector<18x8x16xi32>
    %49 = arith.cmpi sge, %47, %48 : vector<18x8x16xi32>
    %c16_i32_34 = arith.constant 16 : i32
    %50 = vector.broadcast %c16_i32_34 : i32 to vector<18x8x16xi32>
    %51 = arith.cmpi slt, %47, %50 : vector<18x8x16xi32>
    %52 = arith.andi %49, %51 : vector<18x8x16xi1>
    %cst_35 = arith.constant 0.000000e+00 : f32
    %53 = vector.broadcast %cst_35 : f32 to vector<18x8x16xf32>
    %54 = arith.maximumf %43, %53 : vector<18x8x16xf32>
    %cst_36 = arith.constant 0.000000e+00 : f32
    %55 = vector.broadcast %cst_36 : f32 to vector<18x8x16xf32>
    %56 = arith.select %52, %54, %55 : vector<18x8x16xi1>, vector<18x8x16xf32>
    %c0_37 = arith.constant 0 : index
    %c0_38 = arith.constant 0 : index
    %c0_39 = arith.constant 0 : index
    %57 = vector.load %arg10[%c0_37, %c0_38, %c0_39] : memref<18x8x16xf32, #tpu.memory_space<vmem>>, vector<18x8x16xf32>
    tpu.vector_store %arg10[%c0_37, %c0_38, %c0_39], %56 {strides = array<i32>} : memref<18x8x16xf32, #tpu.memory_space<vmem>>, vector<18x8x16xf32>,
    %c0_40 = arith.constant 0 : index
    %58 = memref.load %arg6[%c0_40] : memref<21xf32, #tpu.memory_space<smem>>
    %c1 = arith.constant 1 : index
    %c0_41 = arith.constant 0 : index
    %c0_42 = arith.constant 0 : index
    %59 = vector.load %arg10[%c1, %c0_41, %c0_42] : memref<18x8x16xf32, #tpu.memory_space<vmem>>, vector<16x1x16xf32>
    %60 = vector.shape_cast %59 : vector<16x1x16xf32> to vector<16x16xf32>
    %61 = vector.broadcast %58 : f32 to vector<16x16xf32>
    %62 = arith.mulf %61, %60 : vector<16x16xf32>
    %c1_43 = arith.constant 1 : index
    %63 = memref.load %arg6[%c1_43] : memref<21xf32, #tpu.memory_space<smem>>
    %c1_44 = arith.constant 1 : index
    %c1_45 = arith.constant 1 : index
    %c0_46 = arith.constant 0 : index
    %64 = vector.load %arg10[%c1_44, %c1_45, %c0_46] : memref<18x8x16xf32, #tpu.memory_space<vmem>>, vector<16x1x16xf32>
    %65 = vector.shape_cast %64 : vector<16x1x16xf32> to vector<16x16xf32>
    %66 = vector.broadcast %63 : f32 to vector<16x16xf32>
    %67 = arith.mulf %66, %65 : vector<16x16xf32>
    %68 = arith.addf %62, %67 : vector<16x16xf32>
    %c2 = arith.constant 2 : index
    %69 = memref.load %arg6[%c2] : memref<21xf32, #tpu.memory_space<smem>>
    %c1_47 = arith.constant 1 : index
    %c2_48 = arith.constant 2 : index
    %c0_49 = arith.constant 0 : index
    %70 = vector.load %arg10[%c1_47, %c2_48, %c0_49] : memref<18x8x16xf32, #tpu.memory_space<vmem>>, vector<16x1x16xf32>
    %71 = vector.shape_cast %70 : vector<16x1x16xf32> to vector<16x16xf32>
    %72 = vector.broadcast %69 : f32 to vector<16x16xf32>
    %73 = arith.mulf %72, %71 : vector<16x16xf32>
    %74 = arith.addf %68, %73 : vector<16x16xf32>
    %c3_50 = arith.constant 3 : index
    %75 = memref.load %arg6[%c3_50] : memref<21xf32, #tpu.memory_space<smem>>
    %c1_51 = arith.constant 1 : index
    %c3_52 = arith.constant 3 : index
    %c0_53 = arith.constant 0 : index
    %76 = vector.load %arg10[%c1_51, %c3_52, %c0_53] : memref<18x8x16xf32, #tpu.memory_space<vmem>>, vector<16x1x16xf32>
    %77 = vector.shape_cast %76 : vector<16x1x16xf32> to vector<16x16xf32>
    %78 = vector.broadcast %75 : f32 to vector<16x16xf32>
    %79 = arith.mulf %78, %77 : vector<16x16xf32>
    %80 = arith.addf %74, %79 : vector<16x16xf32>
    %c4 = arith.constant 4 : index
    %81 = memref.load %arg6[%c4] : memref<21xf32, #tpu.memory_space<smem>>
    %c1_54 = arith.constant 1 : index
    %c4_55 = arith.constant 4 : index
    %c0_56 = arith.constant 0 : index
    %82 = vector.load %arg10[%c1_54, %c4_55, %c0_56] : memref<18x8x16xf32, #tpu.memory_space<vmem>>, vector<16x1x16xf32>
    %83 = vector.shape_cast %82 : vector<16x1x16xf32> to vector<16x16xf32>
    %84 = vector.broadcast %81 : f32 to vector<16x16xf32>
    %85 = arith.mulf %84, %83 : vector<16x16xf32>
    %86 = arith.addf %80, %85 : vector<16x16xf32>
    %c5 = arith.constant 5 : index
    %87 = memref.load %arg6[%c5] : memref<21xf32, #tpu.memory_space<smem>>
    %c1_57 = arith.constant 1 : index
    %c5_58 = arith.constant 5 : index
    %c0_59 = arith.constant 0 : index
    %88 = vector.load %arg10[%c1_57, %c5_58, %c0_59] : memref<18x8x16xf32, #tpu.memory_space<vmem>>, vector<16x1x16xf32>
    %89 = vector.shape_cast %88 : vector<16x1x16xf32> to vector<16x16xf32>
    %90 = vector.broadcast %87 : f32 to vector<16x16xf32>
    %91 = arith.mulf %90, %89 : vector<16x16xf32>
    %92 = arith.addf %86, %91 : vector<16x16xf32>
    %c6_60 = arith.constant 6 : index
    %93 = memref.load %arg6[%c6_60] : memref<21xf32, #tpu.memory_space<smem>>
    %c1_61 = arith.constant 1 : index
    %c6_62 = arith.constant 6 : index
    %c0_63 = arith.constant 0 : index
    %94 = vector.load %arg10[%c1_61, %c6_62, %c0_63] : memref<18x8x16xf32, #tpu.memory_space<vmem>>, vector<16x1x16xf32>
    %95 = vector.shape_cast %94 : vector<16x1x16xf32> to vector<16x16xf32>
    %96 = vector.broadcast %93 : f32 to vector<16x16xf32>
    %97 = arith.mulf %96, %95 : vector<16x16xf32>
    %98 = arith.addf %92, %97 : vector<16x16xf32>
    %c7 = arith.constant 7 : index
    %99 = memref.load %arg6[%c7] : memref<21xf32, #tpu.memory_space<smem>>
    %c1_64 = arith.constant 1 : index
    %c7_65 = arith.constant 7 : index
    %c0_66 = arith.constant 0 : index
    %100 = vector.load %arg10[%c1_64, %c7_65, %c0_66] : memref<18x8x16xf32, #tpu.memory_space<vmem>>, vector<16x1x16xf32>
    %101 = vector.shape_cast %100 : vector<16x1x16xf32> to vector<16x16xf32>
    %102 = vector.broadcast %99 : f32 to vector<16x16xf32>
    %103 = arith.mulf %102, %101 : vector<16x16xf32>
    %104 = arith.addf %98, %103 : vector<16x16xf32>
    %c8 = arith.constant 8 : index
    %105 = memref.load %arg6[%c8] : memref<21xf32, #tpu.memory_space<smem>>
    %106 = vector.broadcast %105 : f32 to vector<16x16xf32>
    %107 = arith.addf %104, %106 : vector<16x16xf32>
    %c0_67 = arith.constant 0 : index
    %c0_68 = arith.constant 0 : index
    %c0_69 = arith.constant 0 : index
    %108 = vector.load %arg10[%c0_67, %c0_68, %c0_69] : memref<18x8x16xf32, #tpu.memory_space<vmem>>, vector<18x8x16xf32>
    %c1_i32_70 = arith.constant 1 : i32
    %109 = tpu.dynamic_rotate %108 by %c1_i32_70 dim 2 : vector<18x8x16xf32>, i32 -> vector<18x8x16xf32>
    %110 = tpu.iota {dimensions = array<i32: 2>} : vector<18x8x16xi32>
    %c0_i32_71 = arith.constant 0 : i32
    %111 = vector.broadcast %c0_i32_71 : i32 to vector<18x8x16xi32>
    %112 = arith.cmpi eq, %110, %111 : vector<18x8x16xi32>
    %cst_72 = arith.constant 0.000000e+00 : f32
    %113 = vector.broadcast %cst_72 : f32 to vector<18x8x16xf32>
    %114 = arith.select %112, %113, %109 : vector<18x8x16xi1>, vector<18x8x16xf32>
    %115 = vector.extract_strided_slice %114 {offsets = [0, 0, 0], sizes = [16, 8, 16], strides = [1, 1, 1]} : vector<18x8x16xf32> to vector<16x8x16xf32>
    %c0_73 = arith.constant 0 : index
    %c0_74 = arith.constant 0 : index
    %c0_75 = arith.constant 0 : index
    %116 = vector.load %arg9[%c0_73, %c0_74, %c0_75] : memref<16x72x16xf32, #tpu.memory_space<vmem>>, vector<16x8x16xf32>
    tpu.vector_store %arg9[%c0_73, %c0_74, %c0_75], %115 {strides = array<i32>} : memref<16x72x16xf32, #tpu.memory_space<vmem>>, vector<16x8x16xf32>,
    %117 = vector.extract_strided_slice %114 {offsets = [1, 0, 0], sizes = [16, 8, 16], strides = [1, 1, 1]} : vector<18x8x16xf32> to vector<16x8x16xf32>
    %c0_76 = arith.constant 0 : index
    %c24_77 = arith.constant 24 : index
    %c0_78 = arith.constant 0 : index
    %118 = vector.load %arg9[%c0_76, %c24_77, %c0_78] : memref<16x72x16xf32, #tpu.memory_space<vmem>>, vector<16x8x16xf32>
    tpu.vector_store %arg9[%c0_76, %c24_77, %c0_78], %117 {strides = array<i32>} : memref<16x72x16xf32, #tpu.memory_space<vmem>>, vector<16x8x16xf32>,
    %119 = vector.extract_strided_slice %114 {offsets = [2, 0, 0], sizes = [16, 8, 16], strides = [1, 1, 1]} : vector<18x8x16xf32> to vector<16x8x16xf32>
    %c0_79 = arith.constant 0 : index
    %c48 = arith.constant 48 : index
    %c0_80 = arith.constant 0 : index
    %120 = vector.load %arg9[%c0_79, %c48, %c0_80] : memref<16x72x16xf32, #tpu.memory_space<vmem>>, vector<16x8x16xf32>
    tpu.vector_store %arg9[%c0_79, %c48, %c0_80], %119 {strides = array<i32>} : memref<16x72x16xf32, #tpu.memory_space<vmem>>, vector<16x8x16xf32>,
    %121 = vector.extract_strided_slice %108 {offsets = [0, 0, 0], sizes = [16, 8, 16], strides = [1, 1, 1]} : vector<18x8x16xf32> to vector<16x8x16xf32>
    %c0_81 = arith.constant 0 : index
    %c8_82 = arith.constant 8 : index
    %c0_83 = arith.constant 0 : index
    %122 = vector.load %arg9[%c0_81, %c8_82, %c0_83] : memref<16x72x16xf32, #tpu.memory_space<vmem>>, vector<16x8x16xf32>
    tpu.vector_store %arg9[%c0_81, %c8_82, %c0_83], %121 {strides = array<i32>} : memref<16x72x16xf32, #tpu.memory_space<vmem>>, vector<16x8x16xf32>,
    %123 = vector.extract_strided_slice %108 {offsets = [1, 0, 0], sizes = [16, 8, 16], strides = [1, 1, 1]} : vector<18x8x16xf32> to vector<16x8x16xf32>
    %c0_84 = arith.constant 0 : index
    %c32 = arith.constant 32 : index
    %c0_85 = arith.constant 0 : index
    %124 = vector.load %arg9[%c0_84, %c32, %c0_85] : memref<16x72x16xf32, #tpu.memory_space<vmem>>, vector<16x8x16xf32>
    tpu.vector_store %arg9[%c0_84, %c32, %c0_85], %123 {strides = array<i32>} : memref<16x72x16xf32, #tpu.memory_space<vmem>>, vector<16x8x16xf32>,
    %125 = vector.extract_strided_slice %108 {offsets = [2, 0, 0], sizes = [16, 8, 16], strides = [1, 1, 1]} : vector<18x8x16xf32> to vector<16x8x16xf32>
    %c0_86 = arith.constant 0 : index
    %c56 = arith.constant 56 : index
    %c0_87 = arith.constant 0 : index
    %126 = vector.load %arg9[%c0_86, %c56, %c0_87] : memref<16x72x16xf32, #tpu.memory_space<vmem>>, vector<16x8x16xf32>
    tpu.vector_store %arg9[%c0_86, %c56, %c0_87], %125 {strides = array<i32>} : memref<16x72x16xf32, #tpu.memory_space<vmem>>, vector<16x8x16xf32>,
    %c15_i32_88 = arith.constant 15 : i32
    %127 = tpu.dynamic_rotate %108 by %c15_i32_88 dim 2 : vector<18x8x16xf32>, i32 -> vector<18x8x16xf32>
    %128 = tpu.iota {dimensions = array<i32: 2>} : vector<18x8x16xi32>
    %c15_i32_89 = arith.constant 15 : i32
    %129 = vector.broadcast %c15_i32_89 : i32 to vector<18x8x16xi32>
    %130 = arith.cmpi eq, %128, %129 : vector<18x8x16xi32>
    %cst_90 = arith.constant 0.000000e+00 : f32
    %131 = vector.broadcast %cst_90 : f32 to vector<18x8x16xf32>
    %132 = arith.select %130, %131, %127 : vector<18x8x16xi1>, vector<18x8x16xf32>
    %133 = vector.extract_strided_slice %132 {offsets = [0, 0, 0], sizes = [16, 8, 16], strides = [1, 1, 1]} : vector<18x8x16xf32> to vector<16x8x16xf32>
    %c0_91 = arith.constant 0 : index
    %c16 = arith.constant 16 : index
    %c0_92 = arith.constant 0 : index
    %134 = vector.load %arg9[%c0_91, %c16, %c0_92] : memref<16x72x16xf32, #tpu.memory_space<vmem>>, vector<16x8x16xf32>
    tpu.vector_store %arg9[%c0_91, %c16, %c0_92], %133 {strides = array<i32>} : memref<16x72x16xf32, #tpu.memory_space<vmem>>, vector<16x8x16xf32>,
    %135 = vector.extract_strided_slice %132 {offsets = [1, 0, 0], sizes = [16, 8, 16], strides = [1, 1, 1]} : vector<18x8x16xf32> to vector<16x8x16xf32>
    %c0_93 = arith.constant 0 : index
    %c40 = arith.constant 40 : index
    %c0_94 = arith.constant 0 : index
    %136 = vector.load %arg9[%c0_93, %c40, %c0_94] : memref<16x72x16xf32, #tpu.memory_space<vmem>>, vector<16x8x16xf32>
    tpu.vector_store %arg9[%c0_93, %c40, %c0_94], %135 {strides = array<i32>} : memref<16x72x16xf32, #tpu.memory_space<vmem>>, vector<16x8x16xf32>,
    %137 = vector.extract_strided_slice %132 {offsets = [2, 0, 0], sizes = [16, 8, 16], strides = [1, 1, 1]} : vector<18x8x16xf32> to vector<16x8x16xf32>
    %c0_95 = arith.constant 0 : index
    %c64 = arith.constant 64 : index
    %c0_96 = arith.constant 0 : index
    %138 = vector.load %arg9[%c0_95, %c64, %c0_96] : memref<16x72x16xf32, #tpu.memory_space<vmem>>, vector<16x8x16xf32>
    tpu.vector_store %arg9[%c0_95, %c64, %c0_96], %137 {strides = array<i32>} : memref<16x72x16xf32, #tpu.memory_space<vmem>>, vector<16x8x16xf32>,
    %c0_97 = arith.constant 0 : index
    %c0_98 = arith.constant 0 : index
    %c0_99 = arith.constant 0 : index
    %139 = vector.load %arg9[%c0_97, %c0_98, %c0_99] : memref<16x72x16xf32, #tpu.memory_space<vmem>>, vector<16x72x16xf32>
    %140 = arith.truncf %139 : vector<16x72x16xf32> to vector<16x72x16xbf16>
    %c0_100 = arith.constant 0 : index
    %c0_101 = arith.constant 0 : index
    %141 = vector.load %arg4[%c0_100, %c0_101] : memref<8x72xbf16, #tpu.memory_space<vmem>>, vector<8x72xbf16>
    %142 = vector.shape_cast %141 : vector<8x72xbf16> to vector<1x8x72xbf16>
    %143 = vector.broadcast %142 : vector<1x8x72xbf16> to vector<16x8x72xbf16>
    "tpu.trace_start"() <{level = 10 : i32, message = "bmk,bkn->bmn"}> : () -> ()
    %cst_102 = arith.constant dense<0.000000e+00> : vector<16x8x16xf32>
    %144 = tpu.matmul %143, %140, %cst_102 {dimension_numbers = #tpu.dot_dimension_numbers<[2], [1], [1], [2], [0, 0, 0, 1, 1, 2], [0], [0]>} : vector<16x8x72xbf16>, vector<16x72x16xbf16>, vector<16x8x16xf32> -> vector<16x8x16xf32>
    "tpu.trace_stop"() : () -> ()
    %c1_103 = arith.constant 1 : index
    %c0_104 = arith.constant 0 : index
    %c0_105 = arith.constant 0 : index
    %145 = vector.load %arg5[%c1_103, %c0_104, %c0_105] : memref<2x8x1xf32, #tpu.memory_space<vmem>>, vector<1x8x1xf32>
    %146 = vector.broadcast %145 : vector<1x8x1xf32> to vector<16x8x16xf32>
    %147 = arith.addf %144, %146 : vector<16x8x16xf32>
    %cst_106 = arith.constant 0.000000e+00 : f32
    %148 = vector.broadcast %cst_106 : f32 to vector<16x8x16xf32>
    %149 = arith.maximumf %147, %148 : vector<16x8x16xf32>
    %c0_107 = arith.constant 0 : index
    %c0_108 = arith.constant 0 : index
    %c0_109 = arith.constant 0 : index
    %150 = vector.load %arg11[%c0_107, %c0_108, %c0_109] : memref<16x8x16xf32, #tpu.memory_space<vmem>>, vector<16x8x16xf32>
    tpu.vector_store %arg11[%c0_107, %c0_108, %c0_109], %149 {strides = array<i32>} : memref<16x8x16xf32, #tpu.memory_space<vmem>>, vector<16x8x16xf32>,
    %c9_110 = arith.constant 9 : index
    %151 = memref.load %arg6[%c9_110] : memref<21xf32, #tpu.memory_space<smem>>
    %c0_111 = arith.constant 0 : index
    %c0_112 = arith.constant 0 : index
    %c0_113 = arith.constant 0 : index
    %152 = vector.load %arg11[%c0_111, %c0_112, %c0_113] : memref<16x8x16xf32, #tpu.memory_space<vmem>>, vector<16x1x16xf32>
    %153 = vector.shape_cast %152 : vector<16x1x16xf32> to vector<16x16xf32>
    %154 = vector.broadcast %151 : f32 to vector<16x16xf32>
    %155 = arith.mulf %154, %153 : vector<16x16xf32>
    %c10 = arith.constant 10 : index
    %156 = memref.load %arg6[%c10] : memref<21xf32, #tpu.memory_space<smem>>
    %c0_114 = arith.constant 0 : index
    %c1_115 = arith.constant 1 : index
    %c0_116 = arith.constant 0 : index
    %157 = vector.load %arg11[%c0_114, %c1_115, %c0_116] : memref<16x8x16xf32, #tpu.memory_space<vmem>>, vector<16x1x16xf32>
    %158 = vector.shape_cast %157 : vector<16x1x16xf32> to vector<16x16xf32>
    %159 = vector.broadcast %156 : f32 to vector<16x16xf32>
    %160 = arith.mulf %159, %158 : vector<16x16xf32>
    %161 = arith.addf %155, %160 : vector<16x16xf32>
    %c11 = arith.constant 11 : index
    %162 = memref.load %arg6[%c11] : memref<21xf32, #tpu.memory_space<smem>>
    %c0_117 = arith.constant 0 : index
    %c2_118 = arith.constant 2 : index
    %c0_119 = arith.constant 0 : index
    %163 = vector.load %arg11[%c0_117, %c2_118, %c0_119] : memref<16x8x16xf32, #tpu.memory_space<vmem>>, vector<16x1x16xf32>
    %164 = vector.shape_cast %163 : vector<16x1x16xf32> to vector<16x16xf32>
    %165 = vector.broadcast %162 : f32 to vector<16x16xf32>
    %166 = arith.mulf %165, %164 : vector<16x16xf32>
    %167 = arith.addf %161, %166 : vector<16x16xf32>
    %c12_120 = arith.constant 12 : index
    %168 = memref.load %arg6[%c12_120] : memref<21xf32, #tpu.memory_space<smem>>
    %c0_121 = arith.constant 0 : index
    %c3_122 = arith.constant 3 : index
    %c0_123 = arith.constant 0 : index
    %169 = vector.load %arg11[%c0_121, %c3_122, %c0_123] : memref<16x8x16xf32, #tpu.memory_space<vmem>>, vector<16x1x16xf32>
    %170 = vector.shape_cast %169 : vector<16x1x16xf32> to vector<16x16xf32>
    %171 = vector.broadcast %168 : f32 to vector<16x16xf32>
    %172 = arith.mulf %171, %170 : vector<16x16xf32>
    %173 = arith.addf %167, %172 : vector<16x16xf32>
    %c13 = arith.constant 13 : index
    %174 = memref.load %arg6[%c13] : memref<21xf32, #tpu.memory_space<smem>>
    %c0_124 = arith.constant 0 : index
    %c4_125 = arith.constant 4 : index
    %c0_126 = arith.constant 0 : index
    %175 = vector.load %arg11[%c0_124, %c4_125, %c0_126] : memref<16x8x16xf32, #tpu.memory_space<vmem>>, vector<16x1x16xf32>
    %176 = vector.shape_cast %175 : vector<16x1x16xf32> to vector<16x16xf32>
    %177 = vector.broadcast %174 : f32 to vector<16x16xf32>
    %178 = arith.mulf %177, %176 : vector<16x16xf32>
    %179 = arith.addf %173, %178 : vector<16x16xf32>
    %c14 = arith.constant 14 : index
    %180 = memref.load %arg6[%c14] : memref<21xf32, #tpu.memory_space<smem>>
    %c0_127 = arith.constant 0 : index
    %c5_128 = arith.constant 5 : index
    %c0_129 = arith.constant 0 : index
    %181 = vector.load %arg11[%c0_127, %c5_128, %c0_129] : memref<16x8x16xf32, #tpu.memory_space<vmem>>, vector<16x1x16xf32>
    %182 = vector.shape_cast %181 : vector<16x1x16xf32> to vector<16x16xf32>
    %183 = vector.broadcast %180 : f32 to vector<16x16xf32>
    %184 = arith.mulf %183, %182 : vector<16x16xf32>
    %185 = arith.addf %179, %184 : vector<16x16xf32>
    %c15_130 = arith.constant 15 : index
    %186 = memref.load %arg6[%c15_130] : memref<21xf32, #tpu.memory_space<smem>>
    %c0_131 = arith.constant 0 : index
    %c6_132 = arith.constant 6 : index
    %c0_133 = arith.constant 0 : index
    %187 = vector.load %arg11[%c0_131, %c6_132, %c0_133] : memref<16x8x16xf32, #tpu.memory_space<vmem>>, vector<16x1x16xf32>
    %188 = vector.shape_cast %187 : vector<16x1x16xf32> to vector<16x16xf32>
    %189 = vector.broadcast %186 : f32 to vector<16x16xf32>
    %190 = arith.mulf %189, %188 : vector<16x16xf32>
    %191 = arith.addf %185, %190 : vector<16x16xf32>
    %c16_134 = arith.constant 16 : index
    %192 = memref.load %arg6[%c16_134] : memref<21xf32, #tpu.memory_space<smem>>
    %c0_135 = arith.constant 0 : index
    %c7_136 = arith.constant 7 : index
    %c0_137 = arith.constant 0 : index
    %193 = vector.load %arg11[%c0_135, %c7_136, %c0_137] : memref<16x8x16xf32, #tpu.memory_space<vmem>>, vector<16x1x16xf32>
    %194 = vector.shape_cast %193 : vector<16x1x16xf32> to vector<16x16xf32>
    %195 = vector.broadcast %192 : f32 to vector<16x16xf32>
    %196 = arith.mulf %195, %194 : vector<16x16xf32>
    %197 = arith.addf %191, %196 : vector<16x16xf32>
    %c17 = arith.constant 17 : index
    %198 = memref.load %arg6[%c17] : memref<21xf32, #tpu.memory_space<smem>>
    %199 = vector.broadcast %198 : f32 to vector<16x16xf32>
    %200 = arith.addf %197, %199 : vector<16x16xf32>
    %c18_138 = arith.constant 18 : index
    %201 = memref.load %arg6[%c18_138] : memref<21xf32, #tpu.memory_space<smem>>
    %202 = vector.broadcast %201 : f32 to vector<16x16xf32>
    %203 = arith.mulf %202, %107 : vector<16x16xf32>
    %c19 = arith.constant 19 : index
    %204 = memref.load %arg6[%c19] : memref<21xf32, #tpu.memory_space<smem>>
    %205 = vector.broadcast %204 : f32 to vector<16x16xf32>
    %206 = arith.mulf %205, %200 : vector<16x16xf32>
    %207 = arith.addf %203, %206 : vector<16x16xf32>
    %c20 = arith.constant 20 : index
    %208 = memref.load %arg6[%c20] : memref<21xf32, #tpu.memory_space<smem>>
    %209 = vector.broadcast %208 : f32 to vector<16x16xf32>
    %210 = arith.addf %207, %209 : vector<16x16xf32>
    %cst_139 = arith.constant 5.000000e-01 : f32
    %211 = vector.broadcast %cst_139 : f32 to vector<16x16xf32>
    %212 = arith.mulf %211, %107 : vector<16x16xf32>
    %213 = math.tanh %212 : vector<16x16xf32>
    %cst_140 = arith.constant 5.000000e-01 : f32
    %214 = vector.broadcast %cst_140 : f32 to vector<16x16xf32>
    %215 = arith.mulf %214, %213 : vector<16x16xf32>
    %cst_141 = arith.constant 5.000000e-01 : f32
    %216 = vector.broadcast %cst_141 : f32 to vector<16x16xf32>
    %217 = arith.addf %215, %216 : vector<16x16xf32>
    %c0_142 = arith.constant 0 : index
    %c0_143 = arith.constant 0 : index
    %c0_144 = arith.constant 0 : index
    %c0_145 = arith.constant 0 : index
    %218 = vector.load %arg7[%c0_142, %c0_143, %c0_144, %c0_145] : memref<1x3x16x16xf32, #tpu.memory_space<vmem>>, vector<1x1x16x16xf32>
    %219 = vector.shape_cast %218 : vector<1x1x16x16xf32> to vector<16x16xf32>
    %220 = vector.shape_cast %217 : vector<16x16xf32> to vector<1x1x16x16xf32>
    tpu.vector_store %arg7[%c0_142, %c0_143, %c0_144, %c0_145], %220 {strides = array<i32>} : memref<1x3x16x16xf32, #tpu.memory_space<vmem>>, vector<1x1x16x16xf32>,
    %cst_146 = arith.constant 5.000000e-01 : f32
    %221 = vector.broadcast %cst_146 : f32 to vector<16x16xf32>
    %222 = arith.mulf %221, %200 : vector<16x16xf32>
    %223 = math.tanh %222 : vector<16x16xf32>
    %cst_147 = arith.constant 5.000000e-01 : f32
    %224 = vector.broadcast %cst_147 : f32 to vector<16x16xf32>
    %225 = arith.mulf %224, %223 : vector<16x16xf32>
    %cst_148 = arith.constant 5.000000e-01 : f32
    %226 = vector.broadcast %cst_148 : f32 to vector<16x16xf32>
    %227 = arith.addf %225, %226 : vector<16x16xf32>
    %c0_149 = arith.constant 0 : index
    %c1_150 = arith.constant 1 : index
    %c0_151 = arith.constant 0 : index
    %c0_152 = arith.constant 0 : index
    %228 = vector.load %arg7[%c0_149, %c1_150, %c0_151, %c0_152] : memref<1x3x16x16xf32, #tpu.memory_space<vmem>>, vector<1x1x16x16xf32>
    %229 = vector.shape_cast %228 : vector<1x1x16x16xf32> to vector<16x16xf32>
    %230 = vector.shape_cast %227 : vector<16x16xf32> to vector<1x1x16x16xf32>
    tpu.vector_store %arg7[%c0_149, %c1_150, %c0_151, %c0_152], %230 {strides = array<i32>} : memref<1x3x16x16xf32, #tpu.memory_space<vmem>>, vector<1x1x16x16xf32>,
    %cst_153 = arith.constant 5.000000e-01 : f32
    %231 = vector.broadcast %cst_153 : f32 to vector<16x16xf32>
    %232 = arith.mulf %231, %210 : vector<16x16xf32>
    %233 = math.tanh %232 : vector<16x16xf32>
    %cst_154 = arith.constant 5.000000e-01 : f32
    %234 = vector.broadcast %cst_154 : f32 to vector<16x16xf32>
    %235 = arith.mulf %234, %233 : vector<16x16xf32>
    %cst_155 = arith.constant 5.000000e-01 : f32
    %236 = vector.broadcast %cst_155 : f32 to vector<16x16xf32>
    %237 = arith.addf %235, %236 : vector<16x16xf32>
    %c0_156 = arith.constant 0 : index
    %c2_157 = arith.constant 2 : index
    %c0_158 = arith.constant 0 : index
    %c0_159 = arith.constant 0 : index
    %238 = vector.load %arg7[%c0_156, %c2_157, %c0_158, %c0_159] : memref<1x3x16x16xf32, #tpu.memory_space<vmem>>, vector<1x1x16x16xf32>
    %239 = vector.shape_cast %238 : vector<1x1x16x16xf32> to vector<16x16xf32>
    %240 = vector.shape_cast %237 : vector<16x16xf32> to vector<1x1x16x16xf32>
    tpu.vector_store %arg7[%c0_156, %c2_157, %c0_158, %c0_159], %240 {strides = array<i32>} : memref<1x3x16x16xf32, #tpu.memory_space<vmem>>, vector<1x1x16x16xf32>,
    return
  }
  func.func @transform_0(%arg0: i32, %arg1: i32) -> (i32, i32, i32, i32) {
    %c0_i32 = arith.constant 0 : i32
    %c0_i32_0 = arith.constant 0 : i32
    %c0_i32_1 = arith.constant 0 : i32
    %c0_i32_2 = arith.constant 0 : i32
    return %arg0, %c0_i32, %c0_i32_0, %c0_i32_1 : i32, i32, i32, i32
  }
  func.func @transform_1(%arg0: i32, %arg1: i32) -> (i32, i32) {
    %c0_i32 = arith.constant 0 : i32
    %c0_i32_0 = arith.constant 0 : i32
    %c0_i32_1 = arith.constant 0 : i32
    return %c0_i32, %c0_i32_0 : i32, i32
  }
  func.func @transform_2(%arg0: i32, %arg1: i32) -> (i32, i32) {
    %c0_i32 = arith.constant 0 : i32
    %c0_i32_0 = arith.constant 0 : i32
    %c0_i32_1 = arith.constant 0 : i32
    return %c0_i32, %c0_i32_0 : i32, i32
  }
  func.func @transform_3(%arg0: i32, %arg1: i32) -> (i32, i32, i32) {
    %c0_i32 = arith.constant 0 : i32
    %c0_i32_0 = arith.constant 0 : i32
    %c0_i32_1 = arith.constant 0 : i32
    %c0_i32_2 = arith.constant 0 : i32
    return %c0_i32, %c0_i32_0, %c0_i32_1 : i32, i32, i32
  }
  func.func @transform_4(%arg0: i32, %arg1: i32) -> i32 {
    %c0_i32 = arith.constant 0 : i32
    %c0_i32_0 = arith.constant 0 : i32
    return %c0_i32 : i32
  }
  func.func @transform_5(%arg0: i32, %arg1: i32) -> (i32, i32, i32, i32) {
    %c0_i32 = arith.constant 0 : i32
    %c0_i32_0 = arith.constant 0 : i32
    %c0_i32_1 = arith.constant 0 : i32
    return %arg0, %c0_i32, %arg1, %c0_i32_0 : i32, i32, i32, i32
  }
}

</mosaic_0001>

<llo_original>
// kernel: tpu_custom_call.1
$region0: #{tpu_custom_call.1}
  #allocation0 [shape = 'u32[]', space=smem, size = 0x4, offset = 0x4, fixed_abs, tag = 'smem constant byte address 0x4 - core index']
  #allocation1 [shape = 'u32[144,128]{1,0:T(1,128)}', space=vmem, size = 0x12000, scoped, tag = 'internal scratch']
  #allocation2 [shape = 'f32[18,27,16]{2,1,0:T(8,128)}', space=vmem, size = 0x48000, scoped, tag = 'scratch operand']
  #allocation3 [shape = 'f32[16,72,16]{2,1,0:T(8,128)}', space=vmem, size = 0x90000, scoped, tag = 'scratch operand']
  #allocation4 [shape = 'f32[18,8,16]{2,1,0:T(8,128)}', space=vmem, size = 0x12000, scoped, tag = 'scratch operand']
  #allocation5 [shape = 'f32[16,8,16]{2,1,0:T(8,128)}', space=vmem, size = 0x10000, scoped, tag = 'scratch operand']
  %s0 = inlined_call_operand.hbm [shape: f32[2,20,3,16], index: 0, kind: input, shape index: {}]
  %s1 = inlined_call_operand.hbm [shape: bf16[8,27], index: 1, kind: input, shape index: {}]
  %s2 = inlined_call_operand.hbm [shape: bf16[8,72], index: 2, kind: input, shape index: {}]
  %s3 = inlined_call_operand.hbm [shape: f32[2,8,1], index: 3, kind: input, shape index: {}]
  %s4 = inlined_call_operand.hbm [shape: f32[21], index: 4, kind: input, shape index: {}]
  %s5 = inlined_call_operand.hbm [shape: f32[2,3,16,16], index: 5, kind: output, shape index: {}]
  %s6 = sld [smem:[#allocation0]]
  $region73: #{tpu_custom_call.1} parent=0
    _
  %s8 = ssub.s32 1, %s6
  %s9 = scalar_select 0, %s8, %s6
  $region1: #{tpu_custom_call.1} parent=0
    #allocation6 [shape = 'u8[81920]{0}', space=vmem, size = 0x14000, scoped, tag = 'input window, operand 0']
    #allocation7 [shape = 's32[2]{0}', space=sflag, size = 0x8, scoped, tag = 'scoped memory for tpu_custom_call.1']
    #allocation8 [shape = 's32[2]{0}', space=sflag, size = 0x8, scoped, tag = 'scoped memory for tpu_custom_call.1']
    #allocation9 [shape = 's32[2]{0}', space=sflag, size = 0x8, scoped, tag = 'scoped memory for tpu_custom_call.1']
    #allocation10 [shape = 'u8[2048]{0}', space=vmem, size = 0x800, scoped, tag = 'input window, operand 1, single buffered']
    #allocation11 [shape = 's32[1]{0}', space=sflag, size = 0x4, scoped, tag = 'scoped memory for tpu_custom_call.1']
    #allocation12 [shape = 'u8[2048]{0}', space=vmem, size = 0x800, scoped, tag = 'input window, operand 2, single buffered']
    #allocation13 [shape = 'u8[8192]{0}', space=vmem, size = 0x2000, scoped, tag = 'input window, operand 3, single buffered']
    #allocation14 [shape = 's32[1]{0}', space=sflag, size = 0x4, scoped, tag = 'scoped memory for tpu_custom_call.1']
    #allocation15 [shape = 'u8[512]{0}', space=smem, size = 0x200, scoped, tag = 'input window, operand 4, single buffered']
    #allocation16 [shape = 'u8[49152]{0}', space=vmem, size = 0xc000, scoped, tag = 'output window, operand 0']
    %10 = vsyncpa [#allocation7], 0
    %s11 = scalar_lea.sflag [#allocation7], 1
    %12 = vsyncpa %s11, 0
    %13 = vsyncpa [#allocation11], 0
    %14 = vsyncpa [#allocation14], 0
    %15 = vsyncpa [#allocation9], 0
    %16 = vsyncpa [#allocation8], 0
    %s17 = scalar_lea.sflag [#allocation8], 1
    %18 = vsyncpa %s17, 0
    loop: start=0, step=1, limit=4
    $region2: #{tpu_custom_call.1} parent=1 // loop_pre_header
      _
    $region3: #{tpu_custom_call.1} parent=1 // loop_header
      %s20 = sphi 0, %s24
      %p21 = scmp.ge.s32.totalorder %s20, 4
      %s27 = sphi 0, %s39
      %s28 = sphi 0, %s35
      %s29 = sphi 0, %s27
      %s30 = sphi 0, %s28
      %s31 = sphi 0, %s29
      %s32 = sphi 0, %s30
      %s42 = sphi 0, %s44
      %s45 = sphi 0, %s42
      %s46 = sphi 0, %s45
      %s62 = sphi 0, %s46
      %s66 = sphi 0, %s66
      %s68 = sphi 0, %s66
      %s69 = sphi 0, %s68
      %s83 = sphi 0, %s69
      %s87 = sphi 0, %s87
      %s89 = sphi 0, %s87
      %s90 = sphi 0, %s89
      %s104 = sphi 0, %s90
      %s108 = sphi 0, %s108
      %s110 = sphi 0, %s108
      %s111 = sphi 0, %s110
      %s125 = sphi 0, %s111
      %s129 = sphi 0, %s129
      %s131 = sphi 0, %s129
      %s132 = sphi 0, %s131
      %s146 = sphi 0, %s132
      %s154 = sphi 0, %s156
      %s157 = sphi 0, %s154
      %s158 = sphi 0, %s157
      %s174 = sphi 0, %s158
    $region4: #{tpu_custom_call.1} parent=1 // loop_header_branch
      %23 = sbr.rel (%p21) target = $region8
    $region5: #{tpu_custom_call.1} parent=1 // loop_body
      %s25 = ssub.s32 %s20, 1
      %s26 = ssub.s32 %s20, 2
      %s33 = sadd.s32 1, %s28
      %p34 = scmp.ge.s32.totalorder %s33, 1
      %s35 = scalar_select %p34, 0, %s33
      %s36 = sadd.s32 1, %s27
      %s37 = scalar_select %p34, %s36, %s27
      %p38 = scmp.ge.s32.totalorder %s37, 2
      %s39 = scalar_select %p38, 0, %s37
      %s40 = ssub.s32 %s27, %s39
      %p41 = scmp.eq.s32.totalorder %s40, 0
      %s43 = sadd.s32 %s42, 1
      %s44 = scalar_select %p41, %s42, %s43
      %p47 = pneg %p41
      %p48 = scmp.eq.s32.totalorder %s20, 1
      %p49 = por %p47, %p48
      %p50 = scmp.ne.s32.totalorder %s42, %s45
      %p51 = scmp.eq.s32.totalorder %s20, 0
      %p52 = por %p50, %p51
      %p53 = scmp.ne.s32.totalorder %s42, %s45
      %p54 = scmp.eq.s32.totalorder %s25, 1
      %p55 = por %p53, %p54
      %p56 = scmp.ne.s32.totalorder %s45, %s46
      %p57 = scmp.eq.s32.totalorder %s25, 0
      %p58 = por %p56, %p57
      %p59 = scmp.ne.s32.totalorder %s45, %s46
      %p60 = scmp.eq.s32.totalorder %s26, 1
      %p61 = por %p59, %p60
      %p63 = scmp.ne.s32.totalorder %s46, %s62
      %p64 = scmp.eq.s32.totalorder %s26, 0
      %p65 = por %p63, %p64
      %s67 = sadd.s32 %s66, 1
      %p70 = scmp.eq.s32.totalorder %s20, 1
      %p71 = scmp.ne.s32.totalorder %s66, %s68
      %p72 = scmp.eq.s32.totalorder %s20, 0
      %p73 = por %p71, %p72
      %p74 = scmp.ne.s32.totalorder %s66, %s68
      %p75 = scmp.eq.s32.totalorder %s25, 1
      %p76 = por %p74, %p75
      %p77 = scmp.ne.s32.totalorder %s68, %s69
      %p78 = scmp.eq.s32.totalorder %s25, 0
      %p79 = por %p77, %p78
      %p80 = scmp.ne.s32.totalorder %s68, %s69
      %p81 = scmp.eq.s32.totalorder %s26, 1
      %p82 = por %p80, %p81
      %p84 = scmp.ne.s32.totalorder %s69, %s83
      %p85 = scmp.eq.s32.totalorder %s26, 0
      %p86 = por %p84, %p85
      %s88 = sadd.s32 %s87, 1
      %p91 = scmp.eq.s32.totalorder %s20, 1
      %p92 = scmp.ne.s32.totalorder %s87, %s89
      %p93 = scmp.eq.s32.totalorder %s20, 0
      %p94 = por %p92, %p93
      %p95 = scmp.ne.s32.totalorder %s87, %s89
      %p96 = scmp.eq.s32.totalorder %s25, 1
      %p97 = por %p95, %p96
      %p98 = scmp.ne.s32.totalorder %s89, %s90
      %p99 = scmp.eq.s32.totalorder %s25, 0
      %p100 = por %p98, %p99
      %p101 = scmp.ne.s32.totalorder %s89, %s90
      %p102 = scmp.eq.s32.totalorder %s26, 1
      %p103 = por %p101, %p102
      %p105 = scmp.ne.s32.totalorder %s90, %s104
      %p106 = scmp.eq.s32.totalorder %s26, 0
      %p107 = por %p105, %p106
      %s109 = sadd.s32 %s108, 1
      %p112 = scmp.eq.s32.totalorder %s20, 1
      %p113 = scmp.ne.s32.totalorder %s108, %s110
      %p114 = scmp.eq.s32.totalorder %s20, 0
      %p115 = por %p113, %p114
      %p116 = scmp.ne.s32.totalorder %s108, %s110
      %p117 = scmp.eq.s32.totalorder %s25, 1
      %p118 = por %p116, %p117
      %p119 = scmp.ne.s32.totalorder %s110, %s111
      %p120 = scmp.eq.s32.totalorder %s25, 0
      %p121 = por %p119, %p120
      %p122 = scmp.ne.s32.totalorder %s110, %s111
      %p123 = scmp.eq.s32.totalorder %s26, 1
      %p124 = por %p122, %p123
      %p126 = scmp.ne.s32.totalorder %s111, %s125
      %p127 = scmp.eq.s32.totalorder %s26, 0
      %p128 = por %p126, %p127
      %s130 = sadd.s32 %s129, 1
      %p133 = scmp.eq.s32.totalorder %s20, 1
      %p134 = scmp.ne.s32.totalorder %s129, %s131
      %p135 = scmp.eq.s32.totalorder %s20, 0
      %p136 = por %p134, %p135
      %p137 = scmp.ne.s32.totalorder %s129, %s131
      %p138 = scmp.eq.s32.totalorder %s25, 1
      %p139 = por %p137, %p138
      %p140 = scmp.ne.s32.totalorder %s131, %s132
      %p141 = scmp.eq.s32.totalorder %s25, 0
      %p142 = por %p140, %p141
      %p143 = scmp.ne.s32.totalorder %s131, %s132
      %p144 = scmp.eq.s32.totalorder %s26, 1
      %p145 = por %p143, %p144
      %p147 = scmp.ne.s32.totalorder %s132, %s146
      %p148 = scmp.eq.s32.totalorder %s26, 0
      %p149 = por %p147, %p148
      %s150 = ssub.s32 %s27, %s39
      %s151 = ssub.s32 %s28, %s35
      %s152 = sor.u32 %s150, %s151
      %p153 = scmp.eq.s32.totalorder %s152, 0
      %s155 = sadd.s32 %s154, 1
      %s156 = scalar_select %p153, %s154, %s155
      %p159 = pneg %p153
      %p160 = scmp.eq.s32.totalorder %s20, 1
      %p161 = por %p159, %p160
      %p162 = scmp.ne.s32.totalorder %s154, %s157
      %p163 = scmp.eq.s32.totalorder %s20, 0
      %p164 = por %p162, %p163
      %p165 = scmp.ne.s32.totalorder %s154, %s157
      %p166 = scmp.eq.s32.totalorder %s25, 1
      %p167 = por %p165, %p166
      %p168 = scmp.ne.s32.totalorder %s157, %s158
      %p169 = scmp.eq.s32.totalorder %s25, 0
      %p170 = por %p168, %p169
      %p171 = scmp.ne.s32.totalorder %s157, %s158
      %p172 = scmp.eq.s32.totalorder %s26, 1
      %p173 = por %p171, %p172
      %p175 = scmp.ne.s32.totalorder %s158, %s174
      %p176 = scmp.eq.s32.totalorder %s26, 0
      %p177 = por %p175, %p176
      %p178 = scmp.le.s32.totalorder 1, %s20
      %p179 = scmp.lt.s32.totalorder %s20, 3
      %p180 = pnand %p178, %p179
      %p181 = pneg %p180
      // Predicated region
      $region9: #{tpu_custom_call.1} parent=5 // pred_check
        _
      $region10: #{tpu_custom_call.1} parent=5 // pred_check_branch
        %183 = sbr.rel (%p180) target = $region12
      $region11: #{tpu_custom_call.1} parent=5 // pred_region
        %s184 = ssub.s32 %s20, 1
        // Predicated region
        $region13: #{tpu_custom_call.1} parent=11 // pred_check
          %p185 = pneg %p79
        $region14: #{tpu_custom_call.1} parent=11 // pred_check_branch
          %187 = sbr.rel (%p185) target = $region16
        $region15: #{tpu_custom_call.1} parent=11 // pred_region
          %s189 = ssub.s32 64, 64
          %190 = vsyncadd [#allocation11], %s189
          %s192 = sshll.u32 [#allocation10], 4
          %s193 = int_to_ptr.vmem [resolvable:$true] %s192
          %195 = dma.hbm_to_vmem [thread:$0]  %s1, 64, %s193, [#allocation11]
        $region16: #{tpu_custom_call.1} parent=11 // pred_fallthru
          _
        // Predicated region
        $region17: #{tpu_custom_call.1} parent=11 // pred_check
          %p196 = pneg %p100
        $region18: #{tpu_custom_call.1} parent=11 // pred_check_branch
          %198 = sbr.rel (%p196) target = $region20
        $region19: #{tpu_custom_call.1} parent=11 // pred_region
          %s200 = ssub.s32 64, 64
          %201 = vsyncadd [#allocation11], %s200
          %s203 = sshll.u32 [#allocation12], 4
          %s204 = int_to_ptr.vmem [resolvable:$true] %s203
          %206 = dma.hbm_to_vmem [thread:$0]  %s2, 64, %s204, [#allocation11]
        $region20: #{tpu_custom_call.1} parent=11 // pred_fallthru
          _
        // Predicated region
        $region21: #{tpu_custom_call.1} parent=11 // pred_check
          %p207 = pneg %p121
        $region22: #{tpu_custom_call.1} parent=11 // pred_check_branch
          %209 = sbr.rel (%p207) target = $region24
        $region23: #{tpu_custom_call.1} parent=11 // pred_region
          %s211 = ssub.s32 256, 256
          %212 = vsyncadd [#allocation14], %s211
          %s213 = sshll.u32 [#allocation13], 4
          %s214 = int_to_ptr.vmem [resolvable:$true] %s213
          %219 = dma.hbm_to_vmem [thread:$0]  %s3, 256, %s214, [#allocation14], 128, 128, 8
        $region24: #{tpu_custom_call.1} parent=11 // pred_fallthru
          _
        // Predicated region
        $region25: #{tpu_custom_call.1} parent=11 // pred_check
          %p220 = pneg %p142
        $region26: #{tpu_custom_call.1} parent=11 // pred_check_branch
          %222 = sbr.rel (%p220) target = $region28
        $region27: #{tpu_custom_call.1} parent=11 // pred_region
          %s224 = ssub.s32 16, 16
          %225 = vsyncadd [#allocation9], %s224
          %228 = dma.hbm_to_smem %s4, 16, [#allocation15], [#allocation9]
        $region28: #{tpu_custom_call.1} parent=11 // pred_fallthru
          _
      $region12: #{tpu_custom_call.1} parent=5 // pred_fallthru
        _
      %p229 = scmp.lt.s32.totalorder %s20, 2
      // Predicated region
      $region29: #{tpu_custom_call.1} parent=5 // pred_check
        %p230 = pneg %p229
      $region30: #{tpu_custom_call.1} parent=5 // pred_check_branch
        %232 = sbr.rel (%p230) target = $region32
      $region31: #{tpu_custom_call.1} parent=5 // pred_region
        // Predicated region
        $region33: #{tpu_custom_call.1} parent=31 // pred_check
          %p233 = pneg %p52
        $region34: #{tpu_custom_call.1} parent=31 // pred_check_branch
          %235 = sbr.rel (%p233) target = $region36
        $region35: #{tpu_custom_call.1} parent=31 // pred_region
          %s236 = sand.u32 %s42, 1
          %s237 = scalar_lea.sflag [#allocation7], %s236
          %s238 = sand.u32 %s42, 1
          %s239 = smul.addr %s238, 80
          %s240 = scalar_lea.vmem [#allocation6], %s239
          %s242 = ssub.s32 1280, 1280
          %243 = vsyncadd %s237, %s242
          %s244 = smul.addr %s27, 20
          %s245 = smul.addr %s244, 64
          %s246 = scalar_lea.hbm %s0, %s245
          %s247 = sshll.u32 %s240, 4
          %s248 = int_to_ptr.vmem [resolvable:$true] %s247
          %253 = dma.hbm_to_vmem [thread:$0]  %s246, 1280, %s248, %s237, 64, 64, 4
        $region36: #{tpu_custom_call.1} parent=31 // pred_fallthru
          _
      $region32: #{tpu_custom_call.1} parent=5 // pred_fallthru
        _
      %p254 = scmp.le.s32.totalorder 1, %s20
      %p255 = scmp.lt.s32.totalorder %s20, 3
      %p256 = pnand %p254, %p255
      %p257 = pneg %p256
      // Predicated region
      $region37: #{tpu_custom_call.1} parent=5 // pred_check
        _
      $region38: #{tpu_custom_call.1} parent=5 // pred_check_branch
        %259 = sbr.rel (%p256) target = $region40
      $region39: #{tpu_custom_call.1} parent=5 // pred_region
        %s260 = ssub.s32 %s20, 1
        %s261 = sand.u32 %s45, 1
        %s262 = scalar_lea.sflag [#allocation7], %s261
        %s263 = sand.u32 %s45, 1
        %s264 = smul.addr %s263, 80
        %s265 = scalar_lea.vmem [#allocation6], %s264
        // Predicated region
        $region41: #{tpu_custom_call.1} parent=39 // pred_check
          %p266 = pneg %p58
        $region42: #{tpu_custom_call.1} parent=39 // pred_check_branch
          %268 = sbr.rel (%p266) target = $region44
        $region43: #{tpu_custom_call.1} parent=39 // pred_region
          %269 = dma.done %s262, 1280
        $region44: #{tpu_custom_call.1} parent=39 // pred_fallthru
          _
        // Predicated region
        $region45: #{tpu_custom_call.1} parent=39 // pred_check
          %p270 = pneg %p79
        $region46: #{tpu_custom_call.1} parent=39 // pred_check_branch
          %272 = sbr.rel (%p270) target = $region48
        $region47: #{tpu_custom_call.1} parent=39 // pred_region
          %273 = dma.done [#allocation11], 64
        $region48: #{tpu_custom_call.1} parent=39 // pred_fallthru
          _
        // Predicated region
        $region49: #{tpu_custom_call.1} parent=39 // pred_check
          %p274 = pneg %p100
        $region50: #{tpu_custom_call.1} parent=39 // pred_check_branch
          %276 = sbr.rel (%p274) target = $region52
        $region51: #{tpu_custom_call.1} parent=39 // pred_region
          %277 = dma.done [#allocation11], 64
        $region52: #{tpu_custom_call.1} parent=39 // pred_fallthru
          _
        // Predicated region
        $region53: #{tpu_custom_call.1} parent=39 // pred_check
          %p278 = pneg %p121
        $region54: #{tpu_custom_call.1} parent=39 // pred_check_branch
          %280 = sbr.rel (%p278) target = $region56
        $region55: #{tpu_custom_call.1} parent=39 // pred_region
          %281 = dma.done [#allocation14], 256
        $region56: #{tpu_custom_call.1} parent=39 // pred_fallthru
          _
        // Predicated region
        $region57: #{tpu_custom_call.1} parent=39 // pred_check
          %p282 = pneg %p142
        $region58: #{tpu_custom_call.1} parent=39 // pred_check_branch
          %284 = sbr.rel (%p282) target = $region60
        $region59: #{tpu_custom_call.1} parent=39 // pred_region
          %285 = dma.done [#allocation9], 16
        $region60: #{tpu_custom_call.1} parent=39 // pred_fallthru
          _
        %286 = sfence
        %s287 = sand.u32 %s45, 1
        %s288 = scalar_lea.sflag [#allocation7], %s287
        %s289 = sand.u32 %s45, 1
        %s290 = smul.addr %s289, 80
        %s291 = scalar_lea.vmem [#allocation6], %s290
        %p292 = pneg %p58
        %p293 = pneg %p55
        %p294 = pneg %p79
        %p295 = pneg %p76
        %p296 = pneg %p100
        %p297 = pneg %p97
        %p298 = pneg %p121
        %p299 = pneg %p118
        %p300 = pneg %p142
        %p301 = pneg %p139
        %p302 = pneg %p170
        %p303 = pneg %p167
        %s304 = sand.u32 %s157, 1
        %s305 = scalar_lea.sflag [#allocation8], %s304
        %s306 = sand.u32 %s157, 1
        %s307 = smul.addr %s306, 48
        %s308 = scalar_lea.vmem [#allocation16], %s307
        %s309 = smul.u32 2, %s30
        %s311 = smul.u32 %s30, 16
        %s312 = smul.u32 %s311, 4
        %s313 = scalar_lea.vmem %s265, %s312 [#allocation6]
        %v314 = vld [vmem:[%s313] sm:$0x7]
        %v315 = vld [vmem:[%s313 + $0x4] sm:$0x7]
        %v316 = vld [vmem:[%s313 + $0x8] sm:$0x7]
        %v317 = vld [vmem:[%s313 + $0xc] sm:$0x7]
        %v318 = vld [vmem:[%s313 + $0x10] sm:$0x7]
        %v319 = vld [vmem:[%s313 + $0x14] sm:$0x7]
        %v320 = vld [vmem:[%s313 + $0x18] sm:$0x7]
        %v321 = vld [vmem:[%s313 + $0x1c] sm:$0x7]
        %v322 = vld [vmem:[%s313 + $0x20] sm:$0x7]
        %v323 = vld [vmem:[%s313 + $0x24] sm:$0x7]
        %v324 = vld [vmem:[%s313 + $0x28] sm:$0x7]
        %v325 = vld [vmem:[%s313 + $0x2c] sm:$0x7]
        %v326 = vld [vmem:[%s313 + $0x30] sm:$0x7]
        %v327 = vld [vmem:[%s313 + $0x34] sm:$0x7]
        %v328 = vld [vmem:[%s313 + $0x38] sm:$0x7]
        %v329 = vld [vmem:[%s313 + $0x3c] sm:$0x7]
        %v330 = vld [vmem:[%s313 + $0x40] sm:$0x7]
        %v331 = vld [vmem:[%s313 + $0x44] sm:$0x7]
        %v332 = vld [vmem:[%s313 + $0x48] sm:$0x7]
        %v333 = vld [vmem:[%s313 + $0x4c] sm:$0x7]
        %vm334 = vcmask 1047680
        %335 = vrot.lane.b32.xlu0 %v314, 16
        %v336 = vpop.permute.xlu0 %335
        %v337 = vsel %vm334, %v336, %v314
        %338 = vrot.lane.b32.xlu0 %v315, 16
        %v339 = vpop.permute.xlu0 %338
        %v340 = vsel %vm334, %v339, %v315
        %341 = vrot.lane.b32.xlu0 %v316, 16
        %v342 = vpop.permute.xlu0 %341
        %v343 = vsel %vm334, %v342, %v316
        %344 = vrot.lane.b32.xlu0 %v317, 16
        %v345 = vpop.permute.xlu0 %344
        %v346 = vsel %vm334, %v345, %v317
        %347 = vrot.lane.b32.xlu0 %v318, 16
        %v348 = vpop.permute.xlu0 %347
        %v349 = vsel %vm334, %v348, %v318
        %350 = vrot.lane.b32.xlu0 %v319, 16
        %v351 = vpop.permute.xlu0 %350
        %v352 = vsel %vm334, %v351, %v319
        %353 = vrot.lane.b32.xlu0 %v320, 16
        %v354 = vpop.permute.xlu0 %353
        %v355 = vsel %vm334, %v354, %v320
        %356 = vrot.lane.b32.xlu0 %v321, 16
        %v357 = vpop.permute.xlu0 %356
        %v358 = vsel %vm334, %v357, %v321
        %359 = vrot.lane.b32.xlu0 %v322, 16
        %v360 = vpop.permute.xlu0 %359
        %v361 = vsel %vm334, %v360, %v322
        %362 = vrot.lane.b32.xlu0 %v323, 16
        %v363 = vpop.permute.xlu0 %362
        %v364 = vsel %vm334, %v363, %v323
        %365 = vrot.lane.b32.xlu0 %v324, 16
        %v366 = vpop.permute.xlu0 %365
        %v367 = vsel %vm334, %v366, %v324
        %368 = vrot.lane.b32.xlu0 %v325, 16
        %v369 = vpop.permute.xlu0 %368
        %v370 = vsel %vm334, %v369, %v325
        %371 = vrot.lane.b32.xlu0 %v326, 16
        %v372 = vpop.permute.xlu0 %371
        %v373 = vsel %vm334, %v372, %v326
        %374 = vrot.lane.b32.xlu0 %v327, 16
        %v375 = vpop.permute.xlu0 %374
        %v376 = vsel %vm334, %v375, %v327
        %377 = vrot.lane.b32.xlu0 %v328, 16
        %v378 = vpop.permute.xlu0 %377
        %v379 = vsel %vm334, %v378, %v328
        %380 = vrot.lane.b32.xlu0 %v329, 16
        %v381 = vpop.permute.xlu0 %380
        %v382 = vsel %vm334, %v381, %v329
        %383 = vrot.lane.b32.xlu0 %v330, 16
        %v384 = vpop.permute.xlu0 %383
        %v385 = vsel %vm334, %v384, %v330
        %386 = vrot.lane.b32.xlu0 %v331, 16
        %v387 = vpop.permute.xlu0 %386
        %v388 = vsel %vm334, %v387, %v331
        %389 = vrot.lane.b32.xlu0 %v332, 16
        %v390 = vpop.permute.xlu0 %389
        %v391 = vsel %vm334, %v390, %v332
        %392 = vrot.lane.b32.xlu0 %v333, 16
        %v393 = vpop.permute.xlu0 %392
        %v394 = vsel %vm334, %v393, %v333
        %395 = vrot.lane.b32.xlu0 %v337, 16
        %v396 = vpop.permute.xlu0 %395
        %397 = vrot.lane.b32.xlu0 %v340, 16
        %v398 = vpop.permute.xlu0 %397
        %399 = vrot.lane.b32.xlu0 %v343, 16
        %v400 = vpop.permute.xlu0 %399
        %401 = vrot.lane.b32.xlu0 %v346, 16
        %v402 = vpop.permute.xlu0 %401
        %403 = vrot.lane.b32.xlu0 %v349, 16
        %v404 = vpop.permute.xlu0 %403
        %405 = vrot.lane.b32.xlu0 %v352, 16
        %v406 = vpop.permute.xlu0 %405
        %407 = vrot.lane.b32.xlu0 %v355, 16
        %v408 = vpop.permute.xlu0 %407
        %409 = vrot.lane.b32.xlu0 %v358, 16
        %v410 = vpop.permute.xlu0 %409
        %411 = vrot.lane.b32.xlu0 %v361, 16
        %v412 = vpop.permute.xlu0 %411
        %413 = vrot.lane.b32.xlu0 %v364, 16
        %v414 = vpop.permute.xlu0 %413
        %415 = vrot.lane.b32.xlu0 %v367, 16
        %v416 = vpop.permute.xlu0 %415
        %417 = vrot.lane.b32.xlu0 %v370, 16
        %v418 = vpop.permute.xlu0 %417
        %419 = vrot.lane.b32.xlu0 %v373, 16
        %v420 = vpop.permute.xlu0 %419
        %421 = vrot.lane.b32.xlu0 %v376, 16
        %v422 = vpop.permute.xlu0 %421
        %423 = vrot.lane.b32.xlu0 %v379, 16
        %v424 = vpop.permute.xlu0 %423
        %425 = vrot.lane.b32.xlu0 %v382, 16
        %v426 = vpop.permute.xlu0 %425
        %427 = vrot.lane.b32.xlu0 %v385, 16
        %v428 = vpop.permute.xlu0 %427
        %429 = vrot.lane.b32.xlu0 %v388, 16
        %v430 = vpop.permute.xlu0 %429
        %431 = vrot.lane.b32.xlu0 %v391, 16
        %v432 = vpop.permute.xlu0 %431
        %433 = vrot.lane.b32.xlu0 %v394, 16
        %v434 = vpop.permute.xlu0 %433
        %v435 = vsel %vm334, %v396, %v314
        %v436 = vsel %vm334, %v398, %v315
        %v437 = vsel %vm334, %v400, %v316
        %v438 = vsel %vm334, %v402, %v317
        %v439 = vsel %vm334, %v404, %v318
        %v440 = vsel %vm334, %v406, %v319
        %v441 = vsel %vm334, %v408, %v320
        %v442 = vsel %vm334, %v410, %v321
        %v443 = vsel %vm334, %v412, %v322
        %v444 = vsel %vm334, %v414, %v323
        %v445 = vsel %vm334, %v416, %v324
        %v446 = vsel %vm334, %v418, %v325
        %v447 = vsel %vm334, %v420, %v326
        %v448 = vsel %vm334, %v422, %v327
        %v449 = vsel %vm334, %v424, %v328
        %v450 = vsel %vm334, %v426, %v329
        %v451 = vsel %vm334, %v428, %v330
        %v452 = vsel %vm334, %v430, %v331
        %v453 = vsel %vm334, %v432, %v332
        %v454 = vsel %vm334, %v434, %v333
        %v455 = vlaneseq
        %v456 = vand.u32 %v455, 127
        %vm457 = vcmp.eq.s32.totalorder %v456, 0
        %478 = vrot.lane.b32.xlu0 %v435, 113
        %v479 = vpop.permute.xlu0 %478
        %480 = vrot.lane.b32.xlu0 %v436, 113
        %v481 = vpop.permute.xlu0 %480
        %482 = vrot.lane.b32.xlu0 %v437, 113
        %v483 = vpop.permute.xlu0 %482
        %484 = vrot.lane.b32.xlu0 %v438, 113
        %v485 = vpop.permute.xlu0 %484
        %486 = vrot.lane.b32.xlu0 %v439, 113
        %v487 = vpop.permute.xlu0 %486
        %488 = vrot.lane.b32.xlu0 %v440, 113
        %v489 = vpop.permute.xlu0 %488
        %490 = vrot.lane.b32.xlu0 %v441, 113
        %v491 = vpop.permute.xlu0 %490
        %492 = vrot.lane.b32.xlu0 %v442, 113
        %v493 = vpop.permute.xlu0 %492
        %494 = vrot.lane.b32.xlu0 %v443, 113
        %v495 = vpop.permute.xlu0 %494
        %496 = vrot.lane.b32.xlu0 %v444, 113
        %v497 = vpop.permute.xlu0 %496
        %498 = vrot.lane.b32.xlu0 %v445, 113
        %v499 = vpop.permute.xlu0 %498
        %500 = vrot.lane.b32.xlu0 %v446, 113
        %v501 = vpop.permute.xlu0 %500
        %502 = vrot.lane.b32.xlu0 %v447, 113
        %v503 = vpop.permute.xlu0 %502
        %504 = vrot.lane.b32.xlu0 %v448, 113
        %v505 = vpop.permute.xlu0 %504
        %506 = vrot.lane.b32.xlu0 %v449, 113
        %v507 = vpop.permute.xlu0 %506
        %508 = vrot.lane.b32.xlu0 %v450, 113
        %v509 = vpop.permute.xlu0 %508
        %510 = vrot.lane.b32.xlu0 %v451, 113
        %v511 = vpop.permute.xlu0 %510
        %512 = vrot.lane.b32.xlu0 %v452, 113
        %v513 = vpop.permute.xlu0 %512
        %514 = vrot.lane.b32.xlu0 %v453, 113
        %v515 = vpop.permute.xlu0 %514
        %516 = vrot.lane.b32.xlu0 %v454, 113
        %v517 = vpop.permute.xlu0 %516
        %v538 = vsel %vm457, 0.0, %v479
        %v539 = vsel %vm457, 0.0, %v481
        %v540 = vsel %vm457, 0.0, %v483
        %v541 = vsel %vm457, 0.0, %v485
        %v542 = vsel %vm457, 0.0, %v487
        %v543 = vsel %vm457, 0.0, %v489
        %v544 = vsel %vm457, 0.0, %v491
        %v545 = vsel %vm457, 0.0, %v493
        %v546 = vsel %vm457, 0.0, %v495
        %v547 = vsel %vm457, 0.0, %v497
        %v548 = vsel %vm457, 0.0, %v499
        %v549 = vsel %vm457, 0.0, %v501
        %v550 = vsel %vm457, 0.0, %v503
        %v551 = vsel %vm457, 0.0, %v505
        %v552 = vsel %vm457, 0.0, %v507
        %v553 = vsel %vm457, 0.0, %v509
        %v554 = vsel %vm457, 0.0, %v511
        %v555 = vsel %vm457, 0.0, %v513
        %v556 = vsel %vm457, 0.0, %v515
        %v557 = vsel %vm457, 0.0, %v517
        %vm558 = vcmask 124928
        %559 = vst.msk [vmem:[#allocation2] sm:$0x7] %vm558, %v538
        %560 = vst.msk [vmem:[#allocation2 + $0x20] sm:$0x7] %vm558, %v539
        %561 = vst.msk [vmem:[#allocation2 + $0x40] sm:$0x7] %vm558, %v540
        %562 = vst.msk [vmem:[#allocation2 + $0x60] sm:$0x7] %vm558, %v541
        %563 = vst.msk [vmem:[#allocation2 + $0x80] sm:$0x7] %vm558, %v542
        %564 = vst.msk [vmem:[#allocation2 + $0xa0] sm:$0x7] %vm558, %v543
        %565 = vst.msk [vmem:[#allocation2 + $0xc0] sm:$0x7] %vm558, %v544
        %566 = vst.msk [vmem:[#allocation2 + $0xe0] sm:$0x7] %vm558, %v545
        %567 = vst.msk [vmem:[#allocation2 + $0x100] sm:$0x7] %vm558, %v546
        %568 = vst.msk [vmem:[#allocation2 + $0x120] sm:$0x7] %vm558, %v547
        %569 = vst.msk [vmem:[#allocation2 + $0x140] sm:$0x7] %vm558, %v548
        %570 = vst.msk [vmem:[#allocation2 + $0x160] sm:$0x7] %vm558, %v549
        %571 = vst.msk [vmem:[#allocation2 + $0x180] sm:$0x7] %vm558, %v550
        %572 = vst.msk [vmem:[#allocation2 + $0x1a0] sm:$0x7] %vm558, %v551
        %573 = vst.msk [vmem:[#allocation2 + $0x1c0] sm:$0x7] %vm558, %v552
        %574 = vst.msk [vmem:[#allocation2 + $0x1e0] sm:$0x7] %vm558, %v553
        %575 = vst.msk [vmem:[#allocation2 + $0x200] sm:$0x7] %vm558, %v554
        %576 = vst.msk [vmem:[#allocation2 + $0x220] sm:$0x7] %vm558, %v555
        %577 = vst.msk [vmem:[#allocation2 + $0x9] sm:$0x7] %vm558, %v539
        %578 = vst.msk [vmem:[#allocation2 + $0x29] sm:$0x7] %vm558, %v540
        %579 = vst.msk [vmem:[#allocation2 + $0x49] sm:$0x7] %vm558, %v541
        %580 = vst.msk [vmem:[#allocation2 + $0x69] sm:$0x7] %vm558, %v542
        %581 = vst.msk [vmem:[#allocation2 + $0x89] sm:$0x7] %vm558, %v543
        %582 = vst.msk [vmem:[#allocation2 + $0xa9] sm:$0x7] %vm558, %v544
        %583 = vst.msk [vmem:[#allocation2 + $0xc9] sm:$0x7] %vm558, %v545
        %584 = vst.msk [vmem:[#allocation2 + $0xe9] sm:$0x7] %vm558, %v546
        %585 = vst.msk [vmem:[#allocation2 + $0x109] sm:$0x7] %vm558, %v547
        %586 = vst.msk [vmem:[#allocation2 + $0x129] sm:$0x7] %vm558, %v548
        %587 = vst.msk [vmem:[#allocation2 + $0x149] sm:$0x7] %vm558, %v549
        %588 = vst.msk [vmem:[#allocation2 + $0x169] sm:$0x7] %vm558, %v550
        %589 = vst.msk [vmem:[#allocation2 + $0x189] sm:$0x7] %vm558, %v551
        %590 = vst.msk [vmem:[#allocation2 + $0x1a9] sm:$0x7] %vm558, %v552
        %591 = vst.msk [vmem:[#allocation2 + $0x1c9] sm:$0x7] %vm558, %v553
        %592 = vst.msk [vmem:[#allocation2 + $0x1e9] sm:$0x7] %vm558, %v554
        %593 = vst.msk [vmem:[#allocation2 + $0x209] sm:$0x7] %vm558, %v555
        %594 = vst.msk [vmem:[#allocation2 + $0x229] sm:$0x7] %vm558, %v556
        %595 = vst.msk [vmem:[#allocation2 + $0x12] sm:$0x7] %vm558, %v540
        %596 = vst.msk [vmem:[#allocation2 + $0x32] sm:$0x7] %vm558, %v541
        %597 = vst.msk [vmem:[#allocation2 + $0x52] sm:$0x7] %vm558, %v542
        %598 = vst.msk [vmem:[#allocation2 + $0x72] sm:$0x7] %vm558, %v543
        %599 = vst.msk [vmem:[#allocation2 + $0x92] sm:$0x7] %vm558, %v544
        %600 = vst.msk [vmem:[#allocation2 + $0xb2] sm:$0x7] %vm558, %v545
        %601 = vst.msk [vmem:[#allocation2 + $0xd2] sm:$0x7] %vm558, %v546
        %602 = vst.msk [vmem:[#allocation2 + $0xf2] sm:$0x7] %vm558, %v547
        %603 = vst.msk [vmem:[#allocation2 + $0x112] sm:$0x7] %vm558, %v548
        %604 = vst.msk [vmem:[#allocation2 + $0x132] sm:$0x7] %vm558, %v549
        %605 = vst.msk [vmem:[#allocation2 + $0x152] sm:$0x7] %vm558, %v550
        %606 = vst.msk [vmem:[#allocation2 + $0x172] sm:$0x7] %vm558, %v551
        %607 = vst.msk [vmem:[#allocation2 + $0x192] sm:$0x7] %vm558, %v552
        %608 = vst.msk [vmem:[#allocation2 + $0x1b2] sm:$0x7] %vm558, %v553
        %609 = vst.msk [vmem:[#allocation2 + $0x1d2] sm:$0x7] %vm558, %v554
        %610 = vst.msk [vmem:[#allocation2 + $0x1f2] sm:$0x7] %vm558, %v555
        %611 = vst.msk [vmem:[#allocation2 + $0x212] sm:$0x7] %vm558, %v556
        %612 = vst.msk [vmem:[#allocation2 + $0x232] sm:$0x7] %vm558, %v557
        %613 = vst.msk [vmem:[#allocation2 + $0x3] sm:$0x7] %vm558, %v314
        %614 = vst.msk [vmem:[#allocation2 + $0x23] sm:$0x7] %vm558, %v315
        %615 = vst.msk [vmem:[#allocation2 + $0x43] sm:$0x7] %vm558, %v316
        %616 = vst.msk [vmem:[#allocation2 + $0x63] sm:$0x7] %vm558, %v317
        %617 = vst.msk [vmem:[#allocation2 + $0x83] sm:$0x7] %vm558, %v318
        %618 = vst.msk [vmem:[#allocation2 + $0xa3] sm:$0x7] %vm558, %v319
        %619 = vst.msk [vmem:[#allocation2 + $0xc3] sm:$0x7] %vm558, %v320
        %620 = vst.msk [vmem:[#allocation2 + $0xe3] sm:$0x7] %vm558, %v321
        %621 = vst.msk [vmem:[#allocation2 + $0x103] sm:$0x7] %vm558, %v322
        %622 = vst.msk [vmem:[#allocation2 + $0x123] sm:$0x7] %vm558, %v323
        %623 = vst.msk [vmem:[#allocation2 + $0x143] sm:$0x7] %vm558, %v324
        %624 = vst.msk [vmem:[#allocation2 + $0x163] sm:$0x7] %vm558, %v325
        %625 = vst.msk [vmem:[#allocation2 + $0x183] sm:$0x7] %vm558, %v326
        %626 = vst.msk [vmem:[#allocation2 + $0x1a3] sm:$0x7] %vm558, %v327
        %627 = vst.msk [vmem:[#allocation2 + $0x1c3] sm:$0x7] %vm558, %v328
        %628 = vst.msk [vmem:[#allocation2 + $0x1e3] sm:$0x7] %vm558, %v329
        %629 = vst.msk [vmem:[#allocation2 + $0x203] sm:$0x7] %vm558, %v330
        %630 = vst.msk [vmem:[#allocation2 + $0x223] sm:$0x7] %vm558, %v331
        %631 = vst.msk [vmem:[#allocation2 + $0xc] sm:$0x7] %vm558, %v315
        %632 = vst.msk [vmem:[#allocation2 + $0x2c] sm:$0x7] %vm558, %v316
        %633 = vst.msk [vmem:[#allocation2 + $0x4c] sm:$0x7] %vm558, %v317
        %634 = vst.msk [vmem:[#allocation2 + $0x6c] sm:$0x7] %vm558, %v318
        %635 = vst.msk [vmem:[#allocation2 + $0x8c] sm:$0x7] %vm558, %v319
        %636 = vst.msk [vmem:[#allocation2 + $0xac] sm:$0x7] %vm558, %v320
        %637 = vst.msk [vmem:[#allocation2 + $0xcc] sm:$0x7] %vm558, %v321
        %638 = vst.msk [vmem:[#allocation2 + $0xec] sm:$0x7] %vm558, %v322
        %639 = vst.msk [vmem:[#allocation2 + $0x10c] sm:$0x7] %vm558, %v323
        %640 = vst.msk [vmem:[#allocation2 + $0x12c] sm:$0x7] %vm558, %v324
        %641 = vst.msk [vmem:[#allocation2 + $0x14c] sm:$0x7] %vm558, %v325
        %642 = vst.msk [vmem:[#allocation2 + $0x16c] sm:$0x7] %vm558, %v326
        %643 = vst.msk [vmem:[#allocation2 + $0x18c] sm:$0x7] %vm558, %v327
        %644 = vst.msk [vmem:[#allocation2 + $0x1ac] sm:$0x7] %vm558, %v328
        %645 = vst.msk [vmem:[#allocation2 + $0x1cc] sm:$0x7] %vm558, %v329
        %646 = vst.msk [vmem:[#allocation2 + $0x1ec] sm:$0x7] %vm558, %v330
        %647 = vst.msk [vmem:[#allocation2 + $0x20c] sm:$0x7] %vm558, %v331
        %648 = vst.msk [vmem:[#allocation2 + $0x22c] sm:$0x7] %vm558, %v332
        %649 = vst.msk [vmem:[#allocation2 + $0x15] sm:$0x7] %vm558, %v316
        %650 = vst.msk [vmem:[#allocation2 + $0x35] sm:$0x7] %vm558, %v317
        %651 = vst.msk [vmem:[#allocation2 + $0x55] sm:$0x7] %vm558, %v318
        %652 = vst.msk [vmem:[#allocation2 + $0x75] sm:$0x7] %vm558, %v319
        %653 = vst.msk [vmem:[#allocation2 + $0x95] sm:$0x7] %vm558, %v320
        %654 = vst.msk [vmem:[#allocation2 + $0xb5] sm:$0x7] %vm558, %v321
        %655 = vst.msk [vmem:[#allocation2 + $0xd5] sm:$0x7] %vm558, %v322
        %656 = vst.msk [vmem:[#allocation2 + $0xf5] sm:$0x7] %vm558, %v323
        %657 = vst.msk [vmem:[#allocation2 + $0x115] sm:$0x7] %vm558, %v324
        %658 = vst.msk [vmem:[#allocation2 + $0x135] sm:$0x7] %vm558, %v325
        %659 = vst.msk [vmem:[#allocation2 + $0x155] sm:$0x7] %vm558, %v326
        %660 = vst.msk [vmem:[#allocation2 + $0x175] sm:$0x7] %vm558, %v327
        %661 = vst.msk [vmem:[#allocation2 + $0x195] sm:$0x7] %vm558, %v328
        %662 = vst.msk [vmem:[#allocation2 + $0x1b5] sm:$0x7] %vm558, %v329
        %663 = vst.msk [vmem:[#allocation2 + $0x1d5] sm:$0x7] %vm558, %v330
        %664 = vst.msk [vmem:[#allocation2 + $0x1f5] sm:$0x7] %vm558, %v331
        %665 = vst.msk [vmem:[#allocation2 + $0x215] sm:$0x7] %vm558, %v332
        %666 = vst.msk [vmem:[#allocation2 + $0x235] sm:$0x7] %vm558, %v333
        %vm667 = vcmp.eq.s32.totalorder %v456, 15
        %668 = vrot.lane.b32.xlu0 %v435, 127
        %v669 = vpop.permute.xlu0 %668
        %670 = vrot.lane.b32.xlu0 %v436, 127
        %v671 = vpop.permute.xlu0 %670
        %672 = vrot.lane.b32.xlu0 %v437, 127
        %v673 = vpop.permute.xlu0 %672
        %674 = vrot.lane.b32.xlu0 %v438, 127
        %v675 = vpop.permute.xlu0 %674
        %676 = vrot.lane.b32.xlu0 %v439, 127
        %v677 = vpop.permute.xlu0 %676
        %678 = vrot.lane.b32.xlu0 %v440, 127
        %v679 = vpop.permute.xlu0 %678
        %680 = vrot.lane.b32.xlu0 %v441, 127
        %v681 = vpop.permute.xlu0 %680
        %682 = vrot.lane.b32.xlu0 %v442, 127
        %v683 = vpop.permute.xlu0 %682
        %684 = vrot.lane.b32.xlu0 %v443, 127
        %v685 = vpop.permute.xlu0 %684
        %686 = vrot.lane.b32.xlu0 %v444, 127
        %v687 = vpop.permute.xlu0 %686
        %688 = vrot.lane.b32.xlu0 %v445, 127
        %v689 = vpop.permute.xlu0 %688
        %690 = vrot.lane.b32.xlu0 %v446, 127
        %v691 = vpop.permute.xlu0 %690
        %692 = vrot.lane.b32.xlu0 %v447, 127
        %v693 = vpop.permute.xlu0 %692
        %694 = vrot.lane.b32.xlu0 %v448, 127
        %v695 = vpop.permute.xlu0 %694
        %696 = vrot.lane.b32.xlu0 %v449, 127
        %v697 = vpop.permute.xlu0 %696
        %698 = vrot.lane.b32.xlu0 %v450, 127
        %v699 = vpop.permute.xlu0 %698
        %700 = vrot.lane.b32.xlu0 %v451, 127
        %v701 = vpop.permute.xlu0 %700
        %702 = vrot.lane.b32.xlu0 %v452, 127
        %v703 = vpop.permute.xlu0 %702
        %704 = vrot.lane.b32.xlu0 %v453, 127
        %v705 = vpop.permute.xlu0 %704
        %706 = vrot.lane.b32.xlu0 %v454, 127
        %v707 = vpop.permute.xlu0 %706
        %v728 = vsel %vm667, 0.0, %v669
        %v729 = vsel %vm667, 0.0, %v671
        %v730 = vsel %vm667, 0.0, %v673
        %v731 = vsel %vm667, 0.0, %v675
        %v732 = vsel %vm667, 0.0, %v677
        %v733 = vsel %vm667, 0.0, %v679
        %v734 = vsel %vm667, 0.0, %v681
        %v735 = vsel %vm667, 0.0, %v683
        %v736 = vsel %vm667, 0.0, %v685
        %v737 = vsel %vm667, 0.0, %v687
        %v738 = vsel %vm667, 0.0, %v689
        %v739 = vsel %vm667, 0.0, %v691
        %v740 = vsel %vm667, 0.0, %v693
        %v741 = vsel %vm667, 0.0, %v695
        %v742 = vsel %vm667, 0.0, %v697
        %v743 = vsel %vm667, 0.0, %v699
        %v744 = vsel %vm667, 0.0, %v701
        %v745 = vsel %vm667, 0.0, %v703
        %v746 = vsel %vm667, 0.0, %v705
        %v747 = vsel %vm667, 0.0, %v707
        %748 = vst.msk [vmem:[#allocation2 + $0x6] sm:$0x7] %vm558, %v728
        %749 = vst.msk [vmem:[#allocation2 + $0x26] sm:$0x7] %vm558, %v729
        %750 = vst.msk [vmem:[#allocation2 + $0x46] sm:$0x7] %vm558, %v730
        %751 = vst.msk [vmem:[#allocation2 + $0x66] sm:$0x7] %vm558, %v731
        %752 = vst.msk [vmem:[#allocation2 + $0x86] sm:$0x7] %vm558, %v732
        %753 = vst.msk [vmem:[#allocation2 + $0xa6] sm:$0x7] %vm558, %v733
        %754 = vst.msk [vmem:[#allocation2 + $0xc6] sm:$0x7] %vm558, %v734
        %755 = vst.msk [vmem:[#allocation2 + $0xe6] sm:$0x7] %vm558, %v735
        %756 = vst.msk [vmem:[#allocation2 + $0x106] sm:$0x7] %vm558, %v736
        %757 = vst.msk [vmem:[#allocation2 + $0x126] sm:$0x7] %vm558, %v737
        %758 = vst.msk [vmem:[#allocation2 + $0x146] sm:$0x7] %vm558, %v738
        %759 = vst.msk [vmem:[#allocation2 + $0x166] sm:$0x7] %vm558, %v739
        %760 = vst.msk [vmem:[#allocation2 + $0x186] sm:$0x7] %vm558, %v740
        %761 = vst.msk [vmem:[#allocation2 + $0x1a6] sm:$0x7] %vm558, %v741
        %762 = vst.msk [vmem:[#allocation2 + $0x1c6] sm:$0x7] %vm558, %v742
        %763 = vst.msk [vmem:[#allocation2 + $0x1e6] sm:$0x7] %vm558, %v743
        %764 = vst.msk [vmem:[#allocation2 + $0x206] sm:$0x7] %vm558, %v744
        %765 = vst.msk [vmem:[#allocation2 + $0x226] sm:$0x7] %vm558, %v745
        %766 = vst.msk [vmem:[#allocation2 + $0xf] sm:$0x7] %vm558, %v729
        %767 = vst.msk [vmem:[#allocation2 + $0x2f] sm:$0x7] %vm558, %v730
        %768 = vst.msk [vmem:[#allocation2 + $0x4f] sm:$0x7] %vm558, %v731
        %769 = vst.msk [vmem:[#allocation2 + $0x6f] sm:$0x7] %vm558, %v732
        %770 = vst.msk [vmem:[#allocation2 + $0x8f] sm:$0x7] %vm558, %v733
        %771 = vst.msk [vmem:[#allocation2 + $0xaf] sm:$0x7] %vm558, %v734
        %772 = vst.msk [vmem:[#allocation2 + $0xcf] sm:$0x7] %vm558, %v735
        %773 = vst.msk [vmem:[#allocation2 + $0xef] sm:$0x7] %vm558, %v736
        %774 = vst.msk [vmem:[#allocation2 + $0x10f] sm:$0x7] %vm558, %v737
        %775 = vst.msk [vmem:[#allocation2 + $0x12f] sm:$0x7] %vm558, %v738
        %776 = vst.msk [vmem:[#allocation2 + $0x14f] sm:$0x7] %vm558, %v739
        %777 = vst.msk [vmem:[#allocation2 + $0x16f] sm:$0x7] %vm558, %v740
        %778 = vst.msk [vmem:[#allocation2 + $0x18f] sm:$0x7] %vm558, %v741
        %779 = vst.msk [vmem:[#allocation2 + $0x1af] sm:$0x7] %vm558, %v742
        %780 = vst.msk [vmem:[#allocation2 + $0x1cf] sm:$0x7] %vm558, %v743
        %781 = vst.msk [vmem:[#allocation2 + $0x1ef] sm:$0x7] %vm558, %v744
        %782 = vst.msk [vmem:[#allocation2 + $0x20f] sm:$0x7] %vm558, %v745
        %783 = vst.msk [vmem:[#allocation2 + $0x22f] sm:$0x7] %vm558, %v746
        %784 = vst.msk [vmem:[#allocation2 + $0x18] sm:$0x7] %vm558, %v730
        %785 = vst.msk [vmem:[#allocation2 + $0x38] sm:$0x7] %vm558, %v731
        %786 = vst.msk [vmem:[#allocation2 + $0x58] sm:$0x7] %vm558, %v732
        %787 = vst.msk [vmem:[#allocation2 + $0x78] sm:$0x7] %vm558, %v733
        %788 = vst.msk [vmem:[#allocation2 + $0x98] sm:$0x7] %vm558, %v734
        %789 = vst.msk [vmem:[#allocation2 + $0xb8] sm:$0x7] %vm558, %v735
        %790 = vst.msk [vmem:[#allocation2 + $0xd8] sm:$0x7] %vm558, %v736
        %791 = vst.msk [vmem:[#allocation2 + $0xf8] sm:$0x7] %vm558, %v737
        %792 = vst.msk [vmem:[#allocation2 + $0x118] sm:$0x7] %vm558, %v738
        %793 = vst.msk [vmem:[#allocation2 + $0x138] sm:$0x7] %vm558, %v739
        %794 = vst.msk [vmem:[#allocation2 + $0x158] sm:$0x7] %vm558, %v740
        %795 = vst.msk [vmem:[#allocation2 + $0x178] sm:$0x7] %vm558, %v741
        %796 = vst.msk [vmem:[#allocation2 + $0x198] sm:$0x7] %vm558, %v742
        %797 = vst.msk [vmem:[#allocation2 + $0x1b8] sm:$0x7] %vm558, %v743
        %798 = vst.msk [vmem:[#allocation2 + $0x1d8] sm:$0x7] %vm558, %v744
        %799 = vst.msk [vmem:[#allocation2 + $0x1f8] sm:$0x7] %vm558, %v745
        %800 = vst.msk [vmem:[#allocation2 + $0x218] sm:$0x7] %vm558, %v746
        %801 = vst.msk [vmem:[#allocation2 + $0x238] sm:$0x7] %vm558, %v747
        %v802 = vld [vmem:[#allocation2] sm:$0xff]
        %v803 = vld [vmem:[#allocation2 + $0x8] sm:$0xff]
        %v804 = vld [vmem:[#allocation2 + $0x10] sm:$0xff]
        %v805 = vld [vmem:[#allocation2 + $0x18] sm:$0x7]
        %v806 = vld [vmem:[#allocation2 + $0x20] sm:$0xff]
        %v807 = vld [vmem:[#allocation2 + $0x28] sm:$0xff]
        %v808 = vld [vmem:[#allocation2 + $0x30] sm:$0xff]
        %v809 = vld [vmem:[#allocation2 + $0x38] sm:$0x7]
        %v810 = vld [vmem:[#allocation2 + $0x40] sm:$0xff]
        %v811 = vld [vmem:[#allocation2 + $0x48] sm:$0xff]
        %v812 = vld [vmem:[#allocation2 + $0x50] sm:$0xff]
        %v813 = vld [vmem:[#allocation2 + $0x58] sm:$0x7]
        %v814 = vld [vmem:[#allocation2 + $0x60] sm:$0xff]
        %v815 = vld [vmem:[#allocation2 + $0x68] sm:$0xff]
        %v816 = vld [vmem:[#allocation2 + $0x70] sm:$0xff]
        %v817 = vld [vmem:[#allocation2 + $0x78] sm:$0x7]
        %v818 = vld [vmem:[#allocation2 + $0x80] sm:$0xff]
        %v819 = vld [vmem:[#allocation2 + $0x88] sm:$0xff]
        %v820 = vld [vmem:[#allocation2 + $0x90] sm:$0xff]
        %v821 = vld [vmem:[#allocation2 + $0x98] sm:$0x7]
        %v822 = vld [vmem:[#allocation2 + $0xa0] sm:$0xff]
        %v823 = vld [vmem:[#allocation2 + $0xa8] sm:$0xff]
        %v824 = vld [vmem:[#allocation2 + $0xb0] sm:$0xff]
        %v825 = vld [vmem:[#allocation2 + $0xb8] sm:$0x7]
        %v826 = vld [vmem:[#allocation2 + $0xc0] sm:$0xff]
        %v827 = vld [vmem:[#allocation2 + $0xc8] sm:$0xff]
        %v828 = vld [vmem:[#allocation2 + $0xd0] sm:$0xff]
        %v829 = vld [vmem:[#allocation2 + $0xd8] sm:$0x7]
        %v830 = vld [vmem:[#allocation2 + $0xe0] sm:$0xff]
        %v831 = vld [vmem:[#allocation2 + $0xe8] sm:$0xff]
        %v832 = vld [vmem:[#allocation2 + $0xf0] sm:$0xff]
        %v833 = vld [vmem:[#allocation2 + $0xf8] sm:$0x7]
        %v834 = vld [vmem:[#allocation2 + $0x100] sm:$0xff]
        %v835 = vld [vmem:[#allocation2 + $0x108] sm:$0xff]
        %v836 = vld [vmem:[#allocation2 + $0x110] sm:$0xff]
        %v837 = vld [vmem:[#allocation2 + $0x118] sm:$0x7]
        %v838 = vld [vmem:[#allocation2 + $0x120] sm:$0xff]
        %v839 = vld [vmem:[#allocation2 + $0x128] sm:$0xff]
        %v840 = vld [vmem:[#allocation2 + $0x130] sm:$0xff]
        %v841 = vld [vmem:[#allocation2 + $0x138] sm:$0x7]
        %v842 = vld [vmem:[#allocation2 + $0x140] sm:$0xff]
        %v843 = vld [vmem:[#allocation2 + $0x148] sm:$0xff]
        %v844 = vld [vmem:[#allocation2 + $0x150] sm:$0xff]
        %v845 = vld [vmem:[#allocation2 + $0x158] sm:$0x7]
        %v846 = vld [vmem:[#allocation2 + $0x160] sm:$0xff]
        %v847 = vld [vmem:[#allocation2 + $0x168] sm:$0xff]
        %v848 = vld [vmem:[#allocation2 + $0x170] sm:$0xff]
        %v849 = vld [vmem:[#allocation2 + $0x178] sm:$0x7]
        %v850 = vld [vmem:[#allocation2 + $0x180] sm:$0xff]
        %v851 = vld [vmem:[#allocation2 + $0x188] sm:$0xff]
        %v852 = vld [vmem:[#allocation2 + $0x190] sm:$0xff]
        %v853 = vld [vmem:[#allocation2 + $0x198] sm:$0x7]
        %v854 = vld [vmem:[#allocation2 + $0x1a0] sm:$0xff]
        %v855 = vld [vmem:[#allocation2 + $0x1a8] sm:$0xff]
        %v856 = vld [vmem:[#allocation2 + $0x1b0] sm:$0xff]
        %v857 = vld [vmem:[#allocation2 + $0x1b8] sm:$0x7]
        %v858 = vld [vmem:[#allocation2 + $0x1c0] sm:$0xff]
        %v859 = vld [vmem:[#allocation2 + $0x1c8] sm:$0xff]
        %v860 = vld [vmem:[#allocation2 + $0x1d0] sm:$0xff]
        %v861 = vld [vmem:[#allocation2 + $0x1d8] sm:$0x7]
        %v862 = vld [vmem:[#allocation2 + $0x1e0] sm:$0xff]
        %v863 = vld [vmem:[#allocation2 + $0x1e8] sm:$0xff]
        %v864 = vld [vmem:[#allocation2 + $0x1f0] sm:$0xff]
        %v865 = vld [vmem:[#allocation2 + $0x1f8] sm:$0x7]
        %v866 = vld [vmem:[#allocation2 + $0x200] sm:$0xff]
        %v867 = vld [vmem:[#allocation2 + $0x208] sm:$0xff]
        %v868 = vld [vmem:[#allocation2 + $0x210] sm:$0xff]
        %v869 = vld [vmem:[#allocation2 + $0x218] sm:$0x7]
        %v870 = vld [vmem:[#allocation2 + $0x220] sm:$0xff]
        %v871 = vld [vmem:[#allocation2 + $0x228] sm:$0xff]
        %v872 = vld [vmem:[#allocation2 + $0x230] sm:$0xff]
        %v873 = vld [vmem:[#allocation2 + $0x238] sm:$0x7]
        %v874 = vpack.c.bf16 %v803, %v802
        %v875 = vpack.c.bf16 %v805, %v804
        %v876 = vpack.c.bf16 %v807, %v806
        %v877 = vpack.c.bf16 %v809, %v808
        %v878 = vpack.c.bf16 %v811, %v810
        %v879 = vpack.c.bf16 %v813, %v812
        %v880 = vpack.c.bf16 %v815, %v814
        %v881 = vpack.c.bf16 %v817, %v816
        %v882 = vpack.c.bf16 %v819, %v818
        %v883 = vpack.c.bf16 %v821, %v820
        %v884 = vpack.c.bf16 %v823, %v822
        %v885 = vpack.c.bf16 %v825, %v824
        %v886 = vpack.c.bf16 %v827, %v826
        %v887 = vpack.c.bf16 %v829, %v828
        %v888 = vpack.c.bf16 %v831, %v830
        %v889 = vpack.c.bf16 %v833, %v832
        %v890 = vpack.c.bf16 %v835, %v834
        %v891 = vpack.c.bf16 %v837, %v836
        %v892 = vpack.c.bf16 %v839, %v838
        %v893 = vpack.c.bf16 %v841, %v840
        %v894 = vpack.c.bf16 %v843, %v842
        %v895 = vpack.c.bf16 %v845, %v844
        %v896 = vpack.c.bf16 %v847, %v846
        %v897 = vpack.c.bf16 %v849, %v848
        %v898 = vpack.c.bf16 %v851, %v850
        %v899 = vpack.c.bf16 %v853, %v852
        %v900 = vpack.c.bf16 %v855, %v854
        %v901 = vpack.c.bf16 %v857, %v856
        %v902 = vpack.c.bf16 %v859, %v858
        %v903 = vpack.c.bf16 %v861, %v860
        %v904 = vpack.c.bf16 %v863, %v862
        %v905 = vpack.c.bf16 %v865, %v864
        %v906 = vpack.c.bf16 %v867, %v866
        %v907 = vpack.c.bf16 %v869, %v868
        %v908 = vpack.c.bf16 %v871, %v870
        %v909 = vpack.c.bf16 %v873, %v872
        %v910 = vld [vmem:[#allocation10] sm:$0xf]
        %v911 = vld [vmem:[#allocation13] sm:$0xff]
        %913 = vset.pattern.permute.xlu0 0
        %914 = vperm.xlu0 %913, %v911
        %v915 = vpop.permute.xlu0 %914
        %vm917 = vcmask 220160
        %v919 = vsel %vm917, %v910, 0
        %vm921 = vcmask 1044480
        %vm922 = vcmask 1045504
        %v923 = vsel %vm921, 4294967295, 65535
        %v924 = vsel %vm922, %v923, 0
        %v926 = vand.u32 %v875, %v924
        %928 = vmatprep.subr.bf16.mxu0 0
        %929 = vmatpush1.bf16.msra.mxu0 %v874
        %930 = vmatprep.subr.bf16.mxu0 0
        %931 = vmatpush1.bf16.msra.mxu0 %v926
        %932 = vmatprep.subr.bf16.mxu0 0
        %933 = vmatpush1.bf16.msra.mxu0 0
        %934 = vmatprep.subr.bf16.mxu0 0
        %935 = vmatpush1.bf16.msra.mxu0 0
        %936 = vmatprep.subr.bf16.mxu0 0
        %937 = vmatpush1.bf16.msra.mxu0 0
        %938 = vmatprep.subr.bf16.mxu0 0
        %939 = vmatpush1.bf16.msra.mxu0 0
        %940 = vmatprep.subr.bf16.mxu0 0
        %941 = vmatpush1.bf16.msra.mxu0 0
        %942 = vmatprep.subr.bf16.mxu0 0
        %943 = vmatpush1.bf16.msra.mxu0 0
        %944 = vmatprep.subr.bf16.mxu0 0
        %945 = vmatpush1.bf16.msra.mxu0 0
        %946 = vmatprep.subr.bf16.mxu0 0
        %947 = vmatpush1.bf16.msra.mxu0 0
        %948 = vmatprep.subr.bf16.mxu0 0
        %949 = vmatpush1.bf16.msra.mxu0 0
        %950 = vmatprep.subr.bf16.mxu0 0
        %951 = vmatpush1.bf16.msra.mxu0 0
        %952 = vmatprep.subr.bf16.mxu0 0
        %953 = vmatpush1.bf16.msra.mxu0 0
        %954 = vmatprep.subr.bf16.mxu0 0
        %955 = vmatpush1.bf16.msra.mxu0 0
        %956 = vmatprep.subr.bf16.mxu0 0
        %957 = vmatpush1.bf16.msra.mxu0 0
        %958 = vmatprep.subr.bf16.mxu0 0
        %959 = vmatpush1.bf16.msra.mxu0 0
        %960 = vmatprep.mubr.bf16.mxu0 0
        %961 = vmatmul.mubr.bf16.gmra.mrb[0].mxu0 %v919
        %v962 = vpop.f32.mrb[0].mxu0
        %v963 = vadd.f32 %v915, %v962
        %v964 = vpop.f32.mrb[0].mxu0
        %v965 = vpop.f32.mrb[0].mxu0
        %v966 = vpop.f32.mrb[0].mxu0
        %967 = vdwg.mxu0
        %v969 = vand.u32 %v877, %v924
        %971 = vmatprep.subr.bf16.mxu0 0
        %972 = vmatpush1.bf16.msra.mxu0 %v876
        %973 = vmatprep.subr.bf16.mxu0 0
        %974 = vmatpush1.bf16.msra.mxu0 %v969
        %975 = vmatprep.subr.bf16.mxu0 0
        %976 = vmatpush1.bf16.msra.mxu0 0
        %977 = vmatprep.subr.bf16.mxu0 0
        %978 = vmatpush1.bf16.msra.mxu0 0
        %979 = vmatprep.subr.bf16.mxu0 0
        %980 = vmatpush1.bf16.msra.mxu0 0
        %981 = vmatprep.subr.bf16.mxu0 0
        %982 = vmatpush1.bf16.msra.mxu0 0
        %983 = vmatprep.subr.bf16.mxu0 0
        %984 = vmatpush1.bf16.msra.mxu0 0
        %985 = vmatprep.subr.bf16.mxu0 0
        %986 = vmatpush1.bf16.msra.mxu0 0
        %987 = vmatprep.subr.bf16.mxu0 0
        %988 = vmatpush1.bf16.msra.mxu0 0
        %989 = vmatprep.subr.bf16.mxu0 0
        %990 = vmatpush1.bf16.msra.mxu0 0
        %991 = vmatprep.subr.bf16.mxu0 0
        %992 = vmatpush1.bf16.msra.mxu0 0
        %993 = vmatprep.subr.bf16.mxu0 0
        %994 = vmatpush1.bf16.msra.mxu0 0
        %995 = vmatprep.subr.bf16.mxu0 0
        %996 = vmatpush1.bf16.msra.mxu0 0
        %997 = vmatprep.subr.bf16.mxu0 0
        %998 = vmatpush1.bf16.msra.mxu0 0
        %999 = vmatprep.subr.bf16.mxu0 0
        %1000 = vmatpush1.bf16.msra.mxu0 0
        %1001 = vmatprep.subr.bf16.mxu0 0
        %1002 = vmatpush1.bf16.msra.mxu0 0
        %1003 = vmatprep.mubr.bf16.mxu0 0
        %1004 = vmatmul.mubr.bf16.gmra.mrb[0].mxu0 %v919
        %v1005 = vpop.f32.mrb[0].mxu0
        %v1006 = vadd.f32 %v915, %v1005
        %v1007 = vpop.f32.mrb[0].mxu0
        %v1008 = vpop.f32.mrb[0].mxu0
        %v1009 = vpop.f32.mrb[0].mxu0
        %1010 = vdwg.mxu0
        %v1012 = vand.u32 %v879, %v924
        %1014 = vmatprep.subr.bf16.mxu0 0
        %1015 = vmatpush1.bf16.msra.mxu0 %v878
        %1016 = vmatprep.subr.bf16.mxu0 0
        %1017 = vmatpush1.bf16.msra.mxu0 %v1012
        %1018 = vmatprep.subr.bf16.mxu0 0
        %1019 = vmatpush1.bf16.msra.mxu0 0
        %1020 = vmatprep.subr.bf16.mxu0 0
        %1021 = vmatpush1.bf16.msra.mxu0 0
        %1022 = vmatprep.subr.bf16.mxu0 0
        %1023 = vmatpush1.bf16.msra.mxu0 0
        %1024 = vmatprep.subr.bf16.mxu0 0
        %1025 = vmatpush1.bf16.msra.mxu0 0
        %1026 = vmatprep.subr.bf16.mxu0 0
        %1027 = vmatpush1.bf16.msra.mxu0 0
        %1028 = vmatprep.subr.bf16.mxu0 0
        %1029 = vmatpush1.bf16.msra.mxu0 0
        %1030 = vmatprep.subr.bf16.mxu0 0
        %1031 = vmatpush1.bf16.msra.mxu0 0
        %1032 = vmatprep.subr.bf16.mxu0 0
        %1033 = vmatpush1.bf16.msra.mxu0 0
        %1034 = vmatprep.subr.bf16.mxu0 0
        %1035 = vmatpush1.bf16.msra.mxu0 0
        %1036 = vmatprep.subr.bf16.mxu0 0
        %1037 = vmatpush1.bf16.msra.mxu0 0
        %1038 = vmatprep.subr.bf16.mxu0 0
        %1039 = vmatpush1.bf16.msra.mxu0 0
        %1040 = vmatprep.subr.bf16.mxu0 0
        %1041 = vmatpush1.bf16.msra.mxu0 0
        %1042 = vmatprep.subr.bf16.mxu0 0
        %1043 = vmatpush1.bf16.msra.mxu0 0
        %1044 = vmatprep.subr.bf16.mxu0 0
        %1045 = vmatpush1.bf16.msra.mxu0 0
        %1046 = vmatprep.mubr.bf16.mxu0 0
        %1047 = vmatmul.mubr.bf16.gmra.mrb[0].mxu0 %v919
        %v1048 = vpop.f32.mrb[0].mxu0
        %v1049 = vadd.f32 %v915, %v1048
        %v1050 = vpop.f32.mrb[0].mxu0
        %v1051 = vpop.f32.mrb[0].mxu0
        %v1052 = vpop.f32.mrb[0].mxu0
        %1053 = vdwg.mxu0
        %v1055 = vand.u32 %v881, %v924
        %1057 = vmatprep.subr.bf16.mxu0 0
        %1058 = vmatpush1.bf16.msra.mxu0 %v880
        %1059 = vmatprep.subr.bf16.mxu0 0
        %1060 = vmatpush1.bf16.msra.mxu0 %v1055
        %1061 = vmatprep.subr.bf16.mxu0 0
        %1062 = vmatpush1.bf16.msra.mxu0 0
        %1063 = vmatprep.subr.bf16.mxu0 0
        %1064 = vmatpush1.bf16.msra.mxu0 0
        %1065 = vmatprep.subr.bf16.mxu0 0
        %1066 = vmatpush1.bf16.msra.mxu0 0
        %1067 = vmatprep.subr.bf16.mxu0 0
        %1068 = vmatpush1.bf16.msra.mxu0 0
        %1069 = vmatprep.subr.bf16.mxu0 0
        %1070 = vmatpush1.bf16.msra.mxu0 0
        %1071 = vmatprep.subr.bf16.mxu0 0
        %1072 = vmatpush1.bf16.msra.mxu0 0
        %1073 = vmatprep.subr.bf16.mxu0 0
        %1074 = vmatpush1.bf16.msra.mxu0 0
        %1075 = vmatprep.subr.bf16.mxu0 0
        %1076 = vmatpush1.bf16.msra.mxu0 0
        %1077 = vmatprep.subr.bf16.mxu0 0
        %1078 = vmatpush1.bf16.msra.mxu0 0
        %1079 = vmatprep.subr.bf16.mxu0 0
        %1080 = vmatpush1.bf16.msra.mxu0 0
        %1081 = vmatprep.subr.bf16.mxu0 0
        %1082 = vmatpush1.bf16.msra.mxu0 0
        %1083 = vmatprep.subr.bf16.mxu0 0
        %1084 = vmatpush1.bf16.msra.mxu0 0
        %1085 = vmatprep.subr.bf16.mxu0 0
        %1086 = vmatpush1.bf16.msra.mxu0 0
        %1087 = vmatprep.subr.bf16.mxu0 0
        %1088 = vmatpush1.bf16.msra.mxu0 0
        %1089 = vmatprep.mubr.bf16.mxu0 0
        %1090 = vmatmul.mubr.bf16.gmra.mrb[0].mxu0 %v919
        %v1091 = vpop.f32.mrb[0].mxu0
        %v1092 = vadd.f32 %v915, %v1091
        %v1093 = vpop.f32.mrb[0].mxu0
        %v1094 = vpop.f32.mrb[0].mxu0
        %v1095 = vpop.f32.mrb[0].mxu0
        %1096 = vdwg.mxu0
        %v1098 = vand.u32 %v883, %v924
        %1100 = vmatprep.subr.bf16.mxu0 0
        %1101 = vmatpush1.bf16.msra.mxu0 %v882
        %1102 = vmatprep.subr.bf16.mxu0 0
        %1103 = vmatpush1.bf16.msra.mxu0 %v1098
        %1104 = vmatprep.subr.bf16.mxu0 0
        %1105 = vmatpush1.bf16.msra.mxu0 0
        %1106 = vmatprep.subr.bf16.mxu0 0
        %1107 = vmatpush1.bf16.msra.mxu0 0
        %1108 = vmatprep.subr.bf16.mxu0 0
        %1109 = vmatpush1.bf16.msra.mxu0 0
        %1110 = vmatprep.subr.bf16.mxu0 0
        %1111 = vmatpush1.bf16.msra.mxu0 0
        %1112 = vmatprep.subr.bf16.mxu0 0
        %1113 = vmatpush1.bf16.msra.mxu0 0
        %1114 = vmatprep.subr.bf16.mxu0 0
        %1115 = vmatpush1.bf16.msra.mxu0 0
        %1116 = vmatprep.subr.bf16.mxu0 0
        %1117 = vmatpush1.bf16.msra.mxu0 0
        %1118 = vmatprep.subr.bf16.mxu0 0
        %1119 = vmatpush1.bf16.msra.mxu0 0
        %1120 = vmatprep.subr.bf16.mxu0 0
        %1121 = vmatpush1.bf16.msra.mxu0 0
        %1122 = vmatprep.subr.bf16.mxu0 0
        %1123 = vmatpush1.bf16.msra.mxu0 0
        %1124 = vmatprep.subr.bf16.mxu0 0
        %1125 = vmatpush1.bf16.msra.mxu0 0
        %1126 = vmatprep.subr.bf16.mxu0 0
        %1127 = vmatpush1.bf16.msra.mxu0 0
        %1128 = vmatprep.subr.bf16.mxu0 0
        %1129 = vmatpush1.bf16.msra.mxu0 0
        %1130 = vmatprep.subr.bf16.mxu0 0
        %1131 = vmatpush1.bf16.msra.mxu0 0
        %1132 = vmatprep.mubr.bf16.mxu0 0
        %1133 = vmatmul.mubr.bf16.gmra.mrb[0].mxu0 %v919
        %v1134 = vpop.f32.mrb[0].mxu0
        %v1135 = vadd.f32 %v915, %v1134
        %v1136 = vpop.f32.mrb[0].mxu0
        %v1137 = vpop.f32.mrb[0].mxu0
        %v1138 = vpop.f32.mrb[0].mxu0
        %1139 = vdwg.mxu0
        %v1141 = vand.u32 %v885, %v924
        %1143 = vmatprep.subr.bf16.mxu0 0
        %1144 = vmatpush1.bf16.msra.mxu0 %v884
        %1145 = vmatprep.subr.bf16.mxu0 0
        %1146 = vmatpush1.bf16.msra.mxu0 %v1141
        %1147 = vmatprep.subr.bf16.mxu0 0
        %1148 = vmatpush1.bf16.msra.mxu0 0
        %1149 = vmatprep.subr.bf16.mxu0 0
        %1150 = vmatpush1.bf16.msra.mxu0 0
        %1151 = vmatprep.subr.bf16.mxu0 0
        %1152 = vmatpush1.bf16.msra.mxu0 0
        %1153 = vmatprep.subr.bf16.mxu0 0
        %1154 = vmatpush1.bf16.msra.mxu0 0
        %1155 = vmatprep.subr.bf16.mxu0 0
        %1156 = vmatpush1.bf16.msra.mxu0 0
        %1157 = vmatprep.subr.bf16.mxu0 0
        %1158 = vmatpush1.bf16.msra.mxu0 0
        %1159 = vmatprep.subr.bf16.mxu0 0
        %1160 = vmatpush1.bf16.msra.mxu0 0
        %1161 = vmatprep.subr.bf16.mxu0 0
        %1162 = vmatpush1.bf16.msra.mxu0 0
        %1163 = vmatprep.subr.bf16.mxu0 0
        %1164 = vmatpush1.bf16.msra.mxu0 0
        %1165 = vmatprep.subr.bf16.mxu0 0
        %1166 = vmatpush1.bf16.msra.mxu0 0
        %1167 = vmatprep.subr.bf16.mxu0 0
        %1168 = vmatpush1.bf16.msra.mxu0 0
        %1169 = vmatprep.subr.bf16.mxu0 0
        %1170 = vmatpush1.bf16.msra.mxu0 0
        %1171 = vmatprep.subr.bf16.mxu0 0
        %1172 = vmatpush1.bf16.msra.mxu0 0
        %1173 = vmatprep.subr.bf16.mxu0 0
        %1174 = vmatpush1.bf16.msra.mxu0 0
        %1175 = vmatprep.mubr.bf16.mxu0 0
        %1176 = vmatmul.mubr.bf16.gmra.mrb[0].mxu0 %v919
        %v1177 = vpop.f32.mrb[0].mxu0
        %v1178 = vadd.f32 %v915, %v1177
        %v1179 = vpop.f32.mrb[0].mxu0
        %v1180 = vpop.f32.mrb[0].mxu0
        %v1181 = vpop.f32.mrb[0].mxu0
        %1182 = vdwg.mxu0
        %v1184 = vand.u32 %v887, %v924
        %1186 = vmatprep.subr.bf16.mxu0 0
        %1187 = vmatpush1.bf16.msra.mxu0 %v886
        %1188 = vmatprep.subr.bf16.mxu0 0
        %1189 = vmatpush1.bf16.msra.mxu0 %v1184
        %1190 = vmatprep.subr.bf16.mxu0 0
        %1191 = vmatpush1.bf16.msra.mxu0 0
        %1192 = vmatprep.subr.bf16.mxu0 0
        %1193 = vmatpush1.bf16.msra.mxu0 0
        %1194 = vmatprep.subr.bf16.mxu0 0
        %1195 = vmatpush1.bf16.msra.mxu0 0
        %1196 = vmatprep.subr.bf16.mxu0 0
        %1197 = vmatpush1.bf16.msra.mxu0 0
        %1198 = vmatprep.subr.bf16.mxu0 0
        %1199 = vmatpush1.bf16.msra.mxu0 0
        %1200 = vmatprep.subr.bf16.mxu0 0
        %1201 = vmatpush1.bf16.msra.mxu0 0
        %1202 = vmatprep.subr.bf16.mxu0 0
        %1203 = vmatpush1.bf16.msra.mxu0 0
        %1204 = vmatprep.subr.bf16.mxu0 0
        %1205 = vmatpush1.bf16.msra.mxu0 0
        %1206 = vmatprep.subr.bf16.mxu0 0
        %1207 = vmatpush1.bf16.msra.mxu0 0
        %1208 = vmatprep.subr.bf16.mxu0 0
        %1209 = vmatpush1.bf16.msra.mxu0 0
        %1210 = vmatprep.subr.bf16.mxu0 0
        %1211 = vmatpush1.bf16.msra.mxu0 0
        %1212 = vmatprep.subr.bf16.mxu0 0
        %1213 = vmatpush1.bf16.msra.mxu0 0
        %1214 = vmatprep.subr.bf16.mxu0 0
        %1215 = vmatpush1.bf16.msra.mxu0 0
        %1216 = vmatprep.subr.bf16.mxu0 0
        %1217 = vmatpush1.bf16.msra.mxu0 0
        %1218 = vmatprep.mubr.bf16.mxu0 0
        %1219 = vmatmul.mubr.bf16.gmra.mrb[0].mxu0 %v919
        %v1220 = vpop.f32.mrb[0].mxu0
        %v1221 = vadd.f32 %v915, %v1220
        %v1222 = vpop.f32.mrb[0].mxu0
        %v1223 = vpop.f32.mrb[0].mxu0
        %v1224 = vpop.f32.mrb[0].mxu0
        %1225 = vdwg.mxu0
        %v1227 = vand.u32 %v889, %v924
        %1229 = vmatprep.subr.bf16.mxu0 0
        %1230 = vmatpush1.bf16.msra.mxu0 %v888
        %1231 = vmatprep.subr.bf16.mxu0 0
        %1232 = vmatpush1.bf16.msra.mxu0 %v1227
        %1233 = vmatprep.subr.bf16.mxu0 0
        %1234 = vmatpush1.bf16.msra.mxu0 0
        %1235 = vmatprep.subr.bf16.mxu0 0
        %1236 = vmatpush1.bf16.msra.mxu0 0
        %1237 = vmatprep.subr.bf16.mxu0 0
        %1238 = vmatpush1.bf16.msra.mxu0 0
        %1239 = vmatprep.subr.bf16.mxu0 0
        %1240 = vmatpush1.bf16.msra.mxu0 0
        %1241 = vmatprep.subr.bf16.mxu0 0
        %1242 = vmatpush1.bf16.msra.mxu0 0
        %1243 = vmatprep.subr.bf16.mxu0 0
        %1244 = vmatpush1.bf16.msra.mxu0 0
        %1245 = vmatprep.subr.bf16.mxu0 0
        %1246 = vmatpush1.bf16.msra.mxu0 0
        %1247 = vmatprep.subr.bf16.mxu0 0
        %1248 = vmatpush1.bf16.msra.mxu0 0
        %1249 = vmatprep.subr.bf16.mxu0 0
        %1250 = vmatpush1.bf16.msra.mxu0 0
        %1251 = vmatprep.subr.bf16.mxu0 0
        %1252 = vmatpush1.bf16.msra.mxu0 0
        %1253 = vmatprep.subr.bf16.mxu0 0
        %1254 = vmatpush1.bf16.msra.mxu0 0
        %1255 = vmatprep.subr.bf16.mxu0 0
        %1256 = vmatpush1.bf16.msra.mxu0 0
        %1257 = vmatprep.subr.bf16.mxu0 0
        %1258 = vmatpush1.bf16.msra.mxu0 0
        %1259 = vmatprep.subr.bf16.mxu0 0
        %1260 = vmatpush1.bf16.msra.mxu0 0
        %1261 = vmatprep.mubr.bf16.mxu0 0
        %1262 = vmatmul.mubr.bf16.gmra.mrb[0].mxu0 %v919
        %v1263 = vpop.f32.mrb[0].mxu0
        %v1264 = vadd.f32 %v915, %v1263
        %v1265 = vpop.f32.mrb[0].mxu0
        %v1266 = vpop.f32.mrb[0].mxu0
        %v1267 = vpop.f32.mrb[0].mxu0
        %1268 = vdwg.mxu0
        %v1270 = vand.u32 %v891, %v924
        %1272 = vmatprep.subr.bf16.mxu0 0
        %1273 = vmatpush1.bf16.msra.mxu0 %v890
        %1274 = vmatprep.subr.bf16.mxu0 0
        %1275 = vmatpush1.bf16.msra.mxu0 %v1270
        %1276 = vmatprep.subr.bf16.mxu0 0
        %1277 = vmatpush1.bf16.msra.mxu0 0
        %1278 = vmatprep.subr.bf16.mxu0 0
        %1279 = vmatpush1.bf16.msra.mxu0 0
        %1280 = vmatprep.subr.bf16.mxu0 0
        %1281 = vmatpush1.bf16.msra.mxu0 0
        %1282 = vmatprep.subr.bf16.mxu0 0
        %1283 = vmatpush1.bf16.msra.mxu0 0
        %1284 = vmatprep.subr.bf16.mxu0 0
        %1285 = vmatpush1.bf16.msra.mxu0 0
        %1286 = vmatprep.subr.bf16.mxu0 0
        %1287 = vmatpush1.bf16.msra.mxu0 0
        %1288 = vmatprep.subr.bf16.mxu0 0
        %1289 = vmatpush1.bf16.msra.mxu0 0
        %1290 = vmatprep.subr.bf16.mxu0 0
        %1291 = vmatpush1.bf16.msra.mxu0 0
        %1292 = vmatprep.subr.bf16.mxu0 0
        %1293 = vmatpush1.bf16.msra.mxu0 0
        %1294 = vmatprep.subr.bf16.mxu0 0
        %1295 = vmatpush1.bf16.msra.mxu0 0
        %1296 = vmatprep.subr.bf16.mxu0 0
        %1297 = vmatpush1.bf16.msra.mxu0 0
        %1298 = vmatprep.subr.bf16.mxu0 0
        %1299 = vmatpush1.bf16.msra.mxu0 0
        %1300 = vmatprep.subr.bf16.mxu0 0
        %1301 = vmatpush1.bf16.msra.mxu0 0
        %1302 = vmatprep.subr.bf16.mxu0 0
        %1303 = vmatpush1.bf16.msra.mxu0 0
        %1304 = vmatprep.mubr.bf16.mxu0 0
        %1305 = vmatmul.mubr.bf16.gmra.mrb[0].mxu0 %v919
        %v1306 = vpop.f32.mrb[0].mxu0
        %v1307 = vadd.f32 %v915, %v1306
        %v1308 = vpop.f32.mrb[0].mxu0
        %v1309 = vpop.f32.mrb[0].mxu0
        %v1310 = vpop.f32.mrb[0].mxu0
        %1311 = vdwg.mxu0
        %v1313 = vand.u32 %v893, %v924
        %1315 = vmatprep.subr.bf16.mxu0 0
        %1316 = vmatpush1.bf16.msra.mxu0 %v892
        %1317 = vmatprep.subr.bf16.mxu0 0
        %1318 = vmatpush1.bf16.msra.mxu0 %v1313
        %1319 = vmatprep.subr.bf16.mxu0 0
        %1320 = vmatpush1.bf16.msra.mxu0 0
        %1321 = vmatprep.subr.bf16.mxu0 0
        %1322 = vmatpush1.bf16.msra.mxu0 0
        %1323 = vmatprep.subr.bf16.mxu0 0
        %1324 = vmatpush1.bf16.msra.mxu0 0
        %1325 = vmatprep.subr.bf16.mxu0 0
        %1326 = vmatpush1.bf16.msra.mxu0 0
        %1327 = vmatprep.subr.bf16.mxu0 0
        %1328 = vmatpush1.bf16.msra.mxu0 0
        %1329 = vmatprep.subr.bf16.mxu0 0
        %1330 = vmatpush1.bf16.msra.mxu0 0
        %1331 = vmatprep.subr.bf16.mxu0 0
        %1332 = vmatpush1.bf16.msra.mxu0 0
        %1333 = vmatprep.subr.bf16.mxu0 0
        %1334 = vmatpush1.bf16.msra.mxu0 0
        %1335 = vmatprep.subr.bf16.mxu0 0
        %1336 = vmatpush1.bf16.msra.mxu0 0
        %1337 = vmatprep.subr.bf16.mxu0 0
        %1338 = vmatpush1.bf16.msra.mxu0 0
        %1339 = vmatprep.subr.bf16.mxu0 0
        %1340 = vmatpush1.bf16.msra.mxu0 0
        %1341 = vmatprep.subr.bf16.mxu0 0
        %1342 = vmatpush1.bf16.msra.mxu0 0
        %1343 = vmatprep.subr.bf16.mxu0 0
        %1344 = vmatpush1.bf16.msra.mxu0 0
        %1345 = vmatprep.subr.bf16.mxu0 0
        %1346 = vmatpush1.bf16.msra.mxu0 0
        %1347 = vmatprep.mubr.bf16.mxu0 0
        %1348 = vmatmul.mubr.bf16.gmra.mrb[0].mxu0 %v919
        %v1349 = vpop.f32.mrb[0].mxu0
        %v1350 = vadd.f32 %v915, %v1349
        %v1351 = vpop.f32.mrb[0].mxu0
        %v1352 = vpop.f32.mrb[0].mxu0
        %v1353 = vpop.f32.mrb[0].mxu0
        %1354 = vdwg.mxu0
        %v1356 = vand.u32 %v895, %v924
        %1358 = vmatprep.subr.bf16.mxu0 0
        %1359 = vmatpush1.bf16.msra.mxu0 %v894
        %1360 = vmatprep.subr.bf16.mxu0 0
        %1361 = vmatpush1.bf16.msra.mxu0 %v1356
        %1362 = vmatprep.subr.bf16.mxu0 0
        %1363 = vmatpush1.bf16.msra.mxu0 0
        %1364 = vmatprep.subr.bf16.mxu0 0
        %1365 = vmatpush1.bf16.msra.mxu0 0
        %1366 = vmatprep.subr.bf16.mxu0 0
        %1367 = vmatpush1.bf16.msra.mxu0 0
        %1368 = vmatprep.subr.bf16.mxu0 0
        %1369 = vmatpush1.bf16.msra.mxu0 0
        %1370 = vmatprep.subr.bf16.mxu0 0
        %1371 = vmatpush1.bf16.msra.mxu0 0
        %1372 = vmatprep.subr.bf16.mxu0 0
        %1373 = vmatpush1.bf16.msra.mxu0 0
        %1374 = vmatprep.subr.bf16.mxu0 0
        %1375 = vmatpush1.bf16.msra.mxu0 0
        %1376 = vmatprep.subr.bf16.mxu0 0
        %1377 = vmatpush1.bf16.msra.mxu0 0
        %1378 = vmatprep.subr.bf16.mxu0 0
        %1379 = vmatpush1.bf16.msra.mxu0 0
        %1380 = vmatprep.subr.bf16.mxu0 0
        %1381 = vmatpush1.bf16.msra.mxu0 0
        %1382 = vmatprep.subr.bf16.mxu0 0
        %1383 = vmatpush1.bf16.msra.mxu0 0
        %1384 = vmatprep.subr.bf16.mxu0 0
        %1385 = vmatpush1.bf16.msra.mxu0 0
        %1386 = vmatprep.subr.bf16.mxu0 0
        %1387 = vmatpush1.bf16.msra.mxu0 0
        %1388 = vmatprep.subr.bf16.mxu0 0
        %1389 = vmatpush1.bf16.msra.mxu0 0
        %1390 = vmatprep.mubr.bf16.mxu0 0
        %1391 = vmatmul.mubr.bf16.gmra.mrb[0].mxu0 %v919
        %v1392 = vpop.f32.mrb[0].mxu0
        %v1393 = vadd.f32 %v915, %v1392
        %v1394 = vpop.f32.mrb[0].mxu0
        %v1395 = vpop.f32.mrb[0].mxu0
        %v1396 = vpop.f32.mrb[0].mxu0
        %1397 = vdwg.mxu0
        %v1399 = vand.u32 %v897, %v924
        %1401 = vmatprep.subr.bf16.mxu0 0
        %1402 = vmatpush1.bf16.msra.mxu0 %v896
        %1403 = vmatprep.subr.bf16.mxu0 0
        %1404 = vmatpush1.bf16.msra.mxu0 %v1399
        %1405 = vmatprep.subr.bf16.mxu0 0
        %1406 = vmatpush1.bf16.msra.mxu0 0
        %1407 = vmatprep.subr.bf16.mxu0 0
        %1408 = vmatpush1.bf16.msra.mxu0 0
        %1409 = vmatprep.subr.bf16.mxu0 0
        %1410 = vmatpush1.bf16.msra.mxu0 0
        %1411 = vmatprep.subr.bf16.mxu0 0
        %1412 = vmatpush1.bf16.msra.mxu0 0
        %1413 = vmatprep.subr.bf16.mxu0 0
        %1414 = vmatpush1.bf16.msra.mxu0 0
        %1415 = vmatprep.subr.bf16.mxu0 0
        %1416 = vmatpush1.bf16.msra.mxu0 0
        %1417 = vmatprep.subr.bf16.mxu0 0
        %1418 = vmatpush1.bf16.msra.mxu0 0
        %1419 = vmatprep.subr.bf16.mxu0 0
        %1420 = vmatpush1.bf16.msra.mxu0 0
        %1421 = vmatprep.subr.bf16.mxu0 0
        %1422 = vmatpush1.bf16.msra.mxu0 0
        %1423 = vmatprep.subr.bf16.mxu0 0
        %1424 = vmatpush1.bf16.msra.mxu0 0
        %1425 = vmatprep.subr.bf16.mxu0 0
        %1426 = vmatpush1.bf16.msra.mxu0 0
        %1427 = vmatprep.subr.bf16.mxu0 0
        %1428 = vmatpush1.bf16.msra.mxu0 0
        %1429 = vmatprep.subr.bf16.mxu0 0
        %1430 = vmatpush1.bf16.msra.mxu0 0
        %1431 = vmatprep.subr.bf16.mxu0 0
        %1432 = vmatpush1.bf16.msra.mxu0 0
        %1433 = vmatprep.mubr.bf16.mxu0 0
        %1434 = vmatmul.mubr.bf16.gmra.mrb[0].mxu0 %v919
        %v1435 = vpop.f32.mrb[0].mxu0
        %v1436 = vadd.f32 %v915, %v1435
        %v1437 = vpop.f32.mrb[0].mxu0
        %v1438 = vpop.f32.mrb[0].mxu0
        %v1439 = vpop.f32.mrb[0].mxu0
        %1440 = vdwg.mxu0
        %v1442 = vand.u32 %v899, %v924
        %1444 = vmatprep.subr.bf16.mxu0 0
        %1445 = vmatpush1.bf16.msra.mxu0 %v898
        %1446 = vmatprep.subr.bf16.mxu0 0
        %1447 = vmatpush1.bf16.msra.mxu0 %v1442
        %1448 = vmatprep.subr.bf16.mxu0 0
        %1449 = vmatpush1.bf16.msra.mxu0 0
        %1450 = vmatprep.subr.bf16.mxu0 0
        %1451 = vmatpush1.bf16.msra.mxu0 0
        %1452 = vmatprep.subr.bf16.mxu0 0
        %1453 = vmatpush1.bf16.msra.mxu0 0
        %1454 = vmatprep.subr.bf16.mxu0 0
        %1455 = vmatpush1.bf16.msra.mxu0 0
        %1456 = vmatprep.subr.bf16.mxu0 0
        %1457 = vmatpush1.bf16.msra.mxu0 0
        %1458 = vmatprep.subr.bf16.mxu0 0
        %1459 = vmatpush1.bf16.msra.mxu0 0
        %1460 = vmatprep.subr.bf16.mxu0 0
        %1461 = vmatpush1.bf16.msra.mxu0 0
        %1462 = vmatprep.subr.bf16.mxu0 0
        %1463 = vmatpush1.bf16.msra.mxu0 0
        %1464 = vmatprep.subr.bf16.mxu0 0
        %1465 = vmatpush1.bf16.msra.mxu0 0
        %1466 = vmatprep.subr.bf16.mxu0 0
        %1467 = vmatpush1.bf16.msra.mxu0 0
        %1468 = vmatprep.subr.bf16.mxu0 0
        %1469 = vmatpush1.bf16.msra.mxu0 0
        %1470 = vmatprep.subr.bf16.mxu0 0
        %1471 = vmatpush1.bf16.msra.mxu0 0
        %1472 = vmatprep.subr.bf16.mxu0 0
        %1473 = vmatpush1.bf16.msra.mxu0 0
        %1474 = vmatprep.subr.bf16.mxu0 0
        %1475 = vmatpush1.bf16.msra.mxu0 0
        %1476 = vmatprep.mubr.bf16.mxu0 0
        %1477 = vmatmul.mubr.bf16.gmra.mrb[0].mxu0 %v919
        %v1478 = vpop.f32.mrb[0].mxu0
        %v1479 = vadd.f32 %v915, %v1478
        %v1480 = vpop.f32.mrb[0].mxu0
        %v1481 = vpop.f32.mrb[0].mxu0
        %v1482 = vpop.f32.mrb[0].mxu0
        %1483 = vdwg.mxu0
        %v1485 = vand.u32 %v901, %v924
        %1487 = vmatprep.subr.bf16.mxu0 0
        %1488 = vmatpush1.bf16.msra.mxu0 %v900
        %1489 = vmatprep.subr.bf16.mxu0 0
        %1490 = vmatpush1.bf16.msra.mxu0 %v1485
        %1491 = vmatprep.subr.bf16.mxu0 0
        %1492 = vmatpush1.bf16.msra.mxu0 0
        %1493 = vmatprep.subr.bf16.mxu0 0
        %1494 = vmatpush1.bf16.msra.mxu0 0
        %1495 = vmatprep.subr.bf16.mxu0 0
        %1496 = vmatpush1.bf16.msra.mxu0 0
        %1497 = vmatprep.subr.bf16.mxu0 0
        %1498 = vmatpush1.bf16.msra.mxu0 0
        %1499 = vmatprep.subr.bf16.mxu0 0
        %1500 = vmatpush1.bf16.msra.mxu0 0
        %1501 = vmatprep.subr.bf16.mxu0 0
        %1502 = vmatpush1.bf16.msra.mxu0 0
        %1503 = vmatprep.subr.bf16.mxu0 0
        %1504 = vmatpush1.bf16.msra.mxu0 0
        %1505 = vmatprep.subr.bf16.mxu0 0
        %1506 = vmatpush1.bf16.msra.mxu0 0
        %1507 = vmatprep.subr.bf16.mxu0 0
        %1508 = vmatpush1.bf16.msra.mxu0 0
        %1509 = vmatprep.subr.bf16.mxu0 0
        %1510 = vmatpush1.bf16.msra.mxu0 0
        %1511 = vmatprep.subr.bf16.mxu0 0
        %1512 = vmatpush1.bf16.msra.mxu0 0
        %1513 = vmatprep.subr.bf16.mxu0 0
        %1514 = vmatpush1.bf16.msra.mxu0 0
        %1515 = vmatprep.subr.bf16.mxu0 0
        %1516 = vmatpush1.bf16.msra.mxu0 0
        %1517 = vmatprep.subr.bf16.mxu0 0
        %1518 = vmatpush1.bf16.msra.mxu0 0
        %1519 = vmatprep.mubr.bf16.mxu0 0
        %1520 = vmatmul.mubr.bf16.gmra.mrb[0].mxu0 %v919
        %v1521 = vpop.f32.mrb[0].mxu0
        %v1522 = vadd.f32 %v915, %v1521
        %v1523 = vpop.f32.mrb[0].mxu0
        %v1524 = vpop.f32.mrb[0].mxu0
        %v1525 = vpop.f32.mrb[0].mxu0
        %1526 = vdwg.mxu0
        %v1528 = vand.u32 %v903, %v924
        %1530 = vmatprep.subr.bf16.mxu0 0
        %1531 = vmatpush1.bf16.msra.mxu0 %v902
        %1532 = vmatprep.subr.bf16.mxu0 0
        %1533 = vmatpush1.bf16.msra.mxu0 %v1528
        %1534 = vmatprep.subr.bf16.mxu0 0
        %1535 = vmatpush1.bf16.msra.mxu0 0
        %1536 = vmatprep.subr.bf16.mxu0 0
        %1537 = vmatpush1.bf16.msra.mxu0 0
        %1538 = vmatprep.subr.bf16.mxu0 0
        %1539 = vmatpush1.bf16.msra.mxu0 0
        %1540 = vmatprep.subr.bf16.mxu0 0
        %1541 = vmatpush1.bf16.msra.mxu0 0
        %1542 = vmatprep.subr.bf16.mxu0 0
        %1543 = vmatpush1.bf16.msra.mxu0 0
        %1544 = vmatprep.subr.bf16.mxu0 0
        %1545 = vmatpush1.bf16.msra.mxu0 0
        %1546 = vmatprep.subr.bf16.mxu0 0
        %1547 = vmatpush1.bf16.msra.mxu0 0
        %1548 = vmatprep.subr.bf16.mxu0 0
        %1549 = vmatpush1.bf16.msra.mxu0 0
        %1550 = vmatprep.subr.bf16.mxu0 0
        %1551 = vmatpush1.bf16.msra.mxu0 0
        %1552 = vmatprep.subr.bf16.mxu0 0
        %1553 = vmatpush1.bf16.msra.mxu0 0
        %1554 = vmatprep.subr.bf16.mxu0 0
        %1555 = vmatpush1.bf16.msra.mxu0 0
        %1556 = vmatprep.subr.bf16.mxu0 0
        %1557 = vmatpush1.bf16.msra.mxu0 0
        %1558 = vmatprep.subr.bf16.mxu0 0
        %1559 = vmatpush1.bf16.msra.mxu0 0
        %1560 = vmatprep.subr.bf16.mxu0 0
        %1561 = vmatpush1.bf16.msra.mxu0 0
        %1562 = vmatprep.mubr.bf16.mxu0 0
        %1563 = vmatmul.mubr.bf16.gmra.mrb[0].mxu0 %v919
        %v1564 = vpop.f32.mrb[0].mxu0
        %v1565 = vadd.f32 %v915, %v1564
        %v1566 = vpop.f32.mrb[0].mxu0
        %v1567 = vpop.f32.mrb[0].mxu0
        %v1568 = vpop.f32.mrb[0].mxu0
        %1569 = vdwg.mxu0
        %v1571 = vand.u32 %v905, %v924
        %1573 = vmatprep.subr.bf16.mxu0 0
        %1574 = vmatpush1.bf16.msra.mxu0 %v904
        %1575 = vmatprep.subr.bf16.mxu0 0
        %1576 = vmatpush1.bf16.msra.mxu0 %v1571
        %1577 = vmatprep.subr.bf16.mxu0 0
        %1578 = vmatpush1.bf16.msra.mxu0 0
        %1579 = vmatprep.subr.bf16.mxu0 0
        %1580 = vmatpush1.bf16.msra.mxu0 0
        %1581 = vmatprep.subr.bf16.mxu0 0
        %1582 = vmatpush1.bf16.msra.mxu0 0
        %1583 = vmatprep.subr.bf16.mxu0 0
        %1584 = vmatpush1.bf16.msra.mxu0 0
        %1585 = vmatprep.subr.bf16.mxu0 0
        %1586 = vmatpush1.bf16.msra.mxu0 0
        %1587 = vmatprep.subr.bf16.mxu0 0
        %1588 = vmatpush1.bf16.msra.mxu0 0
        %1589 = vmatprep.subr.bf16.mxu0 0
        %1590 = vmatpush1.bf16.msra.mxu0 0
        %1591 = vmatprep.subr.bf16.mxu0 0
        %1592 = vmatpush1.bf16.msra.mxu0 0
        %1593 = vmatprep.subr.bf16.mxu0 0
        %1594 = vmatpush1.bf16.msra.mxu0 0
        %1595 = vmatprep.subr.bf16.mxu0 0
        %1596 = vmatpush1.bf16.msra.mxu0 0
        %1597 = vmatprep.subr.bf16.mxu0 0
        %1598 = vmatpush1.bf16.msra.mxu0 0
        %1599 = vmatprep.subr.bf16.mxu0 0
        %1600 = vmatpush1.bf16.msra.mxu0 0
        %1601 = vmatprep.subr.bf16.mxu0 0
        %1602 = vmatpush1.bf16.msra.mxu0 0
        %1603 = vmatprep.subr.bf16.mxu0 0
        %1604 = vmatpush1.bf16.msra.mxu0 0
        %1605 = vmatprep.mubr.bf16.mxu0 0
        %1606 = vmatmul.mubr.bf16.gmra.mrb[0].mxu0 %v919
        %v1607 = vpop.f32.mrb[0].mxu0
        %v1608 = vadd.f32 %v915, %v1607
        %v1609 = vpop.f32.mrb[0].mxu0
        %v1610 = vpop.f32.mrb[0].mxu0
        %v1611 = vpop.f32.mrb[0].mxu0
        %1612 = vdwg.mxu0
        %v1614 = vand.u32 %v907, %v924
        %1616 = vmatprep.subr.bf16.mxu0 0
        %1617 = vmatpush1.bf16.msra.mxu0 %v906
        %1618 = vmatprep.subr.bf16.mxu0 0
        %1619 = vmatpush1.bf16.msra.mxu0 %v1614
        %1620 = vmatprep.subr.bf16.mxu0 0
        %1621 = vmatpush1.bf16.msra.mxu0 0
        %1622 = vmatprep.subr.bf16.mxu0 0
        %1623 = vmatpush1.bf16.msra.mxu0 0
        %1624 = vmatprep.subr.bf16.mxu0 0
        %1625 = vmatpush1.bf16.msra.mxu0 0
        %1626 = vmatprep.subr.bf16.mxu0 0
        %1627 = vmatpush1.bf16.msra.mxu0 0
        %1628 = vmatprep.subr.bf16.mxu0 0
        %1629 = vmatpush1.bf16.msra.mxu0 0
        %1630 = vmatprep.subr.bf16.mxu0 0
        %1631 = vmatpush1.bf16.msra.mxu0 0
        %1632 = vmatprep.subr.bf16.mxu0 0
        %1633 = vmatpush1.bf16.msra.mxu0 0
        %1634 = vmatprep.subr.bf16.mxu0 0
        %1635 = vmatpush1.bf16.msra.mxu0 0
        %1636 = vmatprep.subr.bf16.mxu0 0
        %1637 = vmatpush1.bf16.msra.mxu0 0
        %1638 = vmatprep.subr.bf16.mxu0 0
        %1639 = vmatpush1.bf16.msra.mxu0 0
        %1640 = vmatprep.subr.bf16.mxu0 0
        %1641 = vmatpush1.bf16.msra.mxu0 0
        %1642 = vmatprep.subr.bf16.mxu0 0
        %1643 = vmatpush1.bf16.msra.mxu0 0
        %1644 = vmatprep.subr.bf16.mxu0 0
        %1645 = vmatpush1.bf16.msra.mxu0 0
        %1646 = vmatprep.subr.bf16.mxu0 0
        %1647 = vmatpush1.bf16.msra.mxu0 0
        %1648 = vmatprep.mubr.bf16.mxu0 0
        %1649 = vmatmul.mubr.bf16.gmra.mrb[0].mxu0 %v919
        %v1650 = vpop.f32.mrb[0].mxu0
        %v1651 = vadd.f32 %v915, %v1650
        %v1652 = vpop.f32.mrb[0].mxu0
        %v1653 = vpop.f32.mrb[0].mxu0
        %v1654 = vpop.f32.mrb[0].mxu0
        %1655 = vdwg.mxu0
        %v1657 = vand.u32 %v909, %v924
        %1659 = vmatprep.subr.bf16.mxu0 0
        %1660 = vmatpush1.bf16.msra.mxu0 %v908
        %1661 = vmatprep.subr.bf16.mxu0 0
        %1662 = vmatpush1.bf16.msra.mxu0 %v1657
        %1663 = vmatprep.subr.bf16.mxu0 0
        %1664 = vmatpush1.bf16.msra.mxu0 0
        %1665 = vmatprep.subr.bf16.mxu0 0
        %1666 = vmatpush1.bf16.msra.mxu0 0
        %1667 = vmatprep.subr.bf16.mxu0 0
        %1668 = vmatpush1.bf16.msra.mxu0 0
        %1669 = vmatprep.subr.bf16.mxu0 0
        %1670 = vmatpush1.bf16.msra.mxu0 0
        %1671 = vmatprep.subr.bf16.mxu0 0
        %1672 = vmatpush1.bf16.msra.mxu0 0
        %1673 = vmatprep.subr.bf16.mxu0 0
        %1674 = vmatpush1.bf16.msra.mxu0 0
        %1675 = vmatprep.subr.bf16.mxu0 0
        %1676 = vmatpush1.bf16.msra.mxu0 0
        %1677 = vmatprep.subr.bf16.mxu0 0
        %1678 = vmatpush1.bf16.msra.mxu0 0
        %1679 = vmatprep.subr.bf16.mxu0 0
        %1680 = vmatpush1.bf16.msra.mxu0 0
        %1681 = vmatprep.subr.bf16.mxu0 0
        %1682 = vmatpush1.bf16.msra.mxu0 0
        %1683 = vmatprep.subr.bf16.mxu0 0
        %1684 = vmatpush1.bf16.msra.mxu0 0
        %1685 = vmatprep.subr.bf16.mxu0 0
        %1686 = vmatpush1.bf16.msra.mxu0 0
        %1687 = vmatprep.subr.bf16.mxu0 0
        %1688 = vmatpush1.bf16.msra.mxu0 0
        %1689 = vmatprep.subr.bf16.mxu0 0
        %1690 = vmatpush1.bf16.msra.mxu0 0
        %1691 = vmatprep.mubr.bf16.mxu0 0
        %1692 = vmatmul.mubr.bf16.gmra.mrb[0].mxu0 %v919
        %v1693 = vpop.f32.mrb[0].mxu0
        %v1694 = vadd.f32 %v915, %v1693
        %v1695 = vpop.f32.mrb[0].mxu0
        %v1696 = vpop.f32.mrb[0].mxu0
        %v1697 = vpop.f32.mrb[0].mxu0
        %1698 = vdwg.mxu0
        %s1699 = ssub.s32 %s311, 1
        %v1700 = vstv %s1699
        %v1701 = vadd.s32 %v1700, 1
        %v1702 = vadd.s32 %v1700, 2
        %v1703 = vadd.s32 %v1700, 3
        %v1704 = vadd.s32 %v1700, 4
        %v1705 = vadd.s32 %v1700, 5
        %v1706 = vadd.s32 %v1700, 6
        %v1707 = vadd.s32 %v1700, 7
        %v1708 = vadd.s32 %v1700, 8
        %v1709 = vadd.s32 %v1700, 9
        %v1710 = vadd.s32 %v1700, 10
        %v1711 = vadd.s32 %v1700, 11
        %v1712 = vadd.s32 %v1700, 12
        %v1713 = vadd.s32 %v1700, 13
        %v1714 = vadd.s32 %v1700, 14
        %v1715 = vadd.s32 %v1700, 15
        %v1716 = vadd.s32 %v1700, 16
        %v1717 = vadd.s32 %v1700, 17
        %vm1718 = vcmp.ge.s32.totalorder %v1700, 0
        %vm1719 = vcmp.ge.s32.totalorder %v1701, 0
        %vm1720 = vcmp.ge.s32.totalorder %v1702, 0
        %vm1721 = vcmp.ge.s32.totalorder %v1703, 0
        %vm1722 = vcmp.ge.s32.totalorder %v1704, 0
        %vm1723 = vcmp.ge.s32.totalorder %v1705, 0
        %vm1724 = vcmp.ge.s32.totalorder %v1706, 0
        %vm1725 = vcmp.ge.s32.totalorder %v1707, 0
        %vm1726 = vcmp.ge.s32.totalorder %v1708, 0
        %vm1727 = vcmp.ge.s32.totalorder %v1709, 0
        %vm1728 = vcmp.ge.s32.totalorder %v1710, 0
        %vm1729 = vcmp.ge.s32.totalorder %v1711, 0
        %vm1730 = vcmp.ge.s32.totalorder %v1712, 0
        %vm1731 = vcmp.ge.s32.totalorder %v1713, 0
        %vm1732 = vcmp.ge.s32.totalorder %v1714, 0
        %vm1733 = vcmp.ge.s32.totalorder %v1715, 0
        %vm1734 = vcmp.ge.s32.totalorder %v1716, 0
        %vm1735 = vcmp.ge.s32.totalorder %v1717, 0
        %vm1736 = vcmp.lt.s32.totalorder %v1700, 16
        %vm1737 = vcmp.lt.s32.totalorder %v1701, 16
        %vm1738 = vcmp.lt.s32.totalorder %v1702, 16
        %vm1739 = vcmp.lt.s32.totalorder %v1703, 16
        %vm1740 = vcmp.lt.s32.totalorder %v1704, 16
        %vm1741 = vcmp.lt.s32.totalorder %v1705, 16
        %vm1742 = vcmp.lt.s32.totalorder %v1706, 16
        %vm1743 = vcmp.lt.s32.totalorder %v1707, 16
        %vm1744 = vcmp.lt.s32.totalorder %v1708, 16
        %vm1745 = vcmp.lt.s32.totalorder %v1709, 16
        %vm1746 = vcmp.lt.s32.totalorder %v1710, 16
        %vm1747 = vcmp.lt.s32.totalorder %v1711, 16
        %vm1748 = vcmp.lt.s32.totalorder %v1712, 16
        %vm1749 = vcmp.lt.s32.totalorder %v1713, 16
        %vm1750 = vcmp.lt.s32.totalorder %v1714, 16
        %vm1751 = vcmp.lt.s32.totalorder %v1715, 16
        %vm1752 = vcmp.lt.s32.totalorder %v1716, 16
        %vm1753 = vcmp.lt.s32.totalorder %v1717, 16
        %vm1754 = vmand %vm1718, %vm1736
        %vm1755 = vmand %vm1719, %vm1737
        %vm1756 = vmand %vm1720, %vm1738
        %vm1757 = vmand %vm1721, %vm1739
        %vm1758 = vmand %vm1722, %vm1740
        %vm1759 = vmand %vm1723, %vm1741
        %vm1760 = vmand %vm1724, %vm1742
        %vm1761 = vmand %vm1725, %vm1743
        %vm1762 = vmand %vm1726, %vm1744
        %vm1763 = vmand %vm1727, %vm1745
        %vm1764 = vmand %vm1728, %vm1746
        %vm1765 = vmand %vm1729, %vm1747
        %vm1766 = vmand %vm1730, %vm1748
        %vm1767 = vmand %vm1731, %vm1749
        %vm1768 = vmand %vm1732, %vm1750
        %vm1769 = vmand %vm1733, %vm1751
        %vm1770 = vmand %vm1734, %vm1752
        %vm1771 = vmand %vm1735, %vm1753
        %v1772 = vmax.f32 %v963, 0.0
        %v1773 = vmax.f32 %v1006, 0.0
        %v1774 = vmax.f32 %v1049, 0.0
        %v1775 = vmax.f32 %v1092, 0.0
        %v1776 = vmax.f32 %v1135, 0.0
        %v1777 = vmax.f32 %v1178, 0.0
        %v1778 = vmax.f32 %v1221, 0.0
        %v1779 = vmax.f32 %v1264, 0.0
        %v1780 = vmax.f32 %v1307, 0.0
        %v1781 = vmax.f32 %v1350, 0.0
        %v1782 = vmax.f32 %v1393, 0.0
        %v1783 = vmax.f32 %v1436, 0.0
        %v1784 = vmax.f32 %v1479, 0.0
        %v1785 = vmax.f32 %v1522, 0.0
        %v1786 = vmax.f32 %v1565, 0.0
        %v1787 = vmax.f32 %v1608, 0.0
        %v1788 = vmax.f32 %v1651, 0.0
        %v1789 = vmax.f32 %v1694, 0.0
        %v1790 = vsel %vm1754, %v1772, 0.0
        %v1791 = vsel %vm1755, %v1773, 0.0
        %v1792 = vsel %vm1756, %v1774, 0.0
        %v1793 = vsel %vm1757, %v1775, 0.0
        %v1794 = vsel %vm1758, %v1776, 0.0
        %v1795 = vsel %vm1759, %v1777, 0.0
        %v1796 = vsel %vm1760, %v1778, 0.0
        %v1797 = vsel %vm1761, %v1779, 0.0
        %v1798 = vsel %vm1762, %v1780, 0.0
        %v1799 = vsel %vm1763, %v1781, 0.0
        %v1800 = vsel %vm1764, %v1782, 0.0
        %v1801 = vsel %vm1765, %v1783, 0.0
        %v1802 = vsel %vm1766, %v1784, 0.0
        %v1803 = vsel %vm1767, %v1785, 0.0
        %v1804 = vsel %vm1768, %v1786, 0.0
        %v1805 = vsel %vm1769, %v1787, 0.0
        %v1806 = vsel %vm1770, %v1788, 0.0
        %v1807 = vsel %vm1771, %v1789, 0.0
        %vm1808 = vcmask 130048
        %1809 = vst.msk [vmem:[#allocation4] sm:$0xff] %vm1808, %v1790
        %1810 = vst.msk [vmem:[#allocation4 + $0x8] sm:$0xff] %vm1808, %v1791
        %1811 = vst.msk [vmem:[#allocation4 + $0x10] sm:$0xff] %vm1808, %v1792
        %1812 = vst.msk [vmem:[#allocation4 + $0x18] sm:$0xff] %vm1808, %v1793
        %1813 = vst.msk [vmem:[#allocation4 + $0x20] sm:$0xff] %vm1808, %v1794
        %1814 = vst.msk [vmem:[#allocation4 + $0x28] sm:$0xff] %vm1808, %v1795
        %1815 = vst.msk [vmem:[#allocation4 + $0x30] sm:$0xff] %vm1808, %v1796
        %1816 = vst.msk [vmem:[#allocation4 + $0x38] sm:$0xff] %vm1808, %v1797
        %1817 = vst.msk [vmem:[#allocation4 + $0x40] sm:$0xff] %vm1808, %v1798
        %1818 = vst.msk [vmem:[#allocation4 + $0x48] sm:$0xff] %vm1808, %v1799
        %1819 = vst.msk [vmem:[#allocation4 + $0x50] sm:$0xff] %vm1808, %v1800
        %1820 = vst.msk [vmem:[#allocation4 + $0x58] sm:$0xff] %vm1808, %v1801
        %1821 = vst.msk [vmem:[#allocation4 + $0x60] sm:$0xff] %vm1808, %v1802
        %1822 = vst.msk [vmem:[#allocation4 + $0x68] sm:$0xff] %vm1808, %v1803
        %1823 = vst.msk [vmem:[#allocation4 + $0x70] sm:$0xff] %vm1808, %v1804
        %1824 = vst.msk [vmem:[#allocation4 + $0x78] sm:$0xff] %vm1808, %v1805
        %1825 = vst.msk [vmem:[#allocation4 + $0x80] sm:$0xff] %vm1808, %v1806
        %1826 = vst.msk [vmem:[#allocation4 + $0x88] sm:$0xff] %vm1808, %v1807
        %s1827 = sld [smem:[#allocation15]]
        %s1828 = scalar_lea.vmem [#allocation4], 8
        %v1829 = vld [vmem:[%s1828] sm:$0x1]
        %v1830 = vld [vmem:[%s1828 + $0x8] sm:$0x1]
        %v1831 = vld [vmem:[%s1828 + $0x10] sm:$0x1]
        %v1832 = vld [vmem:[%s1828 + $0x18] sm:$0x1]
        %v1833 = vld [vmem:[%s1828 + $0x20] sm:$0x1]
        %v1834 = vld [vmem:[%s1828 + $0x28] sm:$0x1]
        %v1835 = vld [vmem:[%s1828 + $0x30] sm:$0x1]
        %v1836 = vld [vmem:[%s1828 + $0x38] sm:$0x1]
        %v1837 = vld [vmem:[%s1828 + $0x40] sm:$0x1]
        %v1838 = vld [vmem:[%s1828 + $0x48] sm:$0x1]
        %v1839 = vld [vmem:[%s1828 + $0x50] sm:$0x1]
        %v1840 = vld [vmem:[%s1828 + $0x58] sm:$0x1]
        %v1841 = vld [vmem:[%s1828 + $0x60] sm:$0x1]
        %v1842 = vld [vmem:[%s1828 + $0x68] sm:$0x1]
        %v1843 = vld [vmem:[%s1828 + $0x70] sm:$0x1]
        %v1844 = vld [vmem:[%s1828 + $0x78] sm:$0x1]
        %v1845 = vstv %s1827
        %v1846 = vmul.f32 %v1845, %v1829
        %v1847 = vmul.f32 %v1845, %v1830
        %v1848 = vmul.f32 %v1845, %v1831
        %v1849 = vmul.f32 %v1845, %v1832
        %v1850 = vmul.f32 %v1845, %v1833
        %v1851 = vmul.f32 %v1845, %v1834
        %v1852 = vmul.f32 %v1845, %v1835
        %v1853 = vmul.f32 %v1845, %v1836
        %v1854 = vmul.f32 %v1845, %v1837
        %v1855 = vmul.f32 %v1845, %v1838
        %v1856 = vmul.f32 %v1845, %v1839
        %v1857 = vmul.f32 %v1845, %v1840
        %v1858 = vmul.f32 %v1845, %v1841
        %v1859 = vmul.f32 %v1845, %v1842
        %v1860 = vmul.f32 %v1845, %v1843
        %v1861 = vmul.f32 %v1845, %v1844
        %s1862 = sld [smem:[#allocation15 + $0x1]]
        %v1863 = vld [vmem:[%s1828 + $0x1] sm:$0x1]
        %v1864 = vld [vmem:[%s1828 + $0x9] sm:$0x1]
        %v1865 = vld [vmem:[%s1828 + $0x11] sm:$0x1]
        %v1866 = vld [vmem:[%s1828 + $0x19] sm:$0x1]
        %v1867 = vld [vmem:[%s1828 + $0x21] sm:$0x1]
        %v1868 = vld [vmem:[%s1828 + $0x29] sm:$0x1]
        %v1869 = vld [vmem:[%s1828 + $0x31] sm:$0x1]
        %v1870 = vld [vmem:[%s1828 + $0x39] sm:$0x1]
        %v1871 = vld [vmem:[%s1828 + $0x41] sm:$0x1]
        %v1872 = vld [vmem:[%s1828 + $0x49] sm:$0x1]
        %v1873 = vld [vmem:[%s1828 + $0x51] sm:$0x1]
        %v1874 = vld [vmem:[%s1828 + $0x59] sm:$0x1]
        %v1875 = vld [vmem:[%s1828 + $0x61] sm:$0x1]
        %v1876 = vld [vmem:[%s1828 + $0x69] sm:$0x1]
        %v1877 = vld [vmem:[%s1828 + $0x71] sm:$0x1]
        %v1878 = vld [vmem:[%s1828 + $0x79] sm:$0x1]
        %v1879 = vstv %s1862
        %v1880 = vmul.f32 %v1879, %v1863
        %v1881 = vmul.f32 %v1879, %v1864
        %v1882 = vmul.f32 %v1879, %v1865
        %v1883 = vmul.f32 %v1879, %v1866
        %v1884 = vmul.f32 %v1879, %v1867
        %v1885 = vmul.f32 %v1879, %v1868
        %v1886 = vmul.f32 %v1879, %v1869
        %v1887 = vmul.f32 %v1879, %v1870
        %v1888 = vmul.f32 %v1879, %v1871
        %v1889 = vmul.f32 %v1879, %v1872
        %v1890 = vmul.f32 %v1879, %v1873
        %v1891 = vmul.f32 %v1879, %v1874
        %v1892 = vmul.f32 %v1879, %v1875
        %v1893 = vmul.f32 %v1879, %v1876
        %v1894 = vmul.f32 %v1879, %v1877
        %v1895 = vmul.f32 %v1879, %v1878
        %v1896 = vadd.f32 %v1846, %v1880
        %v1897 = vadd.f32 %v1847, %v1881
        %v1898 = vadd.f32 %v1848, %v1882
        %v1899 = vadd.f32 %v1849, %v1883
        %v1900 = vadd.f32 %v1850, %v1884
        %v1901 = vadd.f32 %v1851, %v1885
        %v1902 = vadd.f32 %v1852, %v1886
        %v1903 = vadd.f32 %v1853, %v1887
        %v1904 = vadd.f32 %v1854, %v1888
        %v1905 = vadd.f32 %v1855, %v1889
        %v1906 = vadd.f32 %v1856, %v1890
        %v1907 = vadd.f32 %v1857, %v1891
        %v1908 = vadd.f32 %v1858, %v1892
        %v1909 = vadd.f32 %v1859, %v1893
        %v1910 = vadd.f32 %v1860, %v1894
        %v1911 = vadd.f32 %v1861, %v1895
        %s1912 = sld [smem:[#allocation15 + $0x2]]
        %v1913 = vld [vmem:[%s1828 + $0x2] sm:$0x1]
        %v1914 = vld [vmem:[%s1828 + $0xa] sm:$0x1]
        %v1915 = vld [vmem:[%s1828 + $0x12] sm:$0x1]
        %v1916 = vld [vmem:[%s1828 + $0x1a] sm:$0x1]
        %v1917 = vld [vmem:[%s1828 + $0x22] sm:$0x1]
        %v1918 = vld [vmem:[%s1828 + $0x2a] sm:$0x1]
        %v1919 = vld [vmem:[%s1828 + $0x32] sm:$0x1]
        %v1920 = vld [vmem:[%s1828 + $0x3a] sm:$0x1]
        %v1921 = vld [vmem:[%s1828 + $0x42] sm:$0x1]
        %v1922 = vld [vmem:[%s1828 + $0x4a] sm:$0x1]
        %v1923 = vld [vmem:[%s1828 + $0x52] sm:$0x1]
        %v1924 = vld [vmem:[%s1828 + $0x5a] sm:$0x1]
        %v1925 = vld [vmem:[%s1828 + $0x62] sm:$0x1]
        %v1926 = vld [vmem:[%s1828 + $0x6a] sm:$0x1]
        %v1927 = vld [vmem:[%s1828 + $0x72] sm:$0x1]
        %v1928 = vld [vmem:[%s1828 + $0x7a] sm:$0x1]
        %v1929 = vstv %s1912
        %v1930 = vmul.f32 %v1929, %v1913
        %v1931 = vmul.f32 %v1929, %v1914
        %v1932 = vmul.f32 %v1929, %v1915
        %v1933 = vmul.f32 %v1929, %v1916
        %v1934 = vmul.f32 %v1929, %v1917
        %v1935 = vmul.f32 %v1929, %v1918
        %v1936 = vmul.f32 %v1929, %v1919
        %v1937 = vmul.f32 %v1929, %v1920
        %v1938 = vmul.f32 %v1929, %v1921
        %v1939 = vmul.f32 %v1929, %v1922
        %v1940 = vmul.f32 %v1929, %v1923
        %v1941 = vmul.f32 %v1929, %v1924
        %v1942 = vmul.f32 %v1929, %v1925
        %v1943 = vmul.f32 %v1929, %v1926
        %v1944 = vmul.f32 %v1929, %v1927
        %v1945 = vmul.f32 %v1929, %v1928
        %v1946 = vadd.f32 %v1896, %v1930
        %v1947 = vadd.f32 %v1897, %v1931
        %v1948 = vadd.f32 %v1898, %v1932
        %v1949 = vadd.f32 %v1899, %v1933
        %v1950 = vadd.f32 %v1900, %v1934
        %v1951 = vadd.f32 %v1901, %v1935
        %v1952 = vadd.f32 %v1902, %v1936
        %v1953 = vadd.f32 %v1903, %v1937
        %v1954 = vadd.f32 %v1904, %v1938
        %v1955 = vadd.f32 %v1905, %v1939
        %v1956 = vadd.f32 %v1906, %v1940
        %v1957 = vadd.f32 %v1907, %v1941
        %v1958 = vadd.f32 %v1908, %v1942
        %v1959 = vadd.f32 %v1909, %v1943
        %v1960 = vadd.f32 %v1910, %v1944
        %v1961 = vadd.f32 %v1911, %v1945
        %s1962 = sld [smem:[#allocation15 + $0x3]]
        %v1963 = vld [vmem:[%s1828 + $0x3] sm:$0x1]
        %v1964 = vld [vmem:[%s1828 + $0xb] sm:$0x1]
        %v1965 = vld [vmem:[%s1828 + $0x13] sm:$0x1]
        %v1966 = vld [vmem:[%s1828 + $0x1b] sm:$0x1]
        %v1967 = vld [vmem:[%s1828 + $0x23] sm:$0x1]
        %v1968 = vld [vmem:[%s1828 + $0x2b] sm:$0x1]
        %v1969 = vld [vmem:[%s1828 + $0x33] sm:$0x1]
        %v1970 = vld [vmem:[%s1828 + $0x3b] sm:$0x1]
        %v1971 = vld [vmem:[%s1828 + $0x43] sm:$0x1]
        %v1972 = vld [vmem:[%s1828 + $0x4b] sm:$0x1]
        %v1973 = vld [vmem:[%s1828 + $0x53] sm:$0x1]
        %v1974 = vld [vmem:[%s1828 + $0x5b] sm:$0x1]
        %v1975 = vld [vmem:[%s1828 + $0x63] sm:$0x1]
        %v1976 = vld [vmem:[%s1828 + $0x6b] sm:$0x1]
        %v1977 = vld [vmem:[%s1828 + $0x73] sm:$0x1]
        %v1978 = vld [vmem:[%s1828 + $0x7b] sm:$0x1]
        %v1979 = vstv %s1962
        %v1980 = vmul.f32 %v1979, %v1963
        %v1981 = vmul.f32 %v1979, %v1964
        %v1982 = vmul.f32 %v1979, %v1965
        %v1983 = vmul.f32 %v1979, %v1966
        %v1984 = vmul.f32 %v1979, %v1967
        %v1985 = vmul.f32 %v1979, %v1968
        %v1986 = vmul.f32 %v1979, %v1969
        %v1987 = vmul.f32 %v1979, %v1970
        %v1988 = vmul.f32 %v1979, %v1971
        %v1989 = vmul.f32 %v1979, %v1972
        %v1990 = vmul.f32 %v1979, %v1973
        %v1991 = vmul.f32 %v1979, %v1974
        %v1992 = vmul.f32 %v1979, %v1975
        %v1993 = vmul.f32 %v1979, %v1976
        %v1994 = vmul.f32 %v1979, %v1977
        %v1995 = vmul.f32 %v1979, %v1978
        %v1996 = vadd.f32 %v1946, %v1980
        %v1997 = vadd.f32 %v1947, %v1981
        %v1998 = vadd.f32 %v1948, %v1982
        %v1999 = vadd.f32 %v1949, %v1983
        %v2000 = vadd.f32 %v1950, %v1984
        %v2001 = vadd.f32 %v1951, %v1985
        %v2002 = vadd.f32 %v1952, %v1986
        %v2003 = vadd.f32 %v1953, %v1987
        %v2004 = vadd.f32 %v1954, %v1988
        %v2005 = vadd.f32 %v1955, %v1989
        %v2006 = vadd.f32 %v1956, %v1990
        %v2007 = vadd.f32 %v1957, %v1991
        %v2008 = vadd.f32 %v1958, %v1992
        %v2009 = vadd.f32 %v1959, %v1993
        %v2010 = vadd.f32 %v1960, %v1994
        %v2011 = vadd.f32 %v1961, %v1995
        %s2012 = sld [smem:[#allocation15 + $0x4]]
        %v2013 = vld [vmem:[%s1828 + $0x4] sm:$0x1]
        %v2014 = vld [vmem:[%s1828 + $0xc] sm:$0x1]
        %v2015 = vld [vmem:[%s1828 + $0x14] sm:$0x1]
        %v2016 = vld [vmem:[%s1828 + $0x1c] sm:$0x1]
        %v2017 = vld [vmem:[%s1828 + $0x24] sm:$0x1]
        %v2018 = vld [vmem:[%s1828 + $0x2c] sm:$0x1]
        %v2019 = vld [vmem:[%s1828 + $0x34] sm:$0x1]
        %v2020 = vld [vmem:[%s1828 + $0x3c] sm:$0x1]
        %v2021 = vld [vmem:[%s1828 + $0x44] sm:$0x1]
        %v2022 = vld [vmem:[%s1828 + $0x4c] sm:$0x1]
        %v2023 = vld [vmem:[%s1828 + $0x54] sm:$0x1]
        %v2024 = vld [vmem:[%s1828 + $0x5c] sm:$0x1]
        %v2025 = vld [vmem:[%s1828 + $0x64] sm:$0x1]
        %v2026 = vld [vmem:[%s1828 + $0x6c] sm:$0x1]
        %v2027 = vld [vmem:[%s1828 + $0x74] sm:$0x1]
        %v2028 = vld [vmem:[%s1828 + $0x7c] sm:$0x1]
        %v2029 = vstv %s2012
        %v2030 = vmul.f32 %v2029, %v2013
        %v2031 = vmul.f32 %v2029, %v2014
        %v2032 = vmul.f32 %v2029, %v2015
        %v2033 = vmul.f32 %v2029, %v2016
        %v2034 = vmul.f32 %v2029, %v2017
        %v2035 = vmul.f32 %v2029, %v2018
        %v2036 = vmul.f32 %v2029, %v2019
        %v2037 = vmul.f32 %v2029, %v2020
        %v2038 = vmul.f32 %v2029, %v2021
        %v2039 = vmul.f32 %v2029, %v2022
        %v2040 = vmul.f32 %v2029, %v2023
        %v2041 = vmul.f32 %v2029, %v2024
        %v2042 = vmul.f32 %v2029, %v2025
        %v2043 = vmul.f32 %v2029, %v2026
        %v2044 = vmul.f32 %v2029, %v2027
        %v2045 = vmul.f32 %v2029, %v2028
        %v2046 = vadd.f32 %v1996, %v2030
        %v2047 = vadd.f32 %v1997, %v2031
        %v2048 = vadd.f32 %v1998, %v2032
        %v2049 = vadd.f32 %v1999, %v2033
        %v2050 = vadd.f32 %v2000, %v2034
        %v2051 = vadd.f32 %v2001, %v2035
        %v2052 = vadd.f32 %v2002, %v2036
        %v2053 = vadd.f32 %v2003, %v2037
        %v2054 = vadd.f32 %v2004, %v2038
        %v2055 = vadd.f32 %v2005, %v2039
        %v2056 = vadd.f32 %v2006, %v2040
        %v2057 = vadd.f32 %v2007, %v2041
        %v2058 = vadd.f32 %v2008, %v2042
        %v2059 = vadd.f32 %v2009, %v2043
        %v2060 = vadd.f32 %v2010, %v2044
        %v2061 = vadd.f32 %v2011, %v2045
        %s2062 = sld [smem:[#allocation15 + $0x5]]
        %v2063 = vld [vmem:[%s1828 + $0x5] sm:$0x1]
        %v2064 = vld [vmem:[%s1828 + $0xd] sm:$0x1]
        %v2065 = vld [vmem:[%s1828 + $0x15] sm:$0x1]
        %v2066 = vld [vmem:[%s1828 + $0x1d] sm:$0x1]
        %v2067 = vld [vmem:[%s1828 + $0x25] sm:$0x1]
        %v2068 = vld [vmem:[%s1828 + $0x2d] sm:$0x1]
        %v2069 = vld [vmem:[%s1828 + $0x35] sm:$0x1]
        %v2070 = vld [vmem:[%s1828 + $0x3d] sm:$0x1]
        %v2071 = vld [vmem:[%s1828 + $0x45] sm:$0x1]
        %v2072 = vld [vmem:[%s1828 + $0x4d] sm:$0x1]
        %v2073 = vld [vmem:[%s1828 + $0x55] sm:$0x1]
        %v2074 = vld [vmem:[%s1828 + $0x5d] sm:$0x1]
        %v2075 = vld [vmem:[%s1828 + $0x65] sm:$0x1]
        %v2076 = vld [vmem:[%s1828 + $0x6d] sm:$0x1]
        %v2077 = vld [vmem:[%s1828 + $0x75] sm:$0x1]
        %v2078 = vld [vmem:[%s1828 + $0x7d] sm:$0x1]
        %v2079 = vstv %s2062
        %v2080 = vmul.f32 %v2079, %v2063
        %v2081 = vmul.f32 %v2079, %v2064
        %v2082 = vmul.f32 %v2079, %v2065
        %v2083 = vmul.f32 %v2079, %v2066
        %v2084 = vmul.f32 %v2079, %v2067
        %v2085 = vmul.f32 %v2079, %v2068
        %v2086 = vmul.f32 %v2079, %v2069
        %v2087 = vmul.f32 %v2079, %v2070
        %v2088 = vmul.f32 %v2079, %v2071
        %v2089 = vmul.f32 %v2079, %v2072
        %v2090 = vmul.f32 %v2079, %v2073
        %v2091 = vmul.f32 %v2079, %v2074
        %v2092 = vmul.f32 %v2079, %v2075
        %v2093 = vmul.f32 %v2079, %v2076
        %v2094 = vmul.f32 %v2079, %v2077
        %v2095 = vmul.f32 %v2079, %v2078
        %v2096 = vadd.f32 %v2046, %v2080
        %v2097 = vadd.f32 %v2047, %v2081
        %v2098 = vadd.f32 %v2048, %v2082
        %v2099 = vadd.f32 %v2049, %v2083
        %v2100 = vadd.f32 %v2050, %v2084
        %v2101 = vadd.f32 %v2051, %v2085
        %v2102 = vadd.f32 %v2052, %v2086
        %v2103 = vadd.f32 %v2053, %v2087
        %v2104 = vadd.f32 %v2054, %v2088
        %v2105 = vadd.f32 %v2055, %v2089
        %v2106 = vadd.f32 %v2056, %v2090
        %v2107 = vadd.f32 %v2057, %v2091
        %v2108 = vadd.f32 %v2058, %v2092
        %v2109 = vadd.f32 %v2059, %v2093
        %v2110 = vadd.f32 %v2060, %v2094
        %v2111 = vadd.f32 %v2061, %v2095
        %s2112 = sld [smem:[#allocation15 + $0x6]]
        %v2113 = vld [vmem:[%s1828 + $0x6] sm:$0x1]
        %v2114 = vld [vmem:[%s1828 + $0xe] sm:$0x1]
        %v2115 = vld [vmem:[%s1828 + $0x16] sm:$0x1]
        %v2116 = vld [vmem:[%s1828 + $0x1e] sm:$0x1]
        %v2117 = vld [vmem:[%s1828 + $0x26] sm:$0x1]
        %v2118 = vld [vmem:[%s1828 + $0x2e] sm:$0x1]
        %v2119 = vld [vmem:[%s1828 + $0x36] sm:$0x1]
        %v2120 = vld [vmem:[%s1828 + $0x3e] sm:$0x1]
        %v2121 = vld [vmem:[%s1828 + $0x46] sm:$0x1]
        %v2122 = vld [vmem:[%s1828 + $0x4e] sm:$0x1]
        %v2123 = vld [vmem:[%s1828 + $0x56] sm:$0x1]
        %v2124 = vld [vmem:[%s1828 + $0x5e] sm:$0x1]
        %v2125 = vld [vmem:[%s1828 + $0x66] sm:$0x1]
        %v2126 = vld [vmem:[%s1828 + $0x6e] sm:$0x1]
        %v2127 = vld [vmem:[%s1828 + $0x76] sm:$0x1]
        %v2128 = vld [vmem:[%s1828 + $0x7e] sm:$0x1]
        %v2129 = vstv %s2112
        %v2130 = vmul.f32 %v2129, %v2113
        %v2131 = vmul.f32 %v2129, %v2114
        %v2132 = vmul.f32 %v2129, %v2115
        %v2133 = vmul.f32 %v2129, %v2116
        %v2134 = vmul.f32 %v2129, %v2117
        %v2135 = vmul.f32 %v2129, %v2118
        %v2136 = vmul.f32 %v2129, %v2119
        %v2137 = vmul.f32 %v2129, %v2120
        %v2138 = vmul.f32 %v2129, %v2121
        %v2139 = vmul.f32 %v2129, %v2122
        %v2140 = vmul.f32 %v2129, %v2123
        %v2141 = vmul.f32 %v2129, %v2124
        %v2142 = vmul.f32 %v2129, %v2125
        %v2143 = vmul.f32 %v2129, %v2126
        %v2144 = vmul.f32 %v2129, %v2127
        %v2145 = vmul.f32 %v2129, %v2128
        %v2146 = vadd.f32 %v2096, %v2130
        %v2147 = vadd.f32 %v2097, %v2131
        %v2148 = vadd.f32 %v2098, %v2132
        %v2149 = vadd.f32 %v2099, %v2133
        %v2150 = vadd.f32 %v2100, %v2134
        %v2151 = vadd.f32 %v2101, %v2135
        %v2152 = vadd.f32 %v2102, %v2136
        %v2153 = vadd.f32 %v2103, %v2137
        %v2154 = vadd.f32 %v2104, %v2138
        %v2155 = vadd.f32 %v2105, %v2139
        %v2156 = vadd.f32 %v2106, %v2140
        %v2157 = vadd.f32 %v2107, %v2141
        %v2158 = vadd.f32 %v2108, %v2142
        %v2159 = vadd.f32 %v2109, %v2143
        %v2160 = vadd.f32 %v2110, %v2144
        %v2161 = vadd.f32 %v2111, %v2145
        %s2162 = sld [smem:[#allocation15 + $0x7]]
        %v2163 = vld [vmem:[%s1828 + $0x7] sm:$0x1]
        %v2164 = vld [vmem:[%s1828 + $0xf] sm:$0x1]
        %v2165 = vld [vmem:[%s1828 + $0x17] sm:$0x1]
        %v2166 = vld [vmem:[%s1828 + $0x1f] sm:$0x1]
        %v2167 = vld [vmem:[%s1828 + $0x27] sm:$0x1]
        %v2168 = vld [vmem:[%s1828 + $0x2f] sm:$0x1]
        %v2169 = vld [vmem:[%s1828 + $0x37] sm:$0x1]
        %v2170 = vld [vmem:[%s1828 + $0x3f] sm:$0x1]
        %v2171 = vld [vmem:[%s1828 + $0x47] sm:$0x1]
        %v2172 = vld [vmem:[%s1828 + $0x4f] sm:$0x1]
        %v2173 = vld [vmem:[%s1828 + $0x57] sm:$0x1]
        %v2174 = vld [vmem:[%s1828 + $0x5f] sm:$0x1]
        %v2175 = vld [vmem:[%s1828 + $0x67] sm:$0x1]
        %v2176 = vld [vmem:[%s1828 + $0x6f] sm:$0x1]
        %v2177 = vld [vmem:[%s1828 + $0x77] sm:$0x1]
        %v2178 = vld [vmem:[%s1828 + $0x7f] sm:$0x1]
        %v2179 = vstv %s2162
        %v2180 = vmul.f32 %v2179, %v2163
        %v2181 = vmul.f32 %v2179, %v2164
        %v2182 = vmul.f32 %v2179, %v2165
        %v2183 = vmul.f32 %v2179, %v2166
        %v2184 = vmul.f32 %v2179, %v2167
        %v2185 = vmul.f32 %v2179, %v2168
        %v2186 = vmul.f32 %v2179, %v2169
        %v2187 = vmul.f32 %v2179, %v2170
        %v2188 = vmul.f32 %v2179, %v2171
        %v2189 = vmul.f32 %v2179, %v2172
        %v2190 = vmul.f32 %v2179, %v2173
        %v2191 = vmul.f32 %v2179, %v2174
        %v2192 = vmul.f32 %v2179, %v2175
        %v2193 = vmul.f32 %v2179, %v2176
        %v2194 = vmul.f32 %v2179, %v2177
        %v2195 = vmul.f32 %v2179, %v2178
        %v2196 = vadd.f32 %v2146, %v2180
        %v2197 = vadd.f32 %v2147, %v2181
        %v2198 = vadd.f32 %v2148, %v2182
        %v2199 = vadd.f32 %v2149, %v2183
        %v2200 = vadd.f32 %v2150, %v2184
        %v2201 = vadd.f32 %v2151, %v2185
        %v2202 = vadd.f32 %v2152, %v2186
        %v2203 = vadd.f32 %v2153, %v2187
        %v2204 = vadd.f32 %v2154, %v2188
        %v2205 = vadd.f32 %v2155, %v2189
        %v2206 = vadd.f32 %v2156, %v2190
        %v2207 = vadd.f32 %v2157, %v2191
        %v2208 = vadd.f32 %v2158, %v2192
        %v2209 = vadd.f32 %v2159, %v2193
        %v2210 = vadd.f32 %v2160, %v2194
        %v2211 = vadd.f32 %v2161, %v2195
        %s2212 = sld [smem:[#allocation15 + $0x8]]
        %v2213 = vstv %s2212
        %v2214 = vadd.f32 %v2196, %v2213
        %v2215 = vadd.f32 %v2197, %v2213
        %v2216 = vadd.f32 %v2198, %v2213
        %v2217 = vadd.f32 %v2199, %v2213
        %v2218 = vadd.f32 %v2200, %v2213
        %v2219 = vadd.f32 %v2201, %v2213
        %v2220 = vadd.f32 %v2202, %v2213
        %v2221 = vadd.f32 %v2203, %v2213
        %v2222 = vadd.f32 %v2204, %v2213
        %v2223 = vadd.f32 %v2205, %v2213
        %v2224 = vadd.f32 %v2206, %v2213
        %v2225 = vadd.f32 %v2207, %v2213
        %v2226 = vadd.f32 %v2208, %v2213
        %v2227 = vadd.f32 %v2209, %v2213
        %v2228 = vadd.f32 %v2210, %v2213
        %v2229 = vadd.f32 %v2211, %v2213
        %v2230 = vld [vmem:[#allocation4] sm:$0xff]
        %v2231 = vld [vmem:[#allocation4 + $0x8] sm:$0xff]
        %v2232 = vld [vmem:[#allocation4 + $0x10] sm:$0xff]
        %v2233 = vld [vmem:[#allocation4 + $0x18] sm:$0xff]
        %v2234 = vld [vmem:[#allocation4 + $0x20] sm:$0xff]
        %v2235 = vld [vmem:[#allocation4 + $0x28] sm:$0xff]
        %v2236 = vld [vmem:[#allocation4 + $0x30] sm:$0xff]
        %v2237 = vld [vmem:[#allocation4 + $0x38] sm:$0xff]
        %v2238 = vld [vmem:[#allocation4 + $0x40] sm:$0xff]
        %v2239 = vld [vmem:[#allocation4 + $0x48] sm:$0xff]
        %v2240 = vld [vmem:[#allocation4 + $0x50] sm:$0xff]
        %v2241 = vld [vmem:[#allocation4 + $0x58] sm:$0xff]
        %v2242 = vld [vmem:[#allocation4 + $0x60] sm:$0xff]
        %v2243 = vld [vmem:[#allocation4 + $0x68] sm:$0xff]
        %v2244 = vld [vmem:[#allocation4 + $0x70] sm:$0xff]
        %v2245 = vld [vmem:[#allocation4 + $0x78] sm:$0xff]
        %v2246 = vld [vmem:[#allocation4 + $0x80] sm:$0xff]
        %v2247 = vld [vmem:[#allocation4 + $0x88] sm:$0xff]
        %2248 = vrot.lane.b32.xlu0 %v2230, 16
        %v2249 = vpop.permute.xlu0 %2248
        %v2250 = vsel %vm334, %v2249, %v2230
        %2251 = vrot.lane.b32.xlu0 %v2231, 16
        %v2252 = vpop.permute.xlu0 %2251
        %v2253 = vsel %vm334, %v2252, %v2231
        %2254 = vrot.lane.b32.xlu0 %v2232, 16
        %v2255 = vpop.permute.xlu0 %2254
        %v2256 = vsel %vm334, %v2255, %v2232
        %2257 = vrot.lane.b32.xlu0 %v2233, 16
        %v2258 = vpop.permute.xlu0 %2257
        %v2259 = vsel %vm334, %v2258, %v2233
        %2260 = vrot.lane.b32.xlu0 %v2234, 16
        %v2261 = vpop.permute.xlu0 %2260
        %v2262 = vsel %vm334, %v2261, %v2234
        %2263 = vrot.lane.b32.xlu0 %v2235, 16
        %v2264 = vpop.permute.xlu0 %2263
        %v2265 = vsel %vm334, %v2264, %v2235
        %2266 = vrot.lane.b32.xlu0 %v2236, 16
        %v2267 = vpop.permute.xlu0 %2266
        %v2268 = vsel %vm334, %v2267, %v2236
        %2269 = vrot.lane.b32.xlu0 %v2237, 16
        %v2270 = vpop.permute.xlu0 %2269
        %v2271 = vsel %vm334, %v2270, %v2237
        %2272 = vrot.lane.b32.xlu0 %v2238, 16
        %v2273 = vpop.permute.xlu0 %2272
        %v2274 = vsel %vm334, %v2273, %v2238
        %2275 = vrot.lane.b32.xlu0 %v2239, 16
        %v2276 = vpop.permute.xlu0 %2275
        %v2277 = vsel %vm334, %v2276, %v2239
        %2278 = vrot.lane.b32.xlu0 %v2240, 16
        %v2279 = vpop.permute.xlu0 %2278
        %v2280 = vsel %vm334, %v2279, %v2240
        %2281 = vrot.lane.b32.xlu0 %v2241, 16
        %v2282 = vpop.permute.xlu0 %2281
        %v2283 = vsel %vm334, %v2282, %v2241
        %2284 = vrot.lane.b32.xlu0 %v2242, 16
        %v2285 = vpop.permute.xlu0 %2284
        %v2286 = vsel %vm334, %v2285, %v2242
        %2287 = vrot.lane.b32.xlu0 %v2243, 16
        %v2288 = vpop.permute.xlu0 %2287
        %v2289 = vsel %vm334, %v2288, %v2243
        %2290 = vrot.lane.b32.xlu0 %v2244, 16
        %v2291 = vpop.permute.xlu0 %2290
        %v2292 = vsel %vm334, %v2291, %v2244
        %2293 = vrot.lane.b32.xlu0 %v2245, 16
        %v2294 = vpop.permute.xlu0 %2293
        %v2295 = vsel %vm334, %v2294, %v2245
        %2296 = vrot.lane.b32.xlu0 %v2246, 16
        %v2297 = vpop.permute.xlu0 %2296
        %v2298 = vsel %vm334, %v2297, %v2246
        %2299 = vrot.lane.b32.xlu0 %v2247, 16
        %v2300 = vpop.permute.xlu0 %2299
        %v2301 = vsel %vm334, %v2300, %v2247
        %2302 = vrot.lane.b32.xlu0 %v2250, 16
        %v2303 = vpop.permute.xlu0 %2302
        %2304 = vrot.lane.b32.xlu0 %v2253, 16
        %v2305 = vpop.permute.xlu0 %2304
        %2306 = vrot.lane.b32.xlu0 %v2256, 16
        %v2307 = vpop.permute.xlu0 %2306
        %2308 = vrot.lane.b32.xlu0 %v2259, 16
        %v2309 = vpop.permute.xlu0 %2308
        %2310 = vrot.lane.b32.xlu0 %v2262, 16
        %v2311 = vpop.permute.xlu0 %2310
        %2312 = vrot.lane.b32.xlu0 %v2265, 16
        %v2313 = vpop.permute.xlu0 %2312
        %2314 = vrot.lane.b32.xlu0 %v2268, 16
        %v2315 = vpop.permute.xlu0 %2314
        %2316 = vrot.lane.b32.xlu0 %v2271, 16
        %v2317 = vpop.permute.xlu0 %2316
        %2318 = vrot.lane.b32.xlu0 %v2274, 16
        %v2319 = vpop.permute.xlu0 %2318
        %2320 = vrot.lane.b32.xlu0 %v2277, 16
        %v2321 = vpop.permute.xlu0 %2320
        %2322 = vrot.lane.b32.xlu0 %v2280, 16
        %v2323 = vpop.permute.xlu0 %2322
        %2324 = vrot.lane.b32.xlu0 %v2283, 16
        %v2325 = vpop.permute.xlu0 %2324
        %2326 = vrot.lane.b32.xlu0 %v2286, 16
        %v2327 = vpop.permute.xlu0 %2326
        %2328 = vrot.lane.b32.xlu0 %v2289, 16
        %v2329 = vpop.permute.xlu0 %2328
        %2330 = vrot.lane.b32.xlu0 %v2292, 16
        %v2331 = vpop.permute.xlu0 %2330
        %2332 = vrot.lane.b32.xlu0 %v2295, 16
        %v2333 = vpop.permute.xlu0 %2332
        %2334 = vrot.lane.b32.xlu0 %v2298, 16
        %v2335 = vpop.permute.xlu0 %2334
        %2336 = vrot.lane.b32.xlu0 %v2301, 16
        %v2337 = vpop.permute.xlu0 %2336
        %v2338 = vsel %vm334, %v2303, %v2230
        %v2339 = vsel %vm334, %v2305, %v2231
        %v2340 = vsel %vm334, %v2307, %v2232
        %v2341 = vsel %vm334, %v2309, %v2233
        %v2342 = vsel %vm334, %v2311, %v2234
        %v2343 = vsel %vm334, %v2313, %v2235
        %v2344 = vsel %vm334, %v2315, %v2236
        %v2345 = vsel %vm334, %v2317, %v2237
        %v2346 = vsel %vm334, %v2319, %v2238
        %v2347 = vsel %vm334, %v2321, %v2239
        %v2348 = vsel %vm334, %v2323, %v2240
        %v2349 = vsel %vm334, %v2325, %v2241
        %v2350 = vsel %vm334, %v2327, %v2242
        %v2351 = vsel %vm334, %v2329, %v2243
        %v2352 = vsel %vm334, %v2331, %v2244
        %v2353 = vsel %vm334, %v2333, %v2245
        %v2354 = vsel %vm334, %v2335, %v2246
        %v2355 = vsel %vm334, %v2337, %v2247
        %2374 = vrot.lane.b32.xlu0 %v2338, 113
        %v2375 = vpop.permute.xlu0 %2374
        %2376 = vrot.lane.b32.xlu0 %v2339, 113
        %v2377 = vpop.permute.xlu0 %2376
        %2378 = vrot.lane.b32.xlu0 %v2340, 113
        %v2379 = vpop.permute.xlu0 %2378
        %2380 = vrot.lane.b32.xlu0 %v2341, 113
        %v2381 = vpop.permute.xlu0 %2380
        %2382 = vrot.lane.b32.xlu0 %v2342, 113
        %v2383 = vpop.permute.xlu0 %2382
        %2384 = vrot.lane.b32.xlu0 %v2343, 113
        %v2385 = vpop.permute.xlu0 %2384
        %2386 = vrot.lane.b32.xlu0 %v2344, 113
        %v2387 = vpop.permute.xlu0 %2386
        %2388 = vrot.lane.b32.xlu0 %v2345, 113
        %v2389 = vpop.permute.xlu0 %2388
        %2390 = vrot.lane.b32.xlu0 %v2346, 113
        %v2391 = vpop.permute.xlu0 %2390
        %2392 = vrot.lane.b32.xlu0 %v2347, 113
        %v2393 = vpop.permute.xlu0 %2392
        %2394 = vrot.lane.b32.xlu0 %v2348, 113
        %v2395 = vpop.permute.xlu0 %2394
        %2396 = vrot.lane.b32.xlu0 %v2349, 113
        %v2397 = vpop.permute.xlu0 %2396
        %2398 = vrot.lane.b32.xlu0 %v2350, 113
        %v2399 = vpop.permute.xlu0 %2398
        %2400 = vrot.lane.b32.xlu0 %v2351, 113
        %v2401 = vpop.permute.xlu0 %2400
        %2402 = vrot.lane.b32.xlu0 %v2352, 113
        %v2403 = vpop.permute.xlu0 %2402
        %2404 = vrot.lane.b32.xlu0 %v2353, 113
        %v2405 = vpop.permute.xlu0 %2404
        %2406 = vrot.lane.b32.xlu0 %v2354, 113
        %v2407 = vpop.permute.xlu0 %2406
        %2408 = vrot.lane.b32.xlu0 %v2355, 113
        %v2409 = vpop.permute.xlu0 %2408
        %v2428 = vsel %vm457, 0.0, %v2375
        %v2429 = vsel %vm457, 0.0, %v2377
        %v2430 = vsel %vm457, 0.0, %v2379
        %v2431 = vsel %vm457, 0.0, %v2381
        %v2432 = vsel %vm457, 0.0, %v2383
        %v2433 = vsel %vm457, 0.0, %v2385
        %v2434 = vsel %vm457, 0.0, %v2387
        %v2435 = vsel %vm457, 0.0, %v2389
        %v2436 = vsel %vm457, 0.0, %v2391
        %v2437 = vsel %vm457, 0.0, %v2393
        %v2438 = vsel %vm457, 0.0, %v2395
        %v2439 = vsel %vm457, 0.0, %v2397
        %v2440 = vsel %vm457, 0.0, %v2399
        %v2441 = vsel %vm457, 0.0, %v2401
        %v2442 = vsel %vm457, 0.0, %v2403
        %v2443 = vsel %vm457, 0.0, %v2405
        %v2444 = vsel %vm457, 0.0, %v2407
        %v2445 = vsel %vm457, 0.0, %v2409
        %2446 = vst.msk [vmem:[#allocation3] sm:$0xff] %vm1808, %v2428
        %2447 = vst.msk [vmem:[#allocation3 + $0x48] sm:$0xff] %vm1808, %v2429
        %2448 = vst.msk [vmem:[#allocation3 + $0x90] sm:$0xff] %vm1808, %v2430
        %2449 = vst.msk [vmem:[#allocation3 + $0xd8] sm:$0xff] %vm1808, %v2431
        %2450 = vst.msk [vmem:[#allocation3 + $0x120] sm:$0xff] %vm1808, %v2432
        %2451 = vst.msk [vmem:[#allocation3 + $0x168] sm:$0xff] %vm1808, %v2433
        %2452 = vst.msk [vmem:[#allocation3 + $0x1b0] sm:$0xff] %vm1808, %v2434
        %2453 = vst.msk [vmem:[#allocation3 + $0x1f8] sm:$0xff] %vm1808, %v2435
        %2454 = vst.msk [vmem:[#allocation3 + $0x240] sm:$0xff] %vm1808, %v2436
        %2455 = vst.msk [vmem:[#allocation3 + $0x288] sm:$0xff] %vm1808, %v2437
        %2456 = vst.msk [vmem:[#allocation3 + $0x2d0] sm:$0xff] %vm1808, %v2438
        %2457 = vst.msk [vmem:[#allocation3 + $0x318] sm:$0xff] %vm1808, %v2439
        %2458 = vst.msk [vmem:[#allocation3 + $0x360] sm:$0xff] %vm1808, %v2440
        %2459 = vst.msk [vmem:[#allocation3 + $0x3a8] sm:$0xff] %vm1808, %v2441
        %2460 = vst.msk [vmem:[#allocation3 + $0x3f0] sm:$0xff] %vm1808, %v2442
        %2461 = vst.msk [vmem:[#allocation3 + $0x438] sm:$0xff] %vm1808, %v2443
        %2462 = vst.msk [vmem:[#allocation3 + $0x18] sm:$0xff] %vm1808, %v2429
        %2463 = vst.msk [vmem:[#allocation3 + $0x60] sm:$0xff] %vm1808, %v2430
        %2464 = vst.msk [vmem:[#allocation3 + $0xa8] sm:$0xff] %vm1808, %v2431
        %2465 = vst.msk [vmem:[#allocation3 + $0xf0] sm:$0xff] %vm1808, %v2432
        %2466 = vst.msk [vmem:[#allocation3 + $0x138] sm:$0xff] %vm1808, %v2433
        %2467 = vst.msk [vmem:[#allocation3 + $0x180] sm:$0xff] %vm1808, %v2434
        %2468 = vst.msk [vmem:[#allocation3 + $0x1c8] sm:$0xff] %vm1808, %v2435
        %2469 = vst.msk [vmem:[#allocation3 + $0x210] sm:$0xff] %vm1808, %v2436
        %2470 = vst.msk [vmem:[#allocation3 + $0x258] sm:$0xff] %vm1808, %v2437
        %2471 = vst.msk [vmem:[#allocation3 + $0x2a0] sm:$0xff] %vm1808, %v2438
        %2472 = vst.msk [vmem:[#allocation3 + $0x2e8] sm:$0xff] %vm1808, %v2439
        %2473 = vst.msk [vmem:[#allocation3 + $0x330] sm:$0xff] %vm1808, %v2440
        %2474 = vst.msk [vmem:[#allocation3 + $0x378] sm:$0xff] %vm1808, %v2441
        %2475 = vst.msk [vmem:[#allocation3 + $0x3c0] sm:$0xff] %vm1808, %v2442
        %2476 = vst.msk [vmem:[#allocation3 + $0x408] sm:$0xff] %vm1808, %v2443
        %2477 = vst.msk [vmem:[#allocation3 + $0x450] sm:$0xff] %vm1808, %v2444
        %2478 = vst.msk [vmem:[#allocation3 + $0x30] sm:$0xff] %vm1808, %v2430
        %2479 = vst.msk [vmem:[#allocation3 + $0x78] sm:$0xff] %vm1808, %v2431
        %2480 = vst.msk [vmem:[#allocation3 + $0xc0] sm:$0xff] %vm1808, %v2432
        %2481 = vst.msk [vmem:[#allocation3 + $0x108] sm:$0xff] %vm1808, %v2433
        %2482 = vst.msk [vmem:[#allocation3 + $0x150] sm:$0xff] %vm1808, %v2434
        %2483 = vst.msk [vmem:[#allocation3 + $0x198] sm:$0xff] %vm1808, %v2435
        %2484 = vst.msk [vmem:[#allocation3 + $0x1e0] sm:$0xff] %vm1808, %v2436
        %2485 = vst.msk [vmem:[#allocation3 + $0x228] sm:$0xff] %vm1808, %v2437
        %2486 = vst.msk [vmem:[#allocation3 + $0x270] sm:$0xff] %vm1808, %v2438
        %2487 = vst.msk [vmem:[#allocation3 + $0x2b8] sm:$0xff] %vm1808, %v2439
        %2488 = vst.msk [vmem:[#allocation3 + $0x300] sm:$0xff] %vm1808, %v2440
        %2489 = vst.msk [vmem:[#allocation3 + $0x348] sm:$0xff] %vm1808, %v2441
        %2490 = vst.msk [vmem:[#allocation3 + $0x390] sm:$0xff] %vm1808, %v2442
        %2491 = vst.msk [vmem:[#allocation3 + $0x3d8] sm:$0xff] %vm1808, %v2443
        %2492 = vst.msk [vmem:[#allocation3 + $0x420] sm:$0xff] %vm1808, %v2444
        %2493 = vst.msk [vmem:[#allocation3 + $0x468] sm:$0xff] %vm1808, %v2445
        %2494 = vst.msk [vmem:[#allocation3 + $0x8] sm:$0xff] %vm1808, %v2230
        %2495 = vst.msk [vmem:[#allocation3 + $0x50] sm:$0xff] %vm1808, %v2231
        %2496 = vst.msk [vmem:[#allocation3 + $0x98] sm:$0xff] %vm1808, %v2232
        %2497 = vst.msk [vmem:[#allocation3 + $0xe0] sm:$0xff] %vm1808, %v2233
        %2498 = vst.msk [vmem:[#allocation3 + $0x128] sm:$0xff] %vm1808, %v2234
        %2499 = vst.msk [vmem:[#allocation3 + $0x170] sm:$0xff] %vm1808, %v2235
        %2500 = vst.msk [vmem:[#allocation3 + $0x1b8] sm:$0xff] %vm1808, %v2236
        %2501 = vst.msk [vmem:[#allocation3 + $0x200] sm:$0xff] %vm1808, %v2237
        %2502 = vst.msk [vmem:[#allocation3 + $0x248] sm:$0xff] %vm1808, %v2238
        %2503 = vst.msk [vmem:[#allocation3 + $0x290] sm:$0xff] %vm1808, %v2239
        %2504 = vst.msk [vmem:[#allocation3 + $0x2d8] sm:$0xff] %vm1808, %v2240
        %2505 = vst.msk [vmem:[#allocation3 + $0x320] sm:$0xff] %vm1808, %v2241
        %2506 = vst.msk [vmem:[#allocation3 + $0x368] sm:$0xff] %vm1808, %v2242
        %2507 = vst.msk [vmem:[#allocation3 + $0x3b0] sm:$0xff] %vm1808, %v2243
        %2508 = vst.msk [vmem:[#allocation3 + $0x3f8] sm:$0xff] %vm1808, %v2244
        %2509 = vst.msk [vmem:[#allocation3 + $0x440] sm:$0xff] %vm1808, %v2245
        %2510 = vst.msk [vmem:[#allocation3 + $0x20] sm:$0xff] %vm1808, %v2231
        %2511 = vst.msk [vmem:[#allocation3 + $0x68] sm:$0xff] %vm1808, %v2232
        %2512 = vst.msk [vmem:[#allocation3 + $0xb0] sm:$0xff] %vm1808, %v2233
        %2513 = vst.msk [vmem:[#allocation3 + $0xf8] sm:$0xff] %vm1808, %v2234
        %2514 = vst.msk [vmem:[#allocation3 + $0x140] sm:$0xff] %vm1808, %v2235
        %2515 = vst.msk [vmem:[#allocation3 + $0x188] sm:$0xff] %vm1808, %v2236
        %2516 = vst.msk [vmem:[#allocation3 + $0x1d0] sm:$0xff] %vm1808, %v2237
        %2517 = vst.msk [vmem:[#allocation3 + $0x218] sm:$0xff] %vm1808, %v2238
        %2518 = vst.msk [vmem:[#allocation3 + $0x260] sm:$0xff] %vm1808, %v2239
        %2519 = vst.msk [vmem:[#allocation3 + $0x2a8] sm:$0xff] %vm1808, %v2240
        %2520 = vst.msk [vmem:[#allocation3 + $0x2f0] sm:$0xff] %vm1808, %v2241
        %2521 = vst.msk [vmem:[#allocation3 + $0x338] sm:$0xff] %vm1808, %v2242
        %2522 = vst.msk [vmem:[#allocation3 + $0x380] sm:$0xff] %vm1808, %v2243
        %2523 = vst.msk [vmem:[#allocation3 + $0x3c8] sm:$0xff] %vm1808, %v2244
        %2524 = vst.msk [vmem:[#allocation3 + $0x410] sm:$0xff] %vm1808, %v2245
        %2525 = vst.msk [vmem:[#allocation3 + $0x458] sm:$0xff] %vm1808, %v2246
        %2526 = vst.msk [vmem:[#allocation3 + $0x38] sm:$0xff] %vm1808, %v2232
        %2527 = vst.msk [vmem:[#allocation3 + $0x80] sm:$0xff] %vm1808, %v2233
        %2528 = vst.msk [vmem:[#allocation3 + $0xc8] sm:$0xff] %vm1808, %v2234
        %2529 = vst.msk [vmem:[#allocation3 + $0x110] sm:$0xff] %vm1808, %v2235
        %2530 = vst.msk [vmem:[#allocation3 + $0x158] sm:$0xff] %vm1808, %v2236
        %2531 = vst.msk [vmem:[#allocation3 + $0x1a0] sm:$0xff] %vm1808, %v2237
        %2532 = vst.msk [vmem:[#allocation3 + $0x1e8] sm:$0xff] %vm1808, %v2238
        %2533 = vst.msk [vmem:[#allocation3 + $0x230] sm:$0xff] %vm1808, %v2239
        %2534 = vst.msk [vmem:[#allocation3 + $0x278] sm:$0xff] %vm1808, %v2240
        %2535 = vst.msk [vmem:[#allocation3 + $0x2c0] sm:$0xff] %vm1808, %v2241
        %2536 = vst.msk [vmem:[#allocation3 + $0x308] sm:$0xff] %vm1808, %v2242
        %2537 = vst.msk [vmem:[#allocation3 + $0x350] sm:$0xff] %vm1808, %v2243
        %2538 = vst.msk [vmem:[#allocation3 + $0x398] sm:$0xff] %vm1808, %v2244
        %2539 = vst.msk [vmem:[#allocation3 + $0x3e0] sm:$0xff] %vm1808, %v2245
        %2540 = vst.msk [vmem:[#allocation3 + $0x428] sm:$0xff] %vm1808, %v2246
        %2541 = vst.msk [vmem:[#allocation3 + $0x470] sm:$0xff] %vm1808, %v2247
        %2542 = vrot.lane.b32.xlu0 %v2338, 127
        %v2543 = vpop.permute.xlu0 %2542
        %2544 = vrot.lane.b32.xlu0 %v2339, 127
        %v2545 = vpop.permute.xlu0 %2544
        %2546 = vrot.lane.b32.xlu0 %v2340, 127
        %v2547 = vpop.permute.xlu0 %2546
        %2548 = vrot.lane.b32.xlu0 %v2341, 127
        %v2549 = vpop.permute.xlu0 %2548
        %2550 = vrot.lane.b32.xlu0 %v2342, 127
        %v2551 = vpop.permute.xlu0 %2550
        %2552 = vrot.lane.b32.xlu0 %v2343, 127
        %v2553 = vpop.permute.xlu0 %2552
        %2554 = vrot.lane.b32.xlu0 %v2344, 127
        %v2555 = vpop.permute.xlu0 %2554
        %2556 = vrot.lane.b32.xlu0 %v2345, 127
        %v2557 = vpop.permute.xlu0 %2556
        %2558 = vrot.lane.b32.xlu0 %v2346, 127
        %v2559 = vpop.permute.xlu0 %2558
        %2560 = vrot.lane.b32.xlu0 %v2347, 127
        %v2561 = vpop.permute.xlu0 %2560
        %2562 = vrot.lane.b32.xlu0 %v2348, 127
        %v2563 = vpop.permute.xlu0 %2562
        %2564 = vrot.lane.b32.xlu0 %v2349, 127
        %v2565 = vpop.permute.xlu0 %2564
        %2566 = vrot.lane.b32.xlu0 %v2350, 127
        %v2567 = vpop.permute.xlu0 %2566
        %2568 = vrot.lane.b32.xlu0 %v2351, 127
        %v2569 = vpop.permute.xlu0 %2568
        %2570 = vrot.lane.b32.xlu0 %v2352, 127
        %v2571 = vpop.permute.xlu0 %2570
        %2572 = vrot.lane.b32.xlu0 %v2353, 127
        %v2573 = vpop.permute.xlu0 %2572
        %2574 = vrot.lane.b32.xlu0 %v2354, 127
        %v2575 = vpop.permute.xlu0 %2574
        %2576 = vrot.lane.b32.xlu0 %v2355, 127
        %v2577 = vpop.permute.xlu0 %2576
        %v2596 = vsel %vm667, 0.0, %v2543
        %v2597 = vsel %vm667, 0.0, %v2545
        %v2598 = vsel %vm667, 0.0, %v2547
        %v2599 = vsel %vm667, 0.0, %v2549
        %v2600 = vsel %vm667, 0.0, %v2551
        %v2601 = vsel %vm667, 0.0, %v2553
        %v2602 = vsel %vm667, 0.0, %v2555
        %v2603 = vsel %vm667, 0.0, %v2557
        %v2604 = vsel %vm667, 0.0, %v2559
        %v2605 = vsel %vm667, 0.0, %v2561
        %v2606 = vsel %vm667, 0.0, %v2563
        %v2607 = vsel %vm667, 0.0, %v2565
        %v2608 = vsel %vm667, 0.0, %v2567
        %v2609 = vsel %vm667, 0.0, %v2569
        %v2610 = vsel %vm667, 0.0, %v2571
        %v2611 = vsel %vm667, 0.0, %v2573
        %v2612 = vsel %vm667, 0.0, %v2575
        %v2613 = vsel %vm667, 0.0, %v2577
        %2614 = vst.msk [vmem:[#allocation3 + $0x10] sm:$0xff] %vm1808, %v2596
        %2615 = vst.msk [vmem:[#allocation3 + $0x58] sm:$0xff] %vm1808, %v2597
        %2616 = vst.msk [vmem:[#allocation3 + $0xa0] sm:$0xff] %vm1808, %v2598
        %2617 = vst.msk [vmem:[#allocation3 + $0xe8] sm:$0xff] %vm1808, %v2599
        %2618 = vst.msk [vmem:[#allocation3 + $0x130] sm:$0xff] %vm1808, %v2600
        %2619 = vst.msk [vmem:[#allocation3 + $0x178] sm:$0xff] %vm1808, %v2601
        %2620 = vst.msk [vmem:[#allocation3 + $0x1c0] sm:$0xff] %vm1808, %v2602
        %2621 = vst.msk [vmem:[#allocation3 + $0x208] sm:$0xff] %vm1808, %v2603
        %2622 = vst.msk [vmem:[#allocation3 + $0x250] sm:$0xff] %vm1808, %v2604
        %2623 = vst.msk [vmem:[#allocation3 + $0x298] sm:$0xff] %vm1808, %v2605
        %2624 = vst.msk [vmem:[#allocation3 + $0x2e0] sm:$0xff] %vm1808, %v2606
        %2625 = vst.msk [vmem:[#allocation3 + $0x328] sm:$0xff] %vm1808, %v2607
        %2626 = vst.msk [vmem:[#allocation3 + $0x370] sm:$0xff] %vm1808, %v2608
        %2627 = vst.msk [vmem:[#allocation3 + $0x3b8] sm:$0xff] %vm1808, %v2609
        %2628 = vst.msk [vmem:[#allocation3 + $0x400] sm:$0xff] %vm1808, %v2610
        %2629 = vst.msk [vmem:[#allocation3 + $0x448] sm:$0xff] %vm1808, %v2611
        %2630 = vst.msk [vmem:[#allocation3 + $0x28] sm:$0xff] %vm1808, %v2597
        %2631 = vst.msk [vmem:[#allocation3 + $0x70] sm:$0xff] %vm1808, %v2598
        %2632 = vst.msk [vmem:[#allocation3 + $0xb8] sm:$0xff] %vm1808, %v2599
        %2633 = vst.msk [vmem:[#allocation3 + $0x100] sm:$0xff] %vm1808, %v2600
        %2634 = vst.msk [vmem:[#allocation3 + $0x148] sm:$0xff] %vm1808, %v2601
        %2635 = vst.msk [vmem:[#allocation3 + $0x190] sm:$0xff] %vm1808, %v2602
        %2636 = vst.msk [vmem:[#allocation3 + $0x1d8] sm:$0xff] %vm1808, %v2603
        %2637 = vst.msk [vmem:[#allocation3 + $0x220] sm:$0xff] %vm1808, %v2604
        %2638 = vst.msk [vmem:[#allocation3 + $0x268] sm:$0xff] %vm1808, %v2605
        %2639 = vst.msk [vmem:[#allocation3 + $0x2b0] sm:$0xff] %vm1808, %v2606
        %2640 = vst.msk [vmem:[#allocation3 + $0x2f8] sm:$0xff] %vm1808, %v2607
        %2641 = vst.msk [vmem:[#allocation3 + $0x340] sm:$0xff] %vm1808, %v2608
        %2642 = vst.msk [vmem:[#allocation3 + $0x388] sm:$0xff] %vm1808, %v2609
        %2643 = vst.msk [vmem:[#allocation3 + $0x3d0] sm:$0xff] %vm1808, %v2610
        %2644 = vst.msk [vmem:[#allocation3 + $0x418] sm:$0xff] %vm1808, %v2611
        %2645 = vst.msk [vmem:[#allocation3 + $0x460] sm:$0xff] %vm1808, %v2612
        %2646 = vst.msk [vmem:[#allocation3 + $0x40] sm:$0xff] %vm1808, %v2598
        %2647 = vst.msk [vmem:[#allocation3 + $0x88] sm:$0xff] %vm1808, %v2599
        %2648 = vst.msk [vmem:[#allocation3 + $0xd0] sm:$0xff] %vm1808, %v2600
        %2649 = vst.msk [vmem:[#allocation3 + $0x118] sm:$0xff] %vm1808, %v2601
        %2650 = vst.msk [vmem:[#allocation3 + $0x160] sm:$0xff] %vm1808, %v2602
        %2651 = vst.msk [vmem:[#allocation3 + $0x1a8] sm:$0xff] %vm1808, %v2603
        %2652 = vst.msk [vmem:[#allocation3 + $0x1f0] sm:$0xff] %vm1808, %v2604
        %2653 = vst.msk [vmem:[#allocation3 + $0x238] sm:$0xff] %vm1808, %v2605
        %2654 = vst.msk [vmem:[#allocation3 + $0x280] sm:$0xff] %vm1808, %v2606
        %2655 = vst.msk [vmem:[#allocation3 + $0x2c8] sm:$0xff] %vm1808, %v2607
        %2656 = vst.msk [vmem:[#allocation3 + $0x310] sm:$0xff] %vm1808, %v2608
        %2657 = vst.msk [vmem:[#allocation3 + $0x358] sm:$0xff] %vm1808, %v2609
        %2658 = vst.msk [vmem:[#allocation3 + $0x3a0] sm:$0xff] %vm1808, %v2610
        %2659 = vst.msk [vmem:[#allocation3 + $0x3e8] sm:$0xff] %vm1808, %v2611
        %2660 = vst.msk [vmem:[#allocation3 + $0x430] sm:$0xff] %vm1808, %v2612
        %2661 = vst.msk [vmem:[#allocation3 + $0x478] sm:$0xff] %vm1808, %v2613
        %v2662 = vld [vmem:[#allocation3] sm:$0xff]
        %v2663 = vld [vmem:[#allocation3 + $0x8] sm:$0xff]
        %v2664 = vld [vmem:[#allocation3 + $0x10] sm:$0xff]
        %v2665 = vld [vmem:[#allocation3 + $0x18] sm:$0xff]
        %v2666 = vld [vmem:[#allocation3 + $0x20] sm:$0xff]
        %v2667 = vld [vmem:[#allocation3 + $0x28] sm:$0xff]
        %v2668 = vld [vmem:[#allocation3 + $0x30] sm:$0xff]
        %v2669 = vld [vmem:[#allocation3 + $0x38] sm:$0xff]
        %v2670 = vld [vmem:[#allocation3 + $0x40] sm:$0xff]
        %v2671 = vld [vmem:[#allocation3 + $0x48] sm:$0xff]
        %v2672 = vld [vmem:[#allocation3 + $0x50] sm:$0xff]
        %v2673 = vld [vmem:[#allocation3 + $0x58] sm:$0xff]
        %v2674 = vld [vmem:[#allocation3 + $0x60] sm:$0xff]
        %v2675 = vld [vmem:[#allocation3 + $0x68] sm:$0xff]
        %v2676 = vld [vmem:[#allocation3 + $0x70] sm:$0xff]
        %v2677 = vld [vmem:[#allocation3 + $0x78] sm:$0xff]
        %v2678 = vld [vmem:[#allocation3 + $0x80] sm:$0xff]
        %v2679 = vld [vmem:[#allocation3 + $0x88] sm:$0xff]
        %v2680 = vld [vmem:[#allocation3 + $0x90] sm:$0xff]
        %v2681 = vld [vmem:[#allocation3 + $0x98] sm:$0xff]
        %v2682 = vld [vmem:[#allocation3 + $0xa0] sm:$0xff]
        %v2683 = vld [vmem:[#allocation3 + $0xa8] sm:$0xff]
        %v2684 = vld [vmem:[#allocation3 + $0xb0] sm:$0xff]
        %v2685 = vld [vmem:[#allocation3 + $0xb8] sm:$0xff]
        %v2686 = vld [vmem:[#allocation3 + $0xc0] sm:$0xff]
        %v2687 = vld [vmem:[#allocation3 + $0xc8] sm:$0xff]
        %v2688 = vld [vmem:[#allocation3 + $0xd0] sm:$0xff]
        %v2689 = vld [vmem:[#allocation3 + $0xd8] sm:$0xff]
        %v2690 = vld [vmem:[#allocation3 + $0xe0] sm:$0xff]
        %v2691 = vld [vmem:[#allocation3 + $0xe8] sm:$0xff]
        %v2692 = vld [vmem:[#allocation3 + $0xf0] sm:$0xff]
        %v2693 = vld [vmem:[#allocation3 + $0xf8] sm:$0xff]
        %v2694 = vld [vmem:[#allocation3 + $0x100] sm:$0xff]
        %v2695 = vld [vmem:[#allocation3 + $0x108] sm:$0xff]
        %v2696 = vld [vmem:[#allocation3 + $0x110] sm:$0xff]
        %v2697 = vld [vmem:[#allocation3 + $0x118] sm:$0xff]
        %v2698 = vld [vmem:[#allocation3 + $0x120] sm:$0xff]
        %v2699 = vld [vmem:[#allocation3 + $0x128] sm:$0xff]
        %v2700 = vld [vmem:[#allocation3 + $0x130] sm:$0xff]
        %v2701 = vld [vmem:[#allocation3 + $0x138] sm:$0xff]
        %v2702 = vld [vmem:[#allocation3 + $0x140] sm:$0xff]
        %v2703 = vld [vmem:[#allocation3 + $0x148] sm:$0xff]
        %v2704 = vld [vmem:[#allocation3 + $0x150] sm:$0xff]
        %v2705 = vld [vmem:[#allocation3 + $0x158] sm:$0xff]
        %v2706 = vld [vmem:[#allocation3 + $0x160] sm:$0xff]
        %v2707 = vld [vmem:[#allocation3 + $0x168] sm:$0xff]
        %v2708 = vld [vmem:[#allocation3 + $0x170] sm:$0xff]
        %v2709 = vld [vmem:[#allocation3 + $0x178] sm:$0xff]
        %v2710 = vld [vmem:[#allocation3 + $0x180] sm:$0xff]
        %v2711 = vld [vmem:[#allocation3 + $0x188] sm:$0xff]
        %v2712 = vld [vmem:[#allocation3 + $0x190] sm:$0xff]
        %v2713 = vld [vmem:[#allocation3 + $0x198] sm:$0xff]
        %v2714 = vld [vmem:[#allocation3 + $0x1a0] sm:$0xff]
        %v2715 = vld [vmem:[#allocation3 + $0x1a8] sm:$0xff]
        %v2716 = vld [vmem:[#allocation3 + $0x1b0] sm:$0xff]
        %v2717 = vld [vmem:[#allocation3 + $0x1b8] sm:$0xff]
        %v2718 = vld [vmem:[#allocation3 + $0x1c0] sm:$0xff]
        %v2719 = vld [vmem:[#allocation3 + $0x1c8] sm:$0xff]
        %v2720 = vld [vmem:[#allocation3 + $0x1d0] sm:$0xff]
        %v2721 = vld [vmem:[#allocation3 + $0x1d8] sm:$0xff]
        %v2722 = vld [vmem:[#allocation3 + $0x1e0] sm:$0xff]
        %v2723 = vld [vmem:[#allocation3 + $0x1e8] sm:$0xff]
        %v2724 = vld [vmem:[#allocation3 + $0x1f0] sm:$0xff]
        %v2725 = vld [vmem:[#allocation3 + $0x1f8] sm:$0xff]
        %v2726 = vld [vmem:[#allocation3 + $0x200] sm:$0xff]
        %v2727 = vld [vmem:[#allocation3 + $0x208] sm:$0xff]
        %v2728 = vld [vmem:[#allocation3 + $0x210] sm:$0xff]
        %v2729 = vld [vmem:[#allocation3 + $0x218] sm:$0xff]
        %v2730 = vld [vmem:[#allocation3 + $0x220] sm:$0xff]
        %v2731 = vld [vmem:[#allocation3 + $0x228] sm:$0xff]
        %v2732 = vld [vmem:[#allocation3 + $0x230] sm:$0xff]
        %v2733 = vld [vmem:[#allocation3 + $0x238] sm:$0xff]
        %v2734 = vld [vmem:[#allocation3 + $0x240] sm:$0xff]
        %v2735 = vld [vmem:[#allocation3 + $0x248] sm:$0xff]
        %v2736 = vld [vmem:[#allocation3 + $0x250] sm:$0xff]
        %v2737 = vld [vmem:[#allocation3 + $0x258] sm:$0xff]
        %v2738 = vld [vmem:[#allocation3 + $0x260] sm:$0xff]
        %v2739 = vld [vmem:[#allocation3 + $0x268] sm:$0xff]
        %v2740 = vld [vmem:[#allocation3 + $0x270] sm:$0xff]
        %v2741 = vld [vmem:[#allocation3 + $0x278] sm:$0xff]
        %v2742 = vld [vmem:[#allocation3 + $0x280] sm:$0xff]
        %v2743 = vld [vmem:[#allocation3 + $0x288] sm:$0xff]
        %v2744 = vld [vmem:[#allocation3 + $0x290] sm:$0xff]
        %v2745 = vld [vmem:[#allocation3 + $0x298] sm:$0xff]
        %v2746 = vld [vmem:[#allocation3 + $0x2a0] sm:$0xff]
        %v2747 = vld [vmem:[#allocation3 + $0x2a8] sm:$0xff]
        %v2748 = vld [vmem:[#allocation3 + $0x2b0] sm:$0xff]
        %v2749 = vld [vmem:[#allocation3 + $0x2b8] sm:$0xff]
        %v2750 = vld [vmem:[#allocation3 + $0x2c0] sm:$0xff]
        %v2751 = vld [vmem:[#allocation3 + $0x2c8] sm:$0xff]
        %v2752 = vld [vmem:[#allocation3 + $0x2d0] sm:$0xff]
        %v2753 = vld [vmem:[#allocation3 + $0x2d8] sm:$0xff]
        %v2754 = vld [vmem:[#allocation3 + $0x2e0] sm:$0xff]
        %v2755 = vld [vmem:[#allocation3 + $0x2e8] sm:$0xff]
        %v2756 = vld [vmem:[#allocation3 + $0x2f0] sm:$0xff]
        %v2757 = vld [vmem:[#allocation3 + $0x2f8] sm:$0xff]
        %v2758 = vld [vmem:[#allocation3 + $0x300] sm:$0xff]
        %v2759 = vld [vmem:[#allocation3 + $0x308] sm:$0xff]
        %v2760 = vld [vmem:[#allocation3 + $0x310] sm:$0xff]
        %v2761 = vld [vmem:[#allocation3 + $0x318] sm:$0xff]
        %v2762 = vld [vmem:[#allocation3 + $0x320] sm:$0xff]
        %v2763 = vld [vmem:[#allocation3 + $0x328] sm:$0xff]
        %v2764 = vld [vmem:[#allocation3 + $0x330] sm:$0xff]
        %v2765 = vld [vmem:[#allocation3 + $0x338] sm:$0xff]
        %v2766 = vld [vmem:[#allocation3 + $0x340] sm:$0xff]
        %v2767 = vld [vmem:[#allocation3 + $0x348] sm:$0xff]
        %v2768 = vld [vmem:[#allocation3 + $0x350] sm:$0xff]
        %v2769 = vld [vmem:[#allocation3 + $0x358] sm:$0xff]
        %v2770 = vld [vmem:[#allocation3 + $0x360] sm:$0xff]
        %v2771 = vld [vmem:[#allocation3 + $0x368] sm:$0xff]
        %v2772 = vld [vmem:[#allocation3 + $0x370] sm:$0xff]
        %v2773 = vld [vmem:[#allocation3 + $0x378] sm:$0xff]
        %v2774 = vld [vmem:[#allocation3 + $0x380] sm:$0xff]
        %v2775 = vld [vmem:[#allocation3 + $0x388] sm:$0xff]
        %v2776 = vld [vmem:[#allocation3 + $0x390] sm:$0xff]
        %v2777 = vld [vmem:[#allocation3 + $0x398] sm:$0xff]
        %v2778 = vld [vmem:[#allocation3 + $0x3a0] sm:$0xff]
        %v2779 = vld [vmem:[#allocation3 + $0x3a8] sm:$0xff]
        %v2780 = vld [vmem:[#allocation3 + $0x3b0] sm:$0xff]
        %v2781 = vld [vmem:[#allocation3 + $0x3b8] sm:$0xff]
        %v2782 = vld [vmem:[#allocation3 + $0x3c0] sm:$0xff]
        %v2783 = vld [vmem:[#allocation3 + $0x3c8] sm:$0xff]
        %v2784 = vld [vmem:[#allocation3 + $0x3d0] sm:$0xff]
        %v2785 = vld [vmem:[#allocation3 + $0x3d8] sm:$0xff]
        %v2786 = vld [vmem:[#allocation3 + $0x3e0] sm:$0xff]
        %v2787 = vld [vmem:[#allocation3 + $0x3e8] sm:$0xff]
        %v2788 = vld [vmem:[#allocation3 + $0x3f0] sm:$0xff]
        %v2789 = vld [vmem:[#allocation3 + $0x3f8] sm:$0xff]
        %v2790 = vld [vmem:[#allocation3 + $0x400] sm:$0xff]
        %v2791 = vld [vmem:[#allocation3 + $0x408] sm:$0xff]
        %v2792 = vld [vmem:[#allocation3 + $0x410] sm:$0xff]
        %v2793 = vld [vmem:[#allocation3 + $0x418] sm:$0xff]
        %v2794 = vld [vmem:[#allocation3 + $0x420] sm:$0xff]
        %v2795 = vld [vmem:[#allocation3 + $0x428] sm:$0xff]
        %v2796 = vld [vmem:[#allocation3 + $0x430] sm:$0xff]
        %v2797 = vld [vmem:[#allocation3 + $0x438] sm:$0xff]
        %v2798 = vld [vmem:[#allocation3 + $0x440] sm:$0xff]
        %v2799 = vld [vmem:[#allocation3 + $0x448] sm:$0xff]
        %v2800 = vld [vmem:[#allocation3 + $0x450] sm:$0xff]
        %v2801 = vld [vmem:[#allocation3 + $0x458] sm:$0xff]
        %v2802 = vld [vmem:[#allocation3 + $0x460] sm:$0xff]
        %v2803 = vld [vmem:[#allocation3 + $0x468] sm:$0xff]
        %v2804 = vld [vmem:[#allocation3 + $0x470] sm:$0xff]
        %v2805 = vld [vmem:[#allocation3 + $0x478] sm:$0xff]
        %v2806 = vpack.c.bf16 %v2663, %v2662
        %v2807 = vpack.c.bf16 %v2665, %v2664
        %v2808 = vpack.c.bf16 %v2667, %v2666
        %v2809 = vpack.c.bf16 %v2669, %v2668
        %v2810 = vpack.c.bf16 %v2670, %v2670
        %v2811 = vpack.c.bf16 %v2672, %v2671
        %v2812 = vpack.c.bf16 %v2674, %v2673
        %v2813 = vpack.c.bf16 %v2676, %v2675
        %v2814 = vpack.c.bf16 %v2678, %v2677
        %v2815 = vpack.c.bf16 %v2679, %v2679
        %v2816 = vpack.c.bf16 %v2681, %v2680
        %v2817 = vpack.c.bf16 %v2683, %v2682
        %v2818 = vpack.c.bf16 %v2685, %v2684
        %v2819 = vpack.c.bf16 %v2687, %v2686
        %v2820 = vpack.c.bf16 %v2688, %v2688
        %v2821 = vpack.c.bf16 %v2690, %v2689
        %v2822 = vpack.c.bf16 %v2692, %v2691
        %v2823 = vpack.c.bf16 %v2694, %v2693
        %v2824 = vpack.c.bf16 %v2696, %v2695
        %v2825 = vpack.c.bf16 %v2697, %v2697
        %v2826 = vpack.c.bf16 %v2699, %v2698
        %v2827 = vpack.c.bf16 %v2701, %v2700
        %v2828 = vpack.c.bf16 %v2703, %v2702
        %v2829 = vpack.c.bf16 %v2705, %v2704
        %v2830 = vpack.c.bf16 %v2706, %v2706
        %v2831 = vpack.c.bf16 %v2708, %v2707
        %v2832 = vpack.c.bf16 %v2710, %v2709
        %v2833 = vpack.c.bf16 %v2712, %v2711
        %v2834 = vpack.c.bf16 %v2714, %v2713
        %v2835 = vpack.c.bf16 %v2715, %v2715
        %v2836 = vpack.c.bf16 %v2717, %v2716
        %v2837 = vpack.c.bf16 %v2719, %v2718
        %v2838 = vpack.c.bf16 %v2721, %v2720
        %v2839 = vpack.c.bf16 %v2723, %v2722
        %v2840 = vpack.c.bf16 %v2724, %v2724
        %v2841 = vpack.c.bf16 %v2726, %v2725
        %v2842 = vpack.c.bf16 %v2728, %v2727
        %v2843 = vpack.c.bf16 %v2730, %v2729
        %v2844 = vpack.c.bf16 %v2732, %v2731
        %v2845 = vpack.c.bf16 %v2733, %v2733
        %v2846 = vpack.c.bf16 %v2735, %v2734
        %v2847 = vpack.c.bf16 %v2737, %v2736
        %v2848 = vpack.c.bf16 %v2739, %v2738
        %v2849 = vpack.c.bf16 %v2741, %v2740
        %v2850 = vpack.c.bf16 %v2742, %v2742
        %v2851 = vpack.c.bf16 %v2744, %v2743
        %v2852 = vpack.c.bf16 %v2746, %v2745
        %v2853 = vpack.c.bf16 %v2748, %v2747
        %v2854 = vpack.c.bf16 %v2750, %v2749
        %v2855 = vpack.c.bf16 %v2751, %v2751
        %v2856 = vpack.c.bf16 %v2753, %v2752
        %v2857 = vpack.c.bf16 %v2755, %v2754
        %v2858 = vpack.c.bf16 %v2757, %v2756
        %v2859 = vpack.c.bf16 %v2759, %v2758
        %v2860 = vpack.c.bf16 %v2760, %v2760
        %v2861 = vpack.c.bf16 %v2762, %v2761
        %v2862 = vpack.c.bf16 %v2764, %v2763
        %v2863 = vpack.c.bf16 %v2766, %v2765
        %v2864 = vpack.c.bf16 %v2768, %v2767
        %v2865 = vpack.c.bf16 %v2769, %v2769
        %v2866 = vpack.c.bf16 %v2771, %v2770
        %v2867 = vpack.c.bf16 %v2773, %v2772
        %v2868 = vpack.c.bf16 %v2775, %v2774
        %v2869 = vpack.c.bf16 %v2777, %v2776
        %v2870 = vpack.c.bf16 %v2778, %v2778
        %v2871 = vpack.c.bf16 %v2780, %v2779
        %v2872 = vpack.c.bf16 %v2782, %v2781
        %v2873 = vpack.c.bf16 %v2784, %v2783
        %v2874 = vpack.c.bf16 %v2786, %v2785
        %v2875 = vpack.c.bf16 %v2787, %v2787
        %v2876 = vpack.c.bf16 %v2789, %v2788
        %v2877 = vpack.c.bf16 %v2791, %v2790
        %v2878 = vpack.c.bf16 %v2793, %v2792
        %v2879 = vpack.c.bf16 %v2795, %v2794
        %v2880 = vpack.c.bf16 %v2796, %v2796
        %v2881 = vpack.c.bf16 %v2798, %v2797
        %v2882 = vpack.c.bf16 %v2800, %v2799
        %v2883 = vpack.c.bf16 %v2802, %v2801
        %v2884 = vpack.c.bf16 %v2804, %v2803
        %v2885 = vpack.c.bf16 %v2805, %v2805
        %v2886 = vld [vmem:[#allocation12] sm:$0xf]
        %s2887 = scalar_lea.vmem [#allocation13], 8
        %v2888 = vld [vmem:[%s2887] sm:$0xff]
        %2890 = vset.pattern.permute.xlu0 0
        %2891 = vperm.xlu0 %2890, %v2888
        %v2892 = vpop.permute.xlu0 %2891
        %vm2894 = vcmask 588800
        %v2896 = vsel %vm2894, %v2886, 0
        %vm2898 = vcmask 1043456
        %v2900 = vsel %vm2898, %v2810, 0
        %2902 = vmatprep.subr.bf16.mxu0 0
        %2903 = vmatpush1.bf16.msra.mxu0 %v2806
        %2904 = vmatprep.subr.bf16.mxu0 0
        %2905 = vmatpush1.bf16.msra.mxu0 %v2807
        %2906 = vmatprep.subr.bf16.mxu0 0
        %2907 = vmatpush1.bf16.msra.mxu0 %v2808
        %2908 = vmatprep.subr.bf16.mxu0 0
        %2909 = vmatpush1.bf16.msra.mxu0 %v2809
        %2910 = vmatprep.subr.bf16.mxu0 0
        %2911 = vmatpush1.bf16.msra.mxu0 %v2900
        %2912 = vmatprep.subr.bf16.mxu0 0
        %2913 = vmatpush1.bf16.msra.mxu0 0
        %2914 = vmatprep.subr.bf16.mxu0 0
        %2915 = vmatpush1.bf16.msra.mxu0 0
        %2916 = vmatprep.subr.bf16.mxu0 0
        %2917 = vmatpush1.bf16.msra.mxu0 0
        %2918 = vmatprep.subr.bf16.mxu0 0
        %2919 = vmatpush1.bf16.msra.mxu0 0
        %2920 = vmatprep.subr.bf16.mxu0 0
        %2921 = vmatpush1.bf16.msra.mxu0 0
        %2922 = vmatprep.subr.bf16.mxu0 0
        %2923 = vmatpush1.bf16.msra.mxu0 0
        %2924 = vmatprep.subr.bf16.mxu0 0
        %2925 = vmatpush1.bf16.msra.mxu0 0
        %2926 = vmatprep.subr.bf16.mxu0 0
        %2927 = vmatpush1.bf16.msra.mxu0 0
        %2928 = vmatprep.subr.bf16.mxu0 0
        %2929 = vmatpush1.bf16.msra.mxu0 0
        %2930 = vmatprep.subr.bf16.mxu0 0
        %2931 = vmatpush1.bf16.msra.mxu0 0
        %2932 = vmatprep.subr.bf16.mxu0 0
        %2933 = vmatpush1.bf16.msra.mxu0 0
        %2934 = vmatprep.mubr.bf16.mxu0 0
        %2935 = vmatmul.mubr.bf16.gmra.mrb[0].mxu0 %v2896
        %v2936 = vpop.f32.mrb[0].mxu0
        %v2937 = vadd.f32 %v2892, %v2936
        %v2938 = vpop.f32.mrb[0].mxu0
        %v2939 = vpop.f32.mrb[0].mxu0
        %v2940 = vpop.f32.mrb[0].mxu0
        %2941 = vdwg.mxu0
        %v2943 = vsel %vm2898, %v2815, 0
        %2945 = vmatprep.subr.bf16.mxu0 0
        %2946 = vmatpush1.bf16.msra.mxu0 %v2811
        %2947 = vmatprep.subr.bf16.mxu0 0
        %2948 = vmatpush1.bf16.msra.mxu0 %v2812
        %2949 = vmatprep.subr.bf16.mxu0 0
        %2950 = vmatpush1.bf16.msra.mxu0 %v2813
        %2951 = vmatprep.subr.bf16.mxu0 0
        %2952 = vmatpush1.bf16.msra.mxu0 %v2814
        %2953 = vmatprep.subr.bf16.mxu0 0
        %2954 = vmatpush1.bf16.msra.mxu0 %v2943
        %2955 = vmatprep.subr.bf16.mxu0 0
        %2956 = vmatpush1.bf16.msra.mxu0 0
        %2957 = vmatprep.subr.bf16.mxu0 0
        %2958 = vmatpush1.bf16.msra.mxu0 0
        %2959 = vmatprep.subr.bf16.mxu0 0
        %2960 = vmatpush1.bf16.msra.mxu0 0
        %2961 = vmatprep.subr.bf16.mxu0 0
        %2962 = vmatpush1.bf16.msra.mxu0 0
        %2963 = vmatprep.subr.bf16.mxu0 0
        %2964 = vmatpush1.bf16.msra.mxu0 0
        %2965 = vmatprep.subr.bf16.mxu0 0
        %2966 = vmatpush1.bf16.msra.mxu0 0
        %2967 = vmatprep.subr.bf16.mxu0 0
        %2968 = vmatpush1.bf16.msra.mxu0 0
        %2969 = vmatprep.subr.bf16.mxu0 0
        %2970 = vmatpush1.bf16.msra.mxu0 0
        %2971 = vmatprep.subr.bf16.mxu0 0
        %2972 = vmatpush1.bf16.msra.mxu0 0
        %2973 = vmatprep.subr.bf16.mxu0 0
        %2974 = vmatpush1.bf16.msra.mxu0 0
        %2975 = vmatprep.subr.bf16.mxu0 0
        %2976 = vmatpush1.bf16.msra.mxu0 0
        %2977 = vmatprep.mubr.bf16.mxu0 0
        %2978 = vmatmul.mubr.bf16.gmra.mrb[0].mxu0 %v2896
        %v2979 = vpop.f32.mrb[0].mxu0
        %v2980 = vadd.f32 %v2892, %v2979
        %v2981 = vpop.f32.mrb[0].mxu0
        %v2982 = vpop.f32.mrb[0].mxu0
        %v2983 = vpop.f32.mrb[0].mxu0
        %2984 = vdwg.mxu0
        %v2986 = vsel %vm2898, %v2820, 0
        %2988 = vmatprep.subr.bf16.mxu0 0
        %2989 = vmatpush1.bf16.msra.mxu0 %v2816
        %2990 = vmatprep.subr.bf16.mxu0 0
        %2991 = vmatpush1.bf16.msra.mxu0 %v2817
        %2992 = vmatprep.subr.bf16.mxu0 0
        %2993 = vmatpush1.bf16.msra.mxu0 %v2818
        %2994 = vmatprep.subr.bf16.mxu0 0
        %2995 = vmatpush1.bf16.msra.mxu0 %v2819
        %2996 = vmatprep.subr.bf16.mxu0 0
        %2997 = vmatpush1.bf16.msra.mxu0 %v2986
        %2998 = vmatprep.subr.bf16.mxu0 0
        %2999 = vmatpush1.bf16.msra.mxu0 0
        %3000 = vmatprep.subr.bf16.mxu0 0
        %3001 = vmatpush1.bf16.msra.mxu0 0
        %3002 = vmatprep.subr.bf16.mxu0 0
        %3003 = vmatpush1.bf16.msra.mxu0 0
        %3004 = vmatprep.subr.bf16.mxu0 0
        %3005 = vmatpush1.bf16.msra.mxu0 0
        %3006 = vmatprep.subr.bf16.mxu0 0
        %3007 = vmatpush1.bf16.msra.mxu0 0
        %3008 = vmatprep.subr.bf16.mxu0 0
        %3009 = vmatpush1.bf16.msra.mxu0 0
        %3010 = vmatprep.subr.bf16.mxu0 0
        %3011 = vmatpush1.bf16.msra.mxu0 0
        %3012 = vmatprep.subr.bf16.mxu0 0
        %3013 = vmatpush1.bf16.msra.mxu0 0
        %3014 = vmatprep.subr.bf16.mxu0 0
        %3015 = vmatpush1.bf16.msra.mxu0 0
        %3016 = vmatprep.subr.bf16.mxu0 0
        %3017 = vmatpush1.bf16.msra.mxu0 0
        %3018 = vmatprep.subr.bf16.mxu0 0
        %3019 = vmatpush1.bf16.msra.mxu0 0
        %3020 = vmatprep.mubr.bf16.mxu0 0
        %3021 = vmatmul.mubr.bf16.gmra.mrb[0].mxu0 %v2896
        %v3022 = vpop.f32.mrb[0].mxu0
        %v3023 = vadd.f32 %v2892, %v3022
        %v3024 = vpop.f32.mrb[0].mxu0
        %v3025 = vpop.f32.mrb[0].mxu0
        %v3026 = vpop.f32.mrb[0].mxu0
        %3027 = vdwg.mxu0
        %v3029 = vsel %vm2898, %v2825, 0
        %3031 = vmatprep.subr.bf16.mxu0 0
        %3032 = vmatpush1.bf16.msra.mxu0 %v2821
        %3033 = vmatprep.subr.bf16.mxu0 0
        %3034 = vmatpush1.bf16.msra.mxu0 %v2822
        %3035 = vmatprep.subr.bf16.mxu0 0
        %3036 = vmatpush1.bf16.msra.mxu0 %v2823
        %3037 = vmatprep.subr.bf16.mxu0 0
        %3038 = vmatpush1.bf16.msra.mxu0 %v2824
        %3039 = vmatprep.subr.bf16.mxu0 0
        %3040 = vmatpush1.bf16.msra.mxu0 %v3029
        %3041 = vmatprep.subr.bf16.mxu0 0
        %3042 = vmatpush1.bf16.msra.mxu0 0
        %3043 = vmatprep.subr.bf16.mxu0 0
        %3044 = vmatpush1.bf16.msra.mxu0 0
        %3045 = vmatprep.subr.bf16.mxu0 0
        %3046 = vmatpush1.bf16.msra.mxu0 0
        %3047 = vmatprep.subr.bf16.mxu0 0
        %3048 = vmatpush1.bf16.msra.mxu0 0
        %3049 = vmatprep.subr.bf16.mxu0 0
        %3050 = vmatpush1.bf16.msra.mxu0 0
        %3051 = vmatprep.subr.bf16.mxu0 0
        %3052 = vmatpush1.bf16.msra.mxu0 0
        %3053 = vmatprep.subr.bf16.mxu0 0
        %3054 = vmatpush1.bf16.msra.mxu0 0
        %3055 = vmatprep.subr.bf16.mxu0 0
        %3056 = vmatpush1.bf16.msra.mxu0 0
        %3057 = vmatprep.subr.bf16.mxu0 0
        %3058 = vmatpush1.bf16.msra.mxu0 0
        %3059 = vmatprep.subr.bf16.mxu0 0
        %3060 = vmatpush1.bf16.msra.mxu0 0
        %3061 = vmatprep.subr.bf16.mxu0 0
        %3062 = vmatpush1.bf16.msra.mxu0 0
        %3063 = vmatprep.mubr.bf16.mxu0 0
        %3064 = vmatmul.mubr.bf16.gmra.mrb[0].mxu0 %v2896
        %v3065 = vpop.f32.mrb[0].mxu0
        %v3066 = vadd.f32 %v2892, %v3065
        %v3067 = vpop.f32.mrb[0].mxu0
        %v3068 = vpop.f32.mrb[0].mxu0
        %v3069 = vpop.f32.mrb[0].mxu0
        %3070 = vdwg.mxu0
        %v3072 = vsel %vm2898, %v2830, 0
        %3074 = vmatprep.subr.bf16.mxu0 0
        %3075 = vmatpush1.bf16.msra.mxu0 %v2826
        %3076 = vmatprep.subr.bf16.mxu0 0
        %3077 = vmatpush1.bf16.msra.mxu0 %v2827
        %3078 = vmatprep.subr.bf16.mxu0 0
        %3079 = vmatpush1.bf16.msra.mxu0 %v2828
        %3080 = vmatprep.subr.bf16.mxu0 0
        %3081 = vmatpush1.bf16.msra.mxu0 %v2829
        %3082 = vmatprep.subr.bf16.mxu0 0
        %3083 = vmatpush1.bf16.msra.mxu0 %v3072
        %3084 = vmatprep.subr.bf16.mxu0 0
        %3085 = vmatpush1.bf16.msra.mxu0 0
        %3086 = vmatprep.subr.bf16.mxu0 0
        %3087 = vmatpush1.bf16.msra.mxu0 0
        %3088 = vmatprep.subr.bf16.mxu0 0
        %3089 = vmatpush1.bf16.msra.mxu0 0
        %3090 = vmatprep.subr.bf16.mxu0 0
        %3091 = vmatpush1.bf16.msra.mxu0 0
        %3092 = vmatprep.subr.bf16.mxu0 0
        %3093 = vmatpush1.bf16.msra.mxu0 0
        %3094 = vmatprep.subr.bf16.mxu0 0
        %3095 = vmatpush1.bf16.msra.mxu0 0
        %3096 = vmatprep.subr.bf16.mxu0 0
        %3097 = vmatpush1.bf16.msra.mxu0 0
        %3098 = vmatprep.subr.bf16.mxu0 0
        %3099 = vmatpush1.bf16.msra.mxu0 0
        %3100 = vmatprep.subr.bf16.mxu0 0
        %3101 = vmatpush1.bf16.msra.mxu0 0
        %3102 = vmatprep.subr.bf16.mxu0 0
        %3103 = vmatpush1.bf16.msra.mxu0 0
        %3104 = vmatprep.subr.bf16.mxu0 0
        %3105 = vmatpush1.bf16.msra.mxu0 0
        %3106 = vmatprep.mubr.bf16.mxu0 0
        %3107 = vmatmul.mubr.bf16.gmra.mrb[0].mxu0 %v2896
        %v3108 = vpop.f32.mrb[0].mxu0
        %v3109 = vadd.f32 %v2892, %v3108
        %v3110 = vpop.f32.mrb[0].mxu0
        %v3111 = vpop.f32.mrb[0].mxu0
        %v3112 = vpop.f32.mrb[0].mxu0
        %3113 = vdwg.mxu0
        %v3115 = vsel %vm2898, %v2835, 0
        %3117 = vmatprep.subr.bf16.mxu0 0
        %3118 = vmatpush1.bf16.msra.mxu0 %v2831
        %3119 = vmatprep.subr.bf16.mxu0 0
        %3120 = vmatpush1.bf16.msra.mxu0 %v2832
        %3121 = vmatprep.subr.bf16.mxu0 0
        %3122 = vmatpush1.bf16.msra.mxu0 %v2833
        %3123 = vmatprep.subr.bf16.mxu0 0
        %3124 = vmatpush1.bf16.msra.mxu0 %v2834
        %3125 = vmatprep.subr.bf16.mxu0 0
        %3126 = vmatpush1.bf16.msra.mxu0 %v3115
        %3127 = vmatprep.subr.bf16.mxu0 0
        %3128 = vmatpush1.bf16.msra.mxu0 0
        %3129 = vmatprep.subr.bf16.mxu0 0
        %3130 = vmatpush1.bf16.msra.mxu0 0
        %3131 = vmatprep.subr.bf16.mxu0 0
        %3132 = vmatpush1.bf16.msra.mxu0 0
        %3133 = vmatprep.subr.bf16.mxu0 0
        %3134 = vmatpush1.bf16.msra.mxu0 0
        %3135 = vmatprep.subr.bf16.mxu0 0
        %3136 = vmatpush1.bf16.msra.mxu0 0
        %3137 = vmatprep.subr.bf16.mxu0 0
        %3138 = vmatpush1.bf16.msra.mxu0 0
        %3139 = vmatprep.subr.bf16.mxu0 0
        %3140 = vmatpush1.bf16.msra.mxu0 0
        %3141 = vmatprep.subr.bf16.mxu0 0
        %3142 = vmatpush1.bf16.msra.mxu0 0
        %3143 = vmatprep.subr.bf16.mxu0 0
        %3144 = vmatpush1.bf16.msra.mxu0 0
        %3145 = vmatprep.subr.bf16.mxu0 0
        %3146 = vmatpush1.bf16.msra.mxu0 0
        %3147 = vmatprep.subr.bf16.mxu0 0
        %3148 = vmatpush1.bf16.msra.mxu0 0
        %3149 = vmatprep.mubr.bf16.mxu0 0
        %3150 = vmatmul.mubr.bf16.gmra.mrb[0].mxu0 %v2896
        %v3151 = vpop.f32.mrb[0].mxu0
        %v3152 = vadd.f32 %v2892, %v3151
        %v3153 = vpop.f32.mrb[0].mxu0
        %v3154 = vpop.f32.mrb[0].mxu0
        %v3155 = vpop.f32.mrb[0].mxu0
        %3156 = vdwg.mxu0
        %v3158 = vsel %vm2898, %v2840, 0
        %3160 = vmatprep.subr.bf16.mxu0 0
        %3161 = vmatpush1.bf16.msra.mxu0 %v2836
        %3162 = vmatprep.subr.bf16.mxu0 0
        %3163 = vmatpush1.bf16.msra.mxu0 %v2837
        %3164 = vmatprep.subr.bf16.mxu0 0
        %3165 = vmatpush1.bf16.msra.mxu0 %v2838
        %3166 = vmatprep.subr.bf16.mxu0 0
        %3167 = vmatpush1.bf16.msra.mxu0 %v2839
        %3168 = vmatprep.subr.bf16.mxu0 0
        %3169 = vmatpush1.bf16.msra.mxu0 %v3158
        %3170 = vmatprep.subr.bf16.mxu0 0
        %3171 = vmatpush1.bf16.msra.mxu0 0
        %3172 = vmatprep.subr.bf16.mxu0 0
        %3173 = vmatpush1.bf16.msra.mxu0 0
        %3174 = vmatprep.subr.bf16.mxu0 0
        %3175 = vmatpush1.bf16.msra.mxu0 0
        %3176 = vmatprep.subr.bf16.mxu0 0
        %3177 = vmatpush1.bf16.msra.mxu0 0
        %3178 = vmatprep.subr.bf16.mxu0 0
        %3179 = vmatpush1.bf16.msra.mxu0 0
        %3180 = vmatprep.subr.bf16.mxu0 0
        %3181 = vmatpush1.bf16.msra.mxu0 0
        %3182 = vmatprep.subr.bf16.mxu0 0
        %3183 = vmatpush1.bf16.msra.mxu0 0
        %3184 = vmatprep.subr.bf16.mxu0 0
        %3185 = vmatpush1.bf16.msra.mxu0 0
        %3186 = vmatprep.subr.bf16.mxu0 0
        %3187 = vmatpush1.bf16.msra.mxu0 0
        %3188 = vmatprep.subr.bf16.mxu0 0
        %3189 = vmatpush1.bf16.msra.mxu0 0
        %3190 = vmatprep.subr.bf16.mxu0 0
        %3191 = vmatpush1.bf16.msra.mxu0 0
        %3192 = vmatprep.mubr.bf16.mxu0 0
        %3193 = vmatmul.mubr.bf16.gmra.mrb[0].mxu0 %v2896
        %v3194 = vpop.f32.mrb[0].mxu0
        %v3195 = vadd.f32 %v2892, %v3194
        %v3196 = vpop.f32.mrb[0].mxu0
        %v3197 = vpop.f32.mrb[0].mxu0
        %v3198 = vpop.f32.mrb[0].mxu0
        %3199 = vdwg.mxu0
        %v3201 = vsel %vm2898, %v2845, 0
        %3203 = vmatprep.subr.bf16.mxu0 0
        %3204 = vmatpush1.bf16.msra.mxu0 %v2841
        %3205 = vmatprep.subr.bf16.mxu0 0
        %3206 = vmatpush1.bf16.msra.mxu0 %v2842
        %3207 = vmatprep.subr.bf16.mxu0 0
        %3208 = vmatpush1.bf16.msra.mxu0 %v2843
        %3209 = vmatprep.subr.bf16.mxu0 0
        %3210 = vmatpush1.bf16.msra.mxu0 %v2844
        %3211 = vmatprep.subr.bf16.mxu0 0
        %3212 = vmatpush1.bf16.msra.mxu0 %v3201
        %3213 = vmatprep.subr.bf16.mxu0 0
        %3214 = vmatpush1.bf16.msra.mxu0 0
        %3215 = vmatprep.subr.bf16.mxu0 0
        %3216 = vmatpush1.bf16.msra.mxu0 0
        %3217 = vmatprep.subr.bf16.mxu0 0
        %3218 = vmatpush1.bf16.msra.mxu0 0
        %3219 = vmatprep.subr.bf16.mxu0 0
        %3220 = vmatpush1.bf16.msra.mxu0 0
        %3221 = vmatprep.subr.bf16.mxu0 0
        %3222 = vmatpush1.bf16.msra.mxu0 0
        %3223 = vmatprep.subr.bf16.mxu0 0
        %3224 = vmatpush1.bf16.msra.mxu0 0
        %3225 = vmatprep.subr.bf16.mxu0 0
        %3226 = vmatpush1.bf16.msra.mxu0 0
        %3227 = vmatprep.subr.bf16.mxu0 0
        %3228 = vmatpush1.bf16.msra.mxu0 0
        %3229 = vmatprep.subr.bf16.mxu0 0
        %3230 = vmatpush1.bf16.msra.mxu0 0
        %3231 = vmatprep.subr.bf16.mxu0 0
        %3232 = vmatpush1.bf16.msra.mxu0 0
        %3233 = vmatprep.subr.bf16.mxu0 0
        %3234 = vmatpush1.bf16.msra.mxu0 0
        %3235 = vmatprep.mubr.bf16.mxu0 0
        %3236 = vmatmul.mubr.bf16.gmra.mrb[0].mxu0 %v2896
        %v3237 = vpop.f32.mrb[0].mxu0
        %v3238 = vadd.f32 %v2892, %v3237
        %v3239 = vpop.f32.mrb[0].mxu0
        %v3240 = vpop.f32.mrb[0].mxu0
        %v3241 = vpop.f32.mrb[0].mxu0
        %3242 = vdwg.mxu0
        %v3244 = vsel %vm2898, %v2850, 0
        %3246 = vmatprep.subr.bf16.mxu0 0
        %3247 = vmatpush1.bf16.msra.mxu0 %v2846
        %3248 = vmatprep.subr.bf16.mxu0 0
        %3249 = vmatpush1.bf16.msra.mxu0 %v2847
        %3250 = vmatprep.subr.bf16.mxu0 0
        %3251 = vmatpush1.bf16.msra.mxu0 %v2848
        %3252 = vmatprep.subr.bf16.mxu0 0
        %3253 = vmatpush1.bf16.msra.mxu0 %v2849
        %3254 = vmatprep.subr.bf16.mxu0 0
        %3255 = vmatpush1.bf16.msra.mxu0 %v3244
        %3256 = vmatprep.subr.bf16.mxu0 0
        %3257 = vmatpush1.bf16.msra.mxu0 0
        %3258 = vmatprep.subr.bf16.mxu0 0
        %3259 = vmatpush1.bf16.msra.mxu0 0
        %3260 = vmatprep.subr.bf16.mxu0 0
        %3261 = vmatpush1.bf16.msra.mxu0 0
        %3262 = vmatprep.subr.bf16.mxu0 0
        %3263 = vmatpush1.bf16.msra.mxu0 0
        %3264 = vmatprep.subr.bf16.mxu0 0
        %3265 = vmatpush1.bf16.msra.mxu0 0
        %3266 = vmatprep.subr.bf16.mxu0 0
        %3267 = vmatpush1.bf16.msra.mxu0 0
        %3268 = vmatprep.subr.bf16.mxu0 0
        %3269 = vmatpush1.bf16.msra.mxu0 0
        %3270 = vmatprep.subr.bf16.mxu0 0
        %3271 = vmatpush1.bf16.msra.mxu0 0
        %3272 = vmatprep.subr.bf16.mxu0 0
        %3273 = vmatpush1.bf16.msra.mxu0 0
        %3274 = vmatprep.subr.bf16.mxu0 0
        %3275 = vmatpush1.bf16.msra.mxu0 0
        %3276 = vmatprep.subr.bf16.mxu0 0
        %3277 = vmatpush1.bf16.msra.mxu0 0
        %3278 = vmatprep.mubr.bf16.mxu0 0
        %3279 = vmatmul.mubr.bf16.gmra.mrb[0].mxu0 %v2896
        %v3280 = vpop.f32.mrb[0].mxu0
        %v3281 = vadd.f32 %v2892, %v3280
        %v3282 = vpop.f32.mrb[0].mxu0
        %v3283 = vpop.f32.mrb[0].mxu0
        %v3284 = vpop.f32.mrb[0].mxu0
        %3285 = vdwg.mxu0
        %v3287 = vsel %vm2898, %v2855, 0
        %3289 = vmatprep.subr.bf16.mxu0 0
        %3290 = vmatpush1.bf16.msra.mxu0 %v2851
        %3291 = vmatprep.subr.bf16.mxu0 0
        %3292 = vmatpush1.bf16.msra.mxu0 %v2852
        %3293 = vmatprep.subr.bf16.mxu0 0
        %3294 = vmatpush1.bf16.msra.mxu0 %v2853
        %3295 = vmatprep.subr.bf16.mxu0 0
        %3296 = vmatpush1.bf16.msra.mxu0 %v2854
        %3297 = vmatprep.subr.bf16.mxu0 0
        %3298 = vmatpush1.bf16.msra.mxu0 %v3287
        %3299 = vmatprep.subr.bf16.mxu0 0
        %3300 = vmatpush1.bf16.msra.mxu0 0
        %3301 = vmatprep.subr.bf16.mxu0 0
        %3302 = vmatpush1.bf16.msra.mxu0 0
        %3303 = vmatprep.subr.bf16.mxu0 0
        %3304 = vmatpush1.bf16.msra.mxu0 0
        %3305 = vmatprep.subr.bf16.mxu0 0
        %3306 = vmatpush1.bf16.msra.mxu0 0
        %3307 = vmatprep.subr.bf16.mxu0 0
        %3308 = vmatpush1.bf16.msra.mxu0 0
        %3309 = vmatprep.subr.bf16.mxu0 0
        %3310 = vmatpush1.bf16.msra.mxu0 0
        %3311 = vmatprep.subr.bf16.mxu0 0
        %3312 = vmatpush1.bf16.msra.mxu0 0
        %3313 = vmatprep.subr.bf16.mxu0 0
        %3314 = vmatpush1.bf16.msra.mxu0 0
        %3315 = vmatprep.subr.bf16.mxu0 0
        %3316 = vmatpush1.bf16.msra.mxu0 0
        %3317 = vmatprep.subr.bf16.mxu0 0
        %3318 = vmatpush1.bf16.msra.mxu0 0
        %3319 = vmatprep.subr.bf16.mxu0 0
        %3320 = vmatpush1.bf16.msra.mxu0 0
        %3321 = vmatprep.mubr.bf16.mxu0 0
        %3322 = vmatmul.mubr.bf16.gmra.mrb[0].mxu0 %v2896
        %v3323 = vpop.f32.mrb[0].mxu0
        %v3324 = vadd.f32 %v2892, %v3323
        %v3325 = vpop.f32.mrb[0].mxu0
        %v3326 = vpop.f32.mrb[0].mxu0
        %v3327 = vpop.f32.mrb[0].mxu0
        %3328 = vdwg.mxu0
        %v3330 = vsel %vm2898, %v2860, 0
        %3332 = vmatprep.subr.bf16.mxu0 0
        %3333 = vmatpush1.bf16.msra.mxu0 %v2856
        %3334 = vmatprep.subr.bf16.mxu0 0
        %3335 = vmatpush1.bf16.msra.mxu0 %v2857
        %3336 = vmatprep.subr.bf16.mxu0 0
        %3337 = vmatpush1.bf16.msra.mxu0 %v2858
        %3338 = vmatprep.subr.bf16.mxu0 0
        %3339 = vmatpush1.bf16.msra.mxu0 %v2859
        %3340 = vmatprep.subr.bf16.mxu0 0
        %3341 = vmatpush1.bf16.msra.mxu0 %v3330
        %3342 = vmatprep.subr.bf16.mxu0 0
        %3343 = vmatpush1.bf16.msra.mxu0 0
        %3344 = vmatprep.subr.bf16.mxu0 0
        %3345 = vmatpush1.bf16.msra.mxu0 0
        %3346 = vmatprep.subr.bf16.mxu0 0
        %3347 = vmatpush1.bf16.msra.mxu0 0
        %3348 = vmatprep.subr.bf16.mxu0 0
        %3349 = vmatpush1.bf16.msra.mxu0 0
        %3350 = vmatprep.subr.bf16.mxu0 0
        %3351 = vmatpush1.bf16.msra.mxu0 0
        %3352 = vmatprep.subr.bf16.mxu0 0
        %3353 = vmatpush1.bf16.msra.mxu0 0
        %3354 = vmatprep.subr.bf16.mxu0 0
        %3355 = vmatpush1.bf16.msra.mxu0 0
        %3356 = vmatprep.subr.bf16.mxu0 0
        %3357 = vmatpush1.bf16.msra.mxu0 0
        %3358 = vmatprep.subr.bf16.mxu0 0
        %3359 = vmatpush1.bf16.msra.mxu0 0
        %3360 = vmatprep.subr.bf16.mxu0 0
        %3361 = vmatpush1.bf16.msra.mxu0 0
        %3362 = vmatprep.subr.bf16.mxu0 0
        %3363 = vmatpush1.bf16.msra.mxu0 0
        %3364 = vmatprep.mubr.bf16.mxu0 0
        %3365 = vmatmul.mubr.bf16.gmra.mrb[0].mxu0 %v2896
        %v3366 = vpop.f32.mrb[0].mxu0
        %v3367 = vadd.f32 %v2892, %v3366
        %v3368 = vpop.f32.mrb[0].mxu0
        %v3369 = vpop.f32.mrb[0].mxu0
        %v3370 = vpop.f32.mrb[0].mxu0
        %3371 = vdwg.mxu0
        %v3373 = vsel %vm2898, %v2865, 0
        %3375 = vmatprep.subr.bf16.mxu0 0
        %3376 = vmatpush1.bf16.msra.mxu0 %v2861
        %3377 = vmatprep.subr.bf16.mxu0 0
        %3378 = vmatpush1.bf16.msra.mxu0 %v2862
        %3379 = vmatprep.subr.bf16.mxu0 0
        %3380 = vmatpush1.bf16.msra.mxu0 %v2863
        %3381 = vmatprep.subr.bf16.mxu0 0
        %3382 = vmatpush1.bf16.msra.mxu0 %v2864
        %3383 = vmatprep.subr.bf16.mxu0 0
        %3384 = vmatpush1.bf16.msra.mxu0 %v3373
        %3385 = vmatprep.subr.bf16.mxu0 0
        %3386 = vmatpush1.bf16.msra.mxu0 0
        %3387 = vmatprep.subr.bf16.mxu0 0
        %3388 = vmatpush1.bf16.msra.mxu0 0
        %3389 = vmatprep.subr.bf16.mxu0 0
        %3390 = vmatpush1.bf16.msra.mxu0 0
        %3391 = vmatprep.subr.bf16.mxu0 0
        %3392 = vmatpush1.bf16.msra.mxu0 0
        %3393 = vmatprep.subr.bf16.mxu0 0
        %3394 = vmatpush1.bf16.msra.mxu0 0
        %3395 = vmatprep.subr.bf16.mxu0 0
        %3396 = vmatpush1.bf16.msra.mxu0 0
        %3397 = vmatprep.subr.bf16.mxu0 0
        %3398 = vmatpush1.bf16.msra.mxu0 0
        %3399 = vmatprep.subr.bf16.mxu0 0
        %3400 = vmatpush1.bf16.msra.mxu0 0
        %3401 = vmatprep.subr.bf16.mxu0 0
        %3402 = vmatpush1.bf16.msra.mxu0 0
        %3403 = vmatprep.subr.bf16.mxu0 0
        %3404 = vmatpush1.bf16.msra.mxu0 0
        %3405 = vmatprep.subr.bf16.mxu0 0
        %3406 = vmatpush1.bf16.msra.mxu0 0
        %3407 = vmatprep.mubr.bf16.mxu0 0
        %3408 = vmatmul.mubr.bf16.gmra.mrb[0].mxu0 %v2896
        %v3409 = vpop.f32.mrb[0].mxu0
        %v3410 = vadd.f32 %v2892, %v3409
        %v3411 = vpop.f32.mrb[0].mxu0
        %v3412 = vpop.f32.mrb[0].mxu0
        %v3413 = vpop.f32.mrb[0].mxu0
        %3414 = vdwg.mxu0
        %v3416 = vsel %vm2898, %v2870, 0
        %3418 = vmatprep.subr.bf16.mxu0 0
        %3419 = vmatpush1.bf16.msra.mxu0 %v2866
        %3420 = vmatprep.subr.bf16.mxu0 0
        %3421 = vmatpush1.bf16.msra.mxu0 %v2867
        %3422 = vmatprep.subr.bf16.mxu0 0
        %3423 = vmatpush1.bf16.msra.mxu0 %v2868
        %3424 = vmatprep.subr.bf16.mxu0 0
        %3425 = vmatpush1.bf16.msra.mxu0 %v2869
        %3426 = vmatprep.subr.bf16.mxu0 0
        %3427 = vmatpush1.bf16.msra.mxu0 %v3416
        %3428 = vmatprep.subr.bf16.mxu0 0
        %3429 = vmatpush1.bf16.msra.mxu0 0
        %3430 = vmatprep.subr.bf16.mxu0 0
        %3431 = vmatpush1.bf16.msra.mxu0 0
        %3432 = vmatprep.subr.bf16.mxu0 0
        %3433 = vmatpush1.bf16.msra.mxu0 0
        %3434 = vmatprep.subr.bf16.mxu0 0
        %3435 = vmatpush1.bf16.msra.mxu0 0
        %3436 = vmatprep.subr.bf16.mxu0 0
        %3437 = vmatpush1.bf16.msra.mxu0 0
        %3438 = vmatprep.subr.bf16.mxu0 0
        %3439 = vmatpush1.bf16.msra.mxu0 0
        %3440 = vmatprep.subr.bf16.mxu0 0
        %3441 = vmatpush1.bf16.msra.mxu0 0
        %3442 = vmatprep.subr.bf16.mxu0 0
        %3443 = vmatpush1.bf16.msra.mxu0 0
        %3444 = vmatprep.subr.bf16.mxu0 0
        %3445 = vmatpush1.bf16.msra.mxu0 0
        %3446 = vmatprep.subr.bf16.mxu0 0
        %3447 = vmatpush1.bf16.msra.mxu0 0
        %3448 = vmatprep.subr.bf16.mxu0 0
        %3449 = vmatpush1.bf16.msra.mxu0 0
        %3450 = vmatprep.mubr.bf16.mxu0 0
        %3451 = vmatmul.mubr.bf16.gmra.mrb[0].mxu0 %v2896
        %v3452 = vpop.f32.mrb[0].mxu0
        %v3453 = vadd.f32 %v2892, %v3452
        %v3454 = vpop.f32.mrb[0].mxu0
        %v3455 = vpop.f32.mrb[0].mxu0
        %v3456 = vpop.f32.mrb[0].mxu0
        %3457 = vdwg.mxu0
        %v3459 = vsel %vm2898, %v2875, 0
        %3461 = vmatprep.subr.bf16.mxu0 0
        %3462 = vmatpush1.bf16.msra.mxu0 %v2871
        %3463 = vmatprep.subr.bf16.mxu0 0
        %3464 = vmatpush1.bf16.msra.mxu0 %v2872
        %3465 = vmatprep.subr.bf16.mxu0 0
        %3466 = vmatpush1.bf16.msra.mxu0 %v2873
        %3467 = vmatprep.subr.bf16.mxu0 0
        %3468 = vmatpush1.bf16.msra.mxu0 %v2874
        %3469 = vmatprep.subr.bf16.mxu0 0
        %3470 = vmatpush1.bf16.msra.mxu0 %v3459
        %3471 = vmatprep.subr.bf16.mxu0 0
        %3472 = vmatpush1.bf16.msra.mxu0 0
        %3473 = vmatprep.subr.bf16.mxu0 0
        %3474 = vmatpush1.bf16.msra.mxu0 0
        %3475 = vmatprep.subr.bf16.mxu0 0
        %3476 = vmatpush1.bf16.msra.mxu0 0
        %3477 = vmatprep.subr.bf16.mxu0 0
        %3478 = vmatpush1.bf16.msra.mxu0 0
        %3479 = vmatprep.subr.bf16.mxu0 0
        %3480 = vmatpush1.bf16.msra.mxu0 0
        %3481 = vmatprep.subr.bf16.mxu0 0
        %3482 = vmatpush1.bf16.msra.mxu0 0
        %3483 = vmatprep.subr.bf16.mxu0 0
        %3484 = vmatpush1.bf16.msra.mxu0 0
        %3485 = vmatprep.subr.bf16.mxu0 0
        %3486 = vmatpush1.bf16.msra.mxu0 0
        %3487 = vmatprep.subr.bf16.mxu0 0
        %3488 = vmatpush1.bf16.msra.mxu0 0
        %3489 = vmatprep.subr.bf16.mxu0 0
        %3490 = vmatpush1.bf16.msra.mxu0 0
        %3491 = vmatprep.subr.bf16.mxu0 0
        %3492 = vmatpush1.bf16.msra.mxu0 0
        %3493 = vmatprep.mubr.bf16.mxu0 0
        %3494 = vmatmul.mubr.bf16.gmra.mrb[0].mxu0 %v2896
        %v3495 = vpop.f32.mrb[0].mxu0
        %v3496 = vadd.f32 %v2892, %v3495
        %v3497 = vpop.f32.mrb[0].mxu0
        %v3498 = vpop.f32.mrb[0].mxu0
        %v3499 = vpop.f32.mrb[0].mxu0
        %3500 = vdwg.mxu0
        %v3502 = vsel %vm2898, %v2880, 0
        %3504 = vmatprep.subr.bf16.mxu0 0
        %3505 = vmatpush1.bf16.msra.mxu0 %v2876
        %3506 = vmatprep.subr.bf16.mxu0 0
        %3507 = vmatpush1.bf16.msra.mxu0 %v2877
        %3508 = vmatprep.subr.bf16.mxu0 0
        %3509 = vmatpush1.bf16.msra.mxu0 %v2878
        %3510 = vmatprep.subr.bf16.mxu0 0
        %3511 = vmatpush1.bf16.msra.mxu0 %v2879
        %3512 = vmatprep.subr.bf16.mxu0 0
        %3513 = vmatpush1.bf16.msra.mxu0 %v3502
        %3514 = vmatprep.subr.bf16.mxu0 0
        %3515 = vmatpush1.bf16.msra.mxu0 0
        %3516 = vmatprep.subr.bf16.mxu0 0
        %3517 = vmatpush1.bf16.msra.mxu0 0
        %3518 = vmatprep.subr.bf16.mxu0 0
        %3519 = vmatpush1.bf16.msra.mxu0 0
        %3520 = vmatprep.subr.bf16.mxu0 0
        %3521 = vmatpush1.bf16.msra.mxu0 0
        %3522 = vmatprep.subr.bf16.mxu0 0
        %3523 = vmatpush1.bf16.msra.mxu0 0
        %3524 = vmatprep.subr.bf16.mxu0 0
        %3525 = vmatpush1.bf16.msra.mxu0 0
        %3526 = vmatprep.subr.bf16.mxu0 0
        %3527 = vmatpush1.bf16.msra.mxu0 0
        %3528 = vmatprep.subr.bf16.mxu0 0
        %3529 = vmatpush1.bf16.msra.mxu0 0
        %3530 = vmatprep.subr.bf16.mxu0 0
        %3531 = vmatpush1.bf16.msra.mxu0 0
        %3532 = vmatprep.subr.bf16.mxu0 0
        %3533 = vmatpush1.bf16.msra.mxu0 0
        %3534 = vmatprep.subr.bf16.mxu0 0
        %3535 = vmatpush1.bf16.msra.mxu0 0
        %3536 = vmatprep.mubr.bf16.mxu0 0
        %3537 = vmatmul.mubr.bf16.gmra.mrb[0].mxu0 %v2896
        %v3538 = vpop.f32.mrb[0].mxu0
        %v3539 = vadd.f32 %v2892, %v3538
        %v3540 = vpop.f32.mrb[0].mxu0
        %v3541 = vpop.f32.mrb[0].mxu0
        %v3542 = vpop.f32.mrb[0].mxu0
        %3543 = vdwg.mxu0
        %v3545 = vsel %vm2898, %v2885, 0
        %3547 = vmatprep.subr.bf16.mxu0 0
        %3548 = vmatpush1.bf16.msra.mxu0 %v2881
        %3549 = vmatprep.subr.bf16.mxu0 0
        %3550 = vmatpush1.bf16.msra.mxu0 %v2882
        %3551 = vmatprep.subr.bf16.mxu0 0
        %3552 = vmatpush1.bf16.msra.mxu0 %v2883
        %3553 = vmatprep.subr.bf16.mxu0 0
        %3554 = vmatpush1.bf16.msra.mxu0 %v2884
        %3555 = vmatprep.subr.bf16.mxu0 0
        %3556 = vmatpush1.bf16.msra.mxu0 %v3545
        %3557 = vmatprep.subr.bf16.mxu0 0
        %3558 = vmatpush1.bf16.msra.mxu0 0
        %3559 = vmatprep.subr.bf16.mxu0 0
        %3560 = vmatpush1.bf16.msra.mxu0 0
        %3561 = vmatprep.subr.bf16.mxu0 0
        %3562 = vmatpush1.bf16.msra.mxu0 0
        %3563 = vmatprep.subr.bf16.mxu0 0
        %3564 = vmatpush1.bf16.msra.mxu0 0
        %3565 = vmatprep.subr.bf16.mxu0 0
        %3566 = vmatpush1.bf16.msra.mxu0 0
        %3567 = vmatprep.subr.bf16.mxu0 0
        %3568 = vmatpush1.bf16.msra.mxu0 0
        %3569 = vmatprep.subr.bf16.mxu0 0
        %3570 = vmatpush1.bf16.msra.mxu0 0
        %3571 = vmatprep.subr.bf16.mxu0 0
        %3572 = vmatpush1.bf16.msra.mxu0 0
        %3573 = vmatprep.subr.bf16.mxu0 0
        %3574 = vmatpush1.bf16.msra.mxu0 0
        %3575 = vmatprep.subr.bf16.mxu0 0
        %3576 = vmatpush1.bf16.msra.mxu0 0
        %3577 = vmatprep.subr.bf16.mxu0 0
        %3578 = vmatpush1.bf16.msra.mxu0 0
        %3579 = vmatprep.mubr.bf16.mxu0 0
        %3580 = vmatmul.mubr.bf16.gmra.mrb[0].mxu0 %v2896
        %v3581 = vpop.f32.mrb[0].mxu0
        %v3582 = vadd.f32 %v2892, %v3581
        %v3583 = vpop.f32.mrb[0].mxu0
        %v3584 = vpop.f32.mrb[0].mxu0
        %v3585 = vpop.f32.mrb[0].mxu0
        %3586 = vdwg.mxu0
        %v3587 = vmax.f32 %v2937, 0.0
        %v3588 = vmax.f32 %v2980, 0.0
        %v3589 = vmax.f32 %v3023, 0.0
        %v3590 = vmax.f32 %v3066, 0.0
        %v3591 = vmax.f32 %v3109, 0.0
        %v3592 = vmax.f32 %v3152, 0.0
        %v3593 = vmax.f32 %v3195, 0.0
        %v3594 = vmax.f32 %v3238, 0.0
        %v3595 = vmax.f32 %v3281, 0.0
        %v3596 = vmax.f32 %v3324, 0.0
        %v3597 = vmax.f32 %v3367, 0.0
        %v3598 = vmax.f32 %v3410, 0.0
        %v3599 = vmax.f32 %v3453, 0.0
        %v3600 = vmax.f32 %v3496, 0.0
        %v3601 = vmax.f32 %v3539, 0.0
        %v3602 = vmax.f32 %v3582, 0.0
        %3603 = vst.msk [vmem:[#allocation5] sm:$0xff] %vm1808, %v3587
        %3604 = vst.msk [vmem:[#allocation5 + $0x8] sm:$0xff] %vm1808, %v3588
        %3605 = vst.msk [vmem:[#allocation5 + $0x10] sm:$0xff] %vm1808, %v3589
        %3606 = vst.msk [vmem:[#allocation5 + $0x18] sm:$0xff] %vm1808, %v3590
        %3607 = vst.msk [vmem:[#allocation5 + $0x20] sm:$0xff] %vm1808, %v3591
        %3608 = vst.msk [vmem:[#allocation5 + $0x28] sm:$0xff] %vm1808, %v3592
        %3609 = vst.msk [vmem:[#allocation5 + $0x30] sm:$0xff] %vm1808, %v3593
        %3610 = vst.msk [vmem:[#allocation5 + $0x38] sm:$0xff] %vm1808, %v3594
        %3611 = vst.msk [vmem:[#allocation5 + $0x40] sm:$0xff] %vm1808, %v3595
        %3612 = vst.msk [vmem:[#allocation5 + $0x48] sm:$0xff] %vm1808, %v3596
        %3613 = vst.msk [vmem:[#allocation5 + $0x50] sm:$0xff] %vm1808, %v3597
        %3614 = vst.msk [vmem:[#allocation5 + $0x58] sm:$0xff] %vm1808, %v3598
        %3615 = vst.msk [vmem:[#allocation5 + $0x60] sm:$0xff] %vm1808, %v3599
        %3616 = vst.msk [vmem:[#allocation5 + $0x68] sm:$0xff] %vm1808, %v3600
        %3617 = vst.msk [vmem:[#allocation5 + $0x70] sm:$0xff] %vm1808, %v3601
        %3618 = vst.msk [vmem:[#allocation5 + $0x78] sm:$0xff] %vm1808, %v3602
        %s3619 = sld [smem:[#allocation15 + $0x9]]
        %v3620 = vld [vmem:[#allocation5] sm:$0x1]
        %v3621 = vld [vmem:[#allocation5 + $0x8] sm:$0x1]
        %v3622 = vld [vmem:[#allocation5 + $0x10] sm:$0x1]
        %v3623 = vld [vmem:[#allocation5 + $0x18] sm:$0x1]
        %v3624 = vld [vmem:[#allocation5 + $0x20] sm:$0x1]
        %v3625 = vld [vmem:[#allocation5 + $0x28] sm:$0x1]
        %v3626 = vld [vmem:[#allocation5 + $0x30] sm:$0x1]
        %v3627 = vld [vmem:[#allocation5 + $0x38] sm:$0x1]
        %v3628 = vld [vmem:[#allocation5 + $0x40] sm:$0x1]
        %v3629 = vld [vmem:[#allocation5 + $0x48] sm:$0x1]
        %v3630 = vld [vmem:[#allocation5 + $0x50] sm:$0x1]
        %v3631 = vld [vmem:[#allocation5 + $0x58] sm:$0x1]
        %v3632 = vld [vmem:[#allocation5 + $0x60] sm:$0x1]
        %v3633 = vld [vmem:[#allocation5 + $0x68] sm:$0x1]
        %v3634 = vld [vmem:[#allocation5 + $0x70] sm:$0x1]
        %v3635 = vld [vmem:[#allocation5 + $0x78] sm:$0x1]
        %v3636 = vstv %s3619
        %v3637 = vmul.f32 %v3636, %v3620
        %v3638 = vmul.f32 %v3636, %v3621
        %v3639 = vmul.f32 %v3636, %v3622
        %v3640 = vmul.f32 %v3636, %v3623
        %v3641 = vmul.f32 %v3636, %v3624
        %v3642 = vmul.f32 %v3636, %v3625
        %v3643 = vmul.f32 %v3636, %v3626
        %v3644 = vmul.f32 %v3636, %v3627
        %v3645 = vmul.f32 %v3636, %v3628
        %v3646 = vmul.f32 %v3636, %v3629
        %v3647 = vmul.f32 %v3636, %v3630
        %v3648 = vmul.f32 %v3636, %v3631
        %v3649 = vmul.f32 %v3636, %v3632
        %v3650 = vmul.f32 %v3636, %v3633
        %v3651 = vmul.f32 %v3636, %v3634
        %v3652 = vmul.f32 %v3636, %v3635
        %s3653 = sld [smem:[#allocation15 + $0xa]]
        %v3654 = vld [vmem:[#allocation5 + $0x1] sm:$0x1]
        %v3655 = vld [vmem:[#allocation5 + $0x9] sm:$0x1]
        %v3656 = vld [vmem:[#allocation5 + $0x11] sm:$0x1]
        %v3657 = vld [vmem:[#allocation5 + $0x19] sm:$0x1]
        %v3658 = vld [vmem:[#allocation5 + $0x21] sm:$0x1]
        %v3659 = vld [vmem:[#allocation5 + $0x29] sm:$0x1]
        %v3660 = vld [vmem:[#allocation5 + $0x31] sm:$0x1]
        %v3661 = vld [vmem:[#allocation5 + $0x39] sm:$0x1]
        %v3662 = vld [vmem:[#allocation5 + $0x41] sm:$0x1]
        %v3663 = vld [vmem:[#allocation5 + $0x49] sm:$0x1]
        %v3664 = vld [vmem:[#allocation5 + $0x51] sm:$0x1]
        %v3665 = vld [vmem:[#allocation5 + $0x59] sm:$0x1]
        %v3666 = vld [vmem:[#allocation5 + $0x61] sm:$0x1]
        %v3667 = vld [vmem:[#allocation5 + $0x69] sm:$0x1]
        %v3668 = vld [vmem:[#allocation5 + $0x71] sm:$0x1]
        %v3669 = vld [vmem:[#allocation5 + $0x79] sm:$0x1]
        %v3670 = vstv %s3653
        %v3671 = vmul.f32 %v3670, %v3654
        %v3672 = vmul.f32 %v3670, %v3655
        %v3673 = vmul.f32 %v3670, %v3656
        %v3674 = vmul.f32 %v3670, %v3657
        %v3675 = vmul.f32 %v3670, %v3658
        %v3676 = vmul.f32 %v3670, %v3659
        %v3677 = vmul.f32 %v3670, %v3660
        %v3678 = vmul.f32 %v3670, %v3661
        %v3679 = vmul.f32 %v3670, %v3662
        %v3680 = vmul.f32 %v3670, %v3663
        %v3681 = vmul.f32 %v3670, %v3664
        %v3682 = vmul.f32 %v3670, %v3665
        %v3683 = vmul.f32 %v3670, %v3666
        %v3684 = vmul.f32 %v3670, %v3667
        %v3685 = vmul.f32 %v3670, %v3668
        %v3686 = vmul.f32 %v3670, %v3669
        %v3687 = vadd.f32 %v3637, %v3671
        %v3688 = vadd.f32 %v3638, %v3672
        %v3689 = vadd.f32 %v3639, %v3673
        %v3690 = vadd.f32 %v3640, %v3674
        %v3691 = vadd.f32 %v3641, %v3675
        %v3692 = vadd.f32 %v3642, %v3676
        %v3693 = vadd.f32 %v3643, %v3677
        %v3694 = vadd.f32 %v3644, %v3678
        %v3695 = vadd.f32 %v3645, %v3679
        %v3696 = vadd.f32 %v3646, %v3680
        %v3697 = vadd.f32 %v3647, %v3681
        %v3698 = vadd.f32 %v3648, %v3682
        %v3699 = vadd.f32 %v3649, %v3683
        %v3700 = vadd.f32 %v3650, %v3684
        %v3701 = vadd.f32 %v3651, %v3685
        %v3702 = vadd.f32 %v3652, %v3686
        %s3703 = sld [smem:[#allocation15 + $0xb]]
        %v3704 = vld [vmem:[#allocation5 + $0x2] sm:$0x1]
        %v3705 = vld [vmem:[#allocation5 + $0xa] sm:$0x1]
        %v3706 = vld [vmem:[#allocation5 + $0x12] sm:$0x1]
        %v3707 = vld [vmem:[#allocation5 + $0x1a] sm:$0x1]
        %v3708 = vld [vmem:[#allocation5 + $0x22] sm:$0x1]
        %v3709 = vld [vmem:[#allocation5 + $0x2a] sm:$0x1]
        %v3710 = vld [vmem:[#allocation5 + $0x32] sm:$0x1]
        %v3711 = vld [vmem:[#allocation5 + $0x3a] sm:$0x1]
        %v3712 = vld [vmem:[#allocation5 + $0x42] sm:$0x1]
        %v3713 = vld [vmem:[#allocation5 + $0x4a] sm:$0x1]
        %v3714 = vld [vmem:[#allocation5 + $0x52] sm:$0x1]
        %v3715 = vld [vmem:[#allocation5 + $0x5a] sm:$0x1]
        %v3716 = vld [vmem:[#allocation5 + $0x62] sm:$0x1]
        %v3717 = vld [vmem:[#allocation5 + $0x6a] sm:$0x1]
        %v3718 = vld [vmem:[#allocation5 + $0x72] sm:$0x1]
        %v3719 = vld [vmem:[#allocation5 + $0x7a] sm:$0x1]
        %v3720 = vstv %s3703
        %v3721 = vmul.f32 %v3720, %v3704
        %v3722 = vmul.f32 %v3720, %v3705
        %v3723 = vmul.f32 %v3720, %v3706
        %v3724 = vmul.f32 %v3720, %v3707
        %v3725 = vmul.f32 %v3720, %v3708
        %v3726 = vmul.f32 %v3720, %v3709
        %v3727 = vmul.f32 %v3720, %v3710
        %v3728 = vmul.f32 %v3720, %v3711
        %v3729 = vmul.f32 %v3720, %v3712
        %v3730 = vmul.f32 %v3720, %v3713
        %v3731 = vmul.f32 %v3720, %v3714
        %v3732 = vmul.f32 %v3720, %v3715
        %v3733 = vmul.f32 %v3720, %v3716
        %v3734 = vmul.f32 %v3720, %v3717
        %v3735 = vmul.f32 %v3720, %v3718
        %v3736 = vmul.f32 %v3720, %v3719
        %v3737 = vadd.f32 %v3687, %v3721
        %v3738 = vadd.f32 %v3688, %v3722
        %v3739 = vadd.f32 %v3689, %v3723
        %v3740 = vadd.f32 %v3690, %v3724
        %v3741 = vadd.f32 %v3691, %v3725
        %v3742 = vadd.f32 %v3692, %v3726
        %v3743 = vadd.f32 %v3693, %v3727
        %v3744 = vadd.f32 %v3694, %v3728
        %v3745 = vadd.f32 %v3695, %v3729
        %v3746 = vadd.f32 %v3696, %v3730
        %v3747 = vadd.f32 %v3697, %v3731
        %v3748 = vadd.f32 %v3698, %v3732
        %v3749 = vadd.f32 %v3699, %v3733
        %v3750 = vadd.f32 %v3700, %v3734
        %v3751 = vadd.f32 %v3701, %v3735
        %v3752 = vadd.f32 %v3702, %v3736
        %s3753 = sld [smem:[#allocation15 + $0xc]]
        %v3754 = vld [vmem:[#allocation5 + $0x3] sm:$0x1]
        %v3755 = vld [vmem:[#allocation5 + $0xb] sm:$0x1]
        %v3756 = vld [vmem:[#allocation5 + $0x13] sm:$0x1]
        %v3757 = vld [vmem:[#allocation5 + $0x1b] sm:$0x1]
        %v3758 = vld [vmem:[#allocation5 + $0x23] sm:$0x1]
        %v3759 = vld [vmem:[#allocation5 + $0x2b] sm:$0x1]
        %v3760 = vld [vmem:[#allocation5 + $0x33] sm:$0x1]
        %v3761 = vld [vmem:[#allocation5 + $0x3b] sm:$0x1]
        %v3762 = vld [vmem:[#allocation5 + $0x43] sm:$0x1]
        %v3763 = vld [vmem:[#allocation5 + $0x4b] sm:$0x1]
        %v3764 = vld [vmem:[#allocation5 + $0x53] sm:$0x1]
        %v3765 = vld [vmem:[#allocation5 + $0x5b] sm:$0x1]
        %v3766 = vld [vmem:[#allocation5 + $0x63] sm:$0x1]
        %v3767 = vld [vmem:[#allocation5 + $0x6b] sm:$0x1]
        %v3768 = vld [vmem:[#allocation5 + $0x73] sm:$0x1]
        %v3769 = vld [vmem:[#allocation5 + $0x7b] sm:$0x1]
        %v3770 = vstv %s3753
        %v3771 = vmul.f32 %v3770, %v3754
        %v3772 = vmul.f32 %v3770, %v3755
        %v3773 = vmul.f32 %v3770, %v3756
        %v3774 = vmul.f32 %v3770, %v3757
        %v3775 = vmul.f32 %v3770, %v3758
        %v3776 = vmul.f32 %v3770, %v3759
        %v3777 = vmul.f32 %v3770, %v3760
        %v3778 = vmul.f32 %v3770, %v3761
        %v3779 = vmul.f32 %v3770, %v3762
        %v3780 = vmul.f32 %v3770, %v3763
        %v3781 = vmul.f32 %v3770, %v3764
        %v3782 = vmul.f32 %v3770, %v3765
        %v3783 = vmul.f32 %v3770, %v3766
        %v3784 = vmul.f32 %v3770, %v3767
        %v3785 = vmul.f32 %v3770, %v3768
        %v3786 = vmul.f32 %v3770, %v3769
        %v3787 = vadd.f32 %v3737, %v3771
        %v3788 = vadd.f32 %v3738, %v3772
        %v3789 = vadd.f32 %v3739, %v3773
        %v3790 = vadd.f32 %v3740, %v3774
        %v3791 = vadd.f32 %v3741, %v3775
        %v3792 = vadd.f32 %v3742, %v3776
        %v3793 = vadd.f32 %v3743, %v3777
        %v3794 = vadd.f32 %v3744, %v3778
        %v3795 = vadd.f32 %v3745, %v3779
        %v3796 = vadd.f32 %v3746, %v3780
        %v3797 = vadd.f32 %v3747, %v3781
        %v3798 = vadd.f32 %v3748, %v3782
        %v3799 = vadd.f32 %v3749, %v3783
        %v3800 = vadd.f32 %v3750, %v3784
        %v3801 = vadd.f32 %v3751, %v3785
        %v3802 = vadd.f32 %v3752, %v3786
        %s3803 = sld [smem:[#allocation15 + $0xd]]
        %v3804 = vld [vmem:[#allocation5 + $0x4] sm:$0x1]
        %v3805 = vld [vmem:[#allocation5 + $0xc] sm:$0x1]
        %v3806 = vld [vmem:[#allocation5 + $0x14] sm:$0x1]
        %v3807 = vld [vmem:[#allocation5 + $0x1c] sm:$0x1]
        %v3808 = vld [vmem:[#allocation5 + $0x24] sm:$0x1]
        %v3809 = vld [vmem:[#allocation5 + $0x2c] sm:$0x1]
        %v3810 = vld [vmem:[#allocation5 + $0x34] sm:$0x1]
        %v3811 = vld [vmem:[#allocation5 + $0x3c] sm:$0x1]
        %v3812 = vld [vmem:[#allocation5 + $0x44] sm:$0x1]
        %v3813 = vld [vmem:[#allocation5 + $0x4c] sm:$0x1]
        %v3814 = vld [vmem:[#allocation5 + $0x54] sm:$0x1]
        %v3815 = vld [vmem:[#allocation5 + $0x5c] sm:$0x1]
        %v3816 = vld [vmem:[#allocation5 + $0x64] sm:$0x1]
        %v3817 = vld [vmem:[#allocation5 + $0x6c] sm:$0x1]
        %v3818 = vld [vmem:[#allocation5 + $0x74] sm:$0x1]
        %v3819 = vld [vmem:[#allocation5 + $0x7c] sm:$0x1]
        %v3820 = vstv %s3803
        %v3821 = vmul.f32 %v3820, %v3804
        %v3822 = vmul.f32 %v3820, %v3805
        %v3823 = vmul.f32 %v3820, %v3806
        %v3824 = vmul.f32 %v3820, %v3807
        %v3825 = vmul.f32 %v3820, %v3808
        %v3826 = vmul.f32 %v3820, %v3809
        %v3827 = vmul.f32 %v3820, %v3810
        %v3828 = vmul.f32 %v3820, %v3811
        %v3829 = vmul.f32 %v3820, %v3812
        %v3830 = vmul.f32 %v3820, %v3813
        %v3831 = vmul.f32 %v3820, %v3814
        %v3832 = vmul.f32 %v3820, %v3815
        %v3833 = vmul.f32 %v3820, %v3816
        %v3834 = vmul.f32 %v3820, %v3817
        %v3835 = vmul.f32 %v3820, %v3818
        %v3836 = vmul.f32 %v3820, %v3819
        %v3837 = vadd.f32 %v3787, %v3821
        %v3838 = vadd.f32 %v3788, %v3822
        %v3839 = vadd.f32 %v3789, %v3823
        %v3840 = vadd.f32 %v3790, %v3824
        %v3841 = vadd.f32 %v3791, %v3825
        %v3842 = vadd.f32 %v3792, %v3826
        %v3843 = vadd.f32 %v3793, %v3827
        %v3844 = vadd.f32 %v3794, %v3828
        %v3845 = vadd.f32 %v3795, %v3829
        %v3846 = vadd.f32 %v3796, %v3830
        %v3847 = vadd.f32 %v3797, %v3831
        %v3848 = vadd.f32 %v3798, %v3832
        %v3849 = vadd.f32 %v3799, %v3833
        %v3850 = vadd.f32 %v3800, %v3834
        %v3851 = vadd.f32 %v3801, %v3835
        %v3852 = vadd.f32 %v3802, %v3836
        %s3853 = sld [smem:[#allocation15 + $0xe]]
        %v3854 = vld [vmem:[#allocation5 + $0x5] sm:$0x1]
        %v3855 = vld [vmem:[#allocation5 + $0xd] sm:$0x1]
        %v3856 = vld [vmem:[#allocation5 + $0x15] sm:$0x1]
        %v3857 = vld [vmem:[#allocation5 + $0x1d] sm:$0x1]
        %v3858 = vld [vmem:[#allocation5 + $0x25] sm:$0x1]
        %v3859 = vld [vmem:[#allocation5 + $0x2d] sm:$0x1]
        %v3860 = vld [vmem:[#allocation5 + $0x35] sm:$0x1]
        %v3861 = vld [vmem:[#allocation5 + $0x3d] sm:$0x1]
        %v3862 = vld [vmem:[#allocation5 + $0x45] sm:$0x1]
        %v3863 = vld [vmem:[#allocation5 + $0x4d] sm:$0x1]
        %v3864 = vld [vmem:[#allocation5 + $0x55] sm:$0x1]
        %v3865 = vld [vmem:[#allocation5 + $0x5d] sm:$0x1]
        %v3866 = vld [vmem:[#allocation5 + $0x65] sm:$0x1]
        %v3867 = vld [vmem:[#allocation5 + $0x6d] sm:$0x1]
        %v3868 = vld [vmem:[#allocation5 + $0x75] sm:$0x1]
        %v3869 = vld [vmem:[#allocation5 + $0x7d] sm:$0x1]
        %v3870 = vstv %s3853
        %v3871 = vmul.f32 %v3870, %v3854
        %v3872 = vmul.f32 %v3870, %v3855
        %v3873 = vmul.f32 %v3870, %v3856
        %v3874 = vmul.f32 %v3870, %v3857
        %v3875 = vmul.f32 %v3870, %v3858
        %v3876 = vmul.f32 %v3870, %v3859
        %v3877 = vmul.f32 %v3870, %v3860
        %v3878 = vmul.f32 %v3870, %v3861
        %v3879 = vmul.f32 %v3870, %v3862
        %v3880 = vmul.f32 %v3870, %v3863
        %v3881 = vmul.f32 %v3870, %v3864
        %v3882 = vmul.f32 %v3870, %v3865
        %v3883 = vmul.f32 %v3870, %v3866
        %v3884 = vmul.f32 %v3870, %v3867
        %v3885 = vmul.f32 %v3870, %v3868
        %v3886 = vmul.f32 %v3870, %v3869
        %v3887 = vadd.f32 %v3837, %v3871
        %v3888 = vadd.f32 %v3838, %v3872
        %v3889 = vadd.f32 %v3839, %v3873
        %v3890 = vadd.f32 %v3840, %v3874
        %v3891 = vadd.f32 %v3841, %v3875
        %v3892 = vadd.f32 %v3842, %v3876
        %v3893 = vadd.f32 %v3843, %v3877
        %v3894 = vadd.f32 %v3844, %v3878
        %v3895 = vadd.f32 %v3845, %v3879
        %v3896 = vadd.f32 %v3846, %v3880
        %v3897 = vadd.f32 %v3847, %v3881
        %v3898 = vadd.f32 %v3848, %v3882
        %v3899 = vadd.f32 %v3849, %v3883
        %v3900 = vadd.f32 %v3850, %v3884
        %v3901 = vadd.f32 %v3851, %v3885
        %v3902 = vadd.f32 %v3852, %v3886
        %s3903 = sld [smem:[#allocation15 + $0xf]]
        %v3904 = vld [vmem:[#allocation5 + $0x6] sm:$0x1]
        %v3905 = vld [vmem:[#allocation5 + $0xe] sm:$0x1]
        %v3906 = vld [vmem:[#allocation5 + $0x16] sm:$0x1]
        %v3907 = vld [vmem:[#allocation5 + $0x1e] sm:$0x1]
        %v3908 = vld [vmem:[#allocation5 + $0x26] sm:$0x1]
        %v3909 = vld [vmem:[#allocation5 + $0x2e] sm:$0x1]
        %v3910 = vld [vmem:[#allocation5 + $0x36] sm:$0x1]
        %v3911 = vld [vmem:[#allocation5 + $0x3e] sm:$0x1]
        %v3912 = vld [vmem:[#allocation5 + $0x46] sm:$0x1]
        %v3913 = vld [vmem:[#allocation5 + $0x4e] sm:$0x1]
        %v3914 = vld [vmem:[#allocation5 + $0x56] sm:$0x1]
        %v3915 = vld [vmem:[#allocation5 + $0x5e] sm:$0x1]
        %v3916 = vld [vmem:[#allocation5 + $0x66] sm:$0x1]
        %v3917 = vld [vmem:[#allocation5 + $0x6e] sm:$0x1]
        %v3918 = vld [vmem:[#allocation5 + $0x76] sm:$0x1]
        %v3919 = vld [vmem:[#allocation5 + $0x7e] sm:$0x1]
        %v3920 = vstv %s3903
        %v3921 = vmul.f32 %v3920, %v3904
        %v3922 = vmul.f32 %v3920, %v3905
        %v3923 = vmul.f32 %v3920, %v3906
        %v3924 = vmul.f32 %v3920, %v3907
        %v3925 = vmul.f32 %v3920, %v3908
        %v3926 = vmul.f32 %v3920, %v3909
        %v3927 = vmul.f32 %v3920, %v3910
        %v3928 = vmul.f32 %v3920, %v3911
        %v3929 = vmul.f32 %v3920, %v3912
        %v3930 = vmul.f32 %v3920, %v3913
        %v3931 = vmul.f32 %v3920, %v3914
        %v3932 = vmul.f32 %v3920, %v3915
        %v3933 = vmul.f32 %v3920, %v3916
        %v3934 = vmul.f32 %v3920, %v3917
        %v3935 = vmul.f32 %v3920, %v3918
        %v3936 = vmul.f32 %v3920, %v3919
        %v3937 = vadd.f32 %v3887, %v3921
        %v3938 = vadd.f32 %v3888, %v3922
        %v3939 = vadd.f32 %v3889, %v3923
        %v3940 = vadd.f32 %v3890, %v3924
        %v3941 = vadd.f32 %v3891, %v3925
        %v3942 = vadd.f32 %v3892, %v3926
        %v3943 = vadd.f32 %v3893, %v3927
        %v3944 = vadd.f32 %v3894, %v3928
        %v3945 = vadd.f32 %v3895, %v3929
        %v3946 = vadd.f32 %v3896, %v3930
        %v3947 = vadd.f32 %v3897, %v3931
        %v3948 = vadd.f32 %v3898, %v3932
        %v3949 = vadd.f32 %v3899, %v3933
        %v3950 = vadd.f32 %v3900, %v3934
        %v3951 = vadd.f32 %v3901, %v3935
        %v3952 = vadd.f32 %v3902, %v3936
        %s3953 = sld [smem:[#allocation15 + $0x10]]
        %v3954 = vld [vmem:[#allocation5 + $0x7] sm:$0x1]
        %v3955 = vld [vmem:[#allocation5 + $0xf] sm:$0x1]
        %v3956 = vld [vmem:[#allocation5 + $0x17] sm:$0x1]
        %v3957 = vld [vmem:[#allocation5 + $0x1f] sm:$0x1]
        %v3958 = vld [vmem:[#allocation5 + $0x27] sm:$0x1]
        %v3959 = vld [vmem:[#allocation5 + $0x2f] sm:$0x1]
        %v3960 = vld [vmem:[#allocation5 + $0x37] sm:$0x1]
        %v3961 = vld [vmem:[#allocation5 + $0x3f] sm:$0x1]
        %v3962 = vld [vmem:[#allocation5 + $0x47] sm:$0x1]
        %v3963 = vld [vmem:[#allocation5 + $0x4f] sm:$0x1]
        %v3964 = vld [vmem:[#allocation5 + $0x57] sm:$0x1]
        %v3965 = vld [vmem:[#allocation5 + $0x5f] sm:$0x1]
        %v3966 = vld [vmem:[#allocation5 + $0x67] sm:$0x1]
        %v3967 = vld [vmem:[#allocation5 + $0x6f] sm:$0x1]
        %v3968 = vld [vmem:[#allocation5 + $0x77] sm:$0x1]
        %v3969 = vld [vmem:[#allocation5 + $0x7f] sm:$0x1]
        %v3970 = vstv %s3953
        %v3971 = vmul.f32 %v3970, %v3954
        %v3972 = vmul.f32 %v3970, %v3955
        %v3973 = vmul.f32 %v3970, %v3956
        %v3974 = vmul.f32 %v3970, %v3957
        %v3975 = vmul.f32 %v3970, %v3958
        %v3976 = vmul.f32 %v3970, %v3959
        %v3977 = vmul.f32 %v3970, %v3960
        %v3978 = vmul.f32 %v3970, %v3961
        %v3979 = vmul.f32 %v3970, %v3962
        %v3980 = vmul.f32 %v3970, %v3963
        %v3981 = vmul.f32 %v3970, %v3964
        %v3982 = vmul.f32 %v3970, %v3965
        %v3983 = vmul.f32 %v3970, %v3966
        %v3984 = vmul.f32 %v3970, %v3967
        %v3985 = vmul.f32 %v3970, %v3968
        %v3986 = vmul.f32 %v3970, %v3969
        %v3987 = vadd.f32 %v3937, %v3971
        %v3988 = vadd.f32 %v3938, %v3972
        %v3989 = vadd.f32 %v3939, %v3973
        %v3990 = vadd.f32 %v3940, %v3974
        %v3991 = vadd.f32 %v3941, %v3975
        %v3992 = vadd.f32 %v3942, %v3976
        %v3993 = vadd.f32 %v3943, %v3977
        %v3994 = vadd.f32 %v3944, %v3978
        %v3995 = vadd.f32 %v3945, %v3979
        %v3996 = vadd.f32 %v3946, %v3980
        %v3997 = vadd.f32 %v3947, %v3981
        %v3998 = vadd.f32 %v3948, %v3982
        %v3999 = vadd.f32 %v3949, %v3983
        %v4000 = vadd.f32 %v3950, %v3984
        %v4001 = vadd.f32 %v3951, %v3985
        %v4002 = vadd.f32 %v3952, %v3986
        %s4003 = sld [smem:[#allocation15 + $0x11]]
        %v4004 = vstv %s4003
        %v4005 = vadd.f32 %v3987, %v4004
        %v4006 = vadd.f32 %v3988, %v4004
        %v4007 = vadd.f32 %v3989, %v4004
        %v4008 = vadd.f32 %v3990, %v4004
        %v4009 = vadd.f32 %v3991, %v4004
        %v4010 = vadd.f32 %v3992, %v4004
        %v4011 = vadd.f32 %v3993, %v4004
        %v4012 = vadd.f32 %v3994, %v4004
        %v4013 = vadd.f32 %v3995, %v4004
        %v4014 = vadd.f32 %v3996, %v4004
        %v4015 = vadd.f32 %v3997, %v4004
        %v4016 = vadd.f32 %v3998, %v4004
        %v4017 = vadd.f32 %v3999, %v4004
        %v4018 = vadd.f32 %v4000, %v4004
        %v4019 = vadd.f32 %v4001, %v4004
        %v4020 = vadd.f32 %v4002, %v4004
        %s4021 = sld [smem:[#allocation15 + $0x12]]
        %v4022 = vstv %s4021
        %v4023 = vmul.f32 %v4022, %v2214
        %v4024 = vmul.f32 %v4022, %v2215
        %v4025 = vmul.f32 %v4022, %v2216
        %v4026 = vmul.f32 %v4022, %v2217
        %v4027 = vmul.f32 %v4022, %v2218
        %v4028 = vmul.f32 %v4022, %v2219
        %v4029 = vmul.f32 %v4022, %v2220
        %v4030 = vmul.f32 %v4022, %v2221
        %v4031 = vmul.f32 %v4022, %v2222
        %v4032 = vmul.f32 %v4022, %v2223
        %v4033 = vmul.f32 %v4022, %v2224
        %v4034 = vmul.f32 %v4022, %v2225
        %v4035 = vmul.f32 %v4022, %v2226
        %v4036 = vmul.f32 %v4022, %v2227
        %v4037 = vmul.f32 %v4022, %v2228
        %v4038 = vmul.f32 %v4022, %v2229
        %s4039 = sld [smem:[#allocation15 + $0x13]]
        %v4040 = vstv %s4039
        %v4041 = vmul.f32 %v4040, %v4005
        %v4042 = vmul.f32 %v4040, %v4006
        %v4043 = vmul.f32 %v4040, %v4007
        %v4044 = vmul.f32 %v4040, %v4008
        %v4045 = vmul.f32 %v4040, %v4009
        %v4046 = vmul.f32 %v4040, %v4010
        %v4047 = vmul.f32 %v4040, %v4011
        %v4048 = vmul.f32 %v4040, %v4012
        %v4049 = vmul.f32 %v4040, %v4013
        %v4050 = vmul.f32 %v4040, %v4014
        %v4051 = vmul.f32 %v4040, %v4015
        %v4052 = vmul.f32 %v4040, %v4016
        %v4053 = vmul.f32 %v4040, %v4017
        %v4054 = vmul.f32 %v4040, %v4018
        %v4055 = vmul.f32 %v4040, %v4019
        %v4056 = vmul.f32 %v4040, %v4020
        %v4057 = vadd.f32 %v4023, %v4041
        %v4058 = vadd.f32 %v4024, %v4042
        %v4059 = vadd.f32 %v4025, %v4043
        %v4060 = vadd.f32 %v4026, %v4044
        %v4061 = vadd.f32 %v4027, %v4045
        %v4062 = vadd.f32 %v4028, %v4046
        %v4063 = vadd.f32 %v4029, %v4047
        %v4064 = vadd.f32 %v4030, %v4048
        %v4065 = vadd.f32 %v4031, %v4049
        %v4066 = vadd.f32 %v4032, %v4050
        %v4067 = vadd.f32 %v4033, %v4051
        %v4068 = vadd.f32 %v4034, %v4052
        %v4069 = vadd.f32 %v4035, %v4053
        %v4070 = vadd.f32 %v4036, %v4054
        %v4071 = vadd.f32 %v4037, %v4055
        %v4072 = vadd.f32 %v4038, %v4056
        %s4073 = sld [smem:[#allocation15 + $0x14]]
        %v4074 = vstv %s4073
        %v4075 = vadd.f32 %v4057, %v4074
        %v4076 = vadd.f32 %v4058, %v4074
        %v4077 = vadd.f32 %v4059, %v4074
        %v4078 = vadd.f32 %v4060, %v4074
        %v4079 = vadd.f32 %v4061, %v4074
        %v4080 = vadd.f32 %v4062, %v4074
        %v4081 = vadd.f32 %v4063, %v4074
        %v4082 = vadd.f32 %v4064, %v4074
        %v4083 = vadd.f32 %v4065, %v4074
        %v4084 = vadd.f32 %v4066, %v4074
        %v4085 = vadd.f32 %v4067, %v4074
        %v4086 = vadd.f32 %v4068, %v4074
        %v4087 = vadd.f32 %v4069, %v4074
        %v4088 = vadd.f32 %v4070, %v4074
        %v4089 = vadd.f32 %v4071, %v4074
        %v4090 = vadd.f32 %v4072, %v4074
        %v4091 = vmul.f32 %v2214, 0.5
        %v4092 = vmul.f32 %v2215, 0.5
        %v4093 = vmul.f32 %v2216, 0.5
        %v4094 = vmul.f32 %v2217, 0.5
        %v4095 = vmul.f32 %v2218, 0.5
        %v4096 = vmul.f32 %v2219, 0.5
        %v4097 = vmul.f32 %v2220, 0.5
        %v4098 = vmul.f32 %v2221, 0.5
        %v4099 = vmul.f32 %v2222, 0.5
        %v4100 = vmul.f32 %v2223, 0.5
        %v4101 = vmul.f32 %v2224, 0.5
        %v4102 = vmul.f32 %v2225, 0.5
        %v4103 = vmul.f32 %v2226, 0.5
        %v4104 = vmul.f32 %v2227, 0.5
        %v4105 = vmul.f32 %v2228, 0.5
        %v4106 = vmul.f32 %v2229, 0.5
        %v4107 = vtanh.pop %v4091
        %v4108 = vtanh.pop %v4092
        %v4109 = vtanh.pop %v4093
        %v4110 = vtanh.pop %v4094
        %v4111 = vtanh.pop %v4095
        %v4112 = vtanh.pop %v4096
        %v4113 = vtanh.pop %v4097
        %v4114 = vtanh.pop %v4098
        %v4115 = vtanh.pop %v4099
        %v4116 = vtanh.pop %v4100
        %v4117 = vtanh.pop %v4101
        %v4118 = vtanh.pop %v4102
        %v4119 = vtanh.pop %v4103
        %v4120 = vtanh.pop %v4104
        %v4121 = vtanh.pop %v4105
        %v4122 = vtanh.pop %v4106
        %v4123 = vmul.f32 %v4107, 0.5
        %v4124 = vmul.f32 %v4108, 0.5
        %v4125 = vmul.f32 %v4109, 0.5
        %v4126 = vmul.f32 %v4110, 0.5
        %v4127 = vmul.f32 %v4111, 0.5
        %v4128 = vmul.f32 %v4112, 0.5
        %v4129 = vmul.f32 %v4113, 0.5
        %v4130 = vmul.f32 %v4114, 0.5
        %v4131 = vmul.f32 %v4115, 0.5
        %v4132 = vmul.f32 %v4116, 0.5
        %v4133 = vmul.f32 %v4117, 0.5
        %v4134 = vmul.f32 %v4118, 0.5
        %v4135 = vmul.f32 %v4119, 0.5
        %v4136 = vmul.f32 %v4120, 0.5
        %v4137 = vmul.f32 %v4121, 0.5
        %v4138 = vmul.f32 %v4122, 0.5
        %v4139 = vadd.f32 %v4123, 0.5
        %v4140 = vadd.f32 %v4124, 0.5
        %v4141 = vadd.f32 %v4125, 0.5
        %v4142 = vadd.f32 %v4126, 0.5
        %v4143 = vadd.f32 %v4127, 0.5
        %v4144 = vadd.f32 %v4128, 0.5
        %v4145 = vadd.f32 %v4129, 0.5
        %v4146 = vadd.f32 %v4130, 0.5
        %v4147 = vadd.f32 %v4131, 0.5
        %v4148 = vadd.f32 %v4132, 0.5
        %v4149 = vadd.f32 %v4133, 0.5
        %v4150 = vadd.f32 %v4134, 0.5
        %v4151 = vadd.f32 %v4135, 0.5
        %v4152 = vadd.f32 %v4136, 0.5
        %v4153 = vadd.f32 %v4137, 0.5
        %v4154 = vadd.f32 %v4138, 0.5
        %v4171 = vrot.slane %v4140, 7
        %vm4172 = vcmask 1041409
        %v4173 = vsel %vm4172, %v4171, %v4139
        %v4174 = vrot.slane %v4141, 6
        %vm4175 = vcmask 1042434
        %v4176 = vsel %vm4175, %v4174, %v4173
        %v4177 = vrot.slane %v4142, 5
        %vm4178 = vcmask 1043459
        %v4179 = vsel %vm4178, %v4177, %v4176
        %v4180 = vrot.slane %v4143, 4
        %vm4181 = vcmask 1044484
        %v4182 = vsel %vm4181, %v4180, %v4179
        %v4183 = vrot.slane %v4144, 3
        %vm4184 = vcmask 1045509
        %v4185 = vsel %vm4184, %v4183, %v4182
        %v4186 = vrot.slane %v4145, 2
        %vm4187 = vcmask 1046534
        %v4188 = vsel %vm4187, %v4186, %v4185
        %v4189 = vrot.slane %v4146, 1
        %vm4190 = vcmask 1047559
        %v4191 = vsel %vm4190, %v4189, %v4188
        %v4192 = vrot.slane %v4148, 7
        %v4193 = vsel %vm4172, %v4192, %v4147
        %v4194 = vrot.slane %v4149, 6
        %v4195 = vsel %vm4175, %v4194, %v4193
        %v4196 = vrot.slane %v4150, 5
        %v4197 = vsel %vm4178, %v4196, %v4195
        %v4198 = vrot.slane %v4151, 4
        %v4199 = vsel %vm4181, %v4198, %v4197
        %v4200 = vrot.slane %v4152, 3
        %v4201 = vsel %vm4184, %v4200, %v4199
        %v4202 = vrot.slane %v4153, 2
        %v4203 = vsel %vm4187, %v4202, %v4201
        %v4204 = vrot.slane %v4154, 1
        %v4205 = vsel %vm4190, %v4204, %v4203
        %4208 = vst.msk [vmem:[%s308] sm:$0xff] %vm1808, %v4191
        %4209 = vst.msk [vmem:[%s308 + $0x8] sm:$0xff] %vm1808, %v4205
        %v4210 = vmul.f32 %v4005, 0.5
        %v4211 = vmul.f32 %v4006, 0.5
        %v4212 = vmul.f32 %v4007, 0.5
        %v4213 = vmul.f32 %v4008, 0.5
        %v4214 = vmul.f32 %v4009, 0.5
        %v4215 = vmul.f32 %v4010, 0.5
        %v4216 = vmul.f32 %v4011, 0.5
        %v4217 = vmul.f32 %v4012, 0.5
        %v4218 = vmul.f32 %v4013, 0.5
        %v4219 = vmul.f32 %v4014, 0.5
        %v4220 = vmul.f32 %v4015, 0.5
        %v4221 = vmul.f32 %v4016, 0.5
        %v4222 = vmul.f32 %v4017, 0.5
        %v4223 = vmul.f32 %v4018, 0.5
        %v4224 = vmul.f32 %v4019, 0.5
        %v4225 = vmul.f32 %v4020, 0.5
        %v4226 = vtanh.pop %v4210
        %v4227 = vtanh.pop %v4211
        %v4228 = vtanh.pop %v4212
        %v4229 = vtanh.pop %v4213
        %v4230 = vtanh.pop %v4214
        %v4231 = vtanh.pop %v4215
        %v4232 = vtanh.pop %v4216
        %v4233 = vtanh.pop %v4217
        %v4234 = vtanh.pop %v4218
        %v4235 = vtanh.pop %v4219
        %v4236 = vtanh.pop %v4220
        %v4237 = vtanh.pop %v4221
        %v4238 = vtanh.pop %v4222
        %v4239 = vtanh.pop %v4223
        %v4240 = vtanh.pop %v4224
        %v4241 = vtanh.pop %v4225
        %v4242 = vmul.f32 %v4226, 0.5
        %v4243 = vmul.f32 %v4227, 0.5
        %v4244 = vmul.f32 %v4228, 0.5
        %v4245 = vmul.f32 %v4229, 0.5
        %v4246 = vmul.f32 %v4230, 0.5
        %v4247 = vmul.f32 %v4231, 0.5
        %v4248 = vmul.f32 %v4232, 0.5
        %v4249 = vmul.f32 %v4233, 0.5
        %v4250 = vmul.f32 %v4234, 0.5
        %v4251 = vmul.f32 %v4235, 0.5
        %v4252 = vmul.f32 %v4236, 0.5
        %v4253 = vmul.f32 %v4237, 0.5
        %v4254 = vmul.f32 %v4238, 0.5
        %v4255 = vmul.f32 %v4239, 0.5
        %v4256 = vmul.f32 %v4240, 0.5
        %v4257 = vmul.f32 %v4241, 0.5
        %v4258 = vadd.f32 %v4242, 0.5
        %v4259 = vadd.f32 %v4243, 0.5
        %v4260 = vadd.f32 %v4244, 0.5
        %v4261 = vadd.f32 %v4245, 0.5
        %v4262 = vadd.f32 %v4246, 0.5
        %v4263 = vadd.f32 %v4247, 0.5
        %v4264 = vadd.f32 %v4248, 0.5
        %v4265 = vadd.f32 %v4249, 0.5
        %v4266 = vadd.f32 %v4250, 0.5
        %v4267 = vadd.f32 %v4251, 0.5
        %v4268 = vadd.f32 %v4252, 0.5
        %v4269 = vadd.f32 %v4253, 0.5
        %v4270 = vadd.f32 %v4254, 0.5
        %v4271 = vadd.f32 %v4255, 0.5
        %v4272 = vadd.f32 %v4256, 0.5
        %v4273 = vadd.f32 %v4257, 0.5
        %v4290 = vrot.slane %v4259, 7
        %v4291 = vsel %vm4172, %v4290, %v4258
        %v4292 = vrot.slane %v4260, 6
        %v4293 = vsel %vm4175, %v4292, %v4291
        %v4294 = vrot.slane %v4261, 5
        %v4295 = vsel %vm4178, %v4294, %v4293
        %v4296 = vrot.slane %v4262, 4
        %v4297 = vsel %vm4181, %v4296, %v4295
        %v4298 = vrot.slane %v4263, 3
        %v4299 = vsel %vm4184, %v4298, %v4297
        %v4300 = vrot.slane %v4264, 2
        %v4301 = vsel %vm4187, %v4300, %v4299
        %v4302 = vrot.slane %v4265, 1
        %v4303 = vsel %vm4190, %v4302, %v4301
        %v4304 = vrot.slane %v4267, 7
        %v4305 = vsel %vm4172, %v4304, %v4266
        %v4306 = vrot.slane %v4268, 6
        %v4307 = vsel %vm4175, %v4306, %v4305
        %v4308 = vrot.slane %v4269, 5
        %v4309 = vsel %vm4178, %v4308, %v4307
        %v4310 = vrot.slane %v4270, 4
        %v4311 = vsel %vm4181, %v4310, %v4309
        %v4312 = vrot.slane %v4271, 3
        %v4313 = vsel %vm4184, %v4312, %v4311
        %v4314 = vrot.slane %v4272, 2
        %v4315 = vsel %vm4187, %v4314, %v4313
        %v4316 = vrot.slane %v4273, 1
        %v4317 = vsel %vm4190, %v4316, %v4315
        %s4320 = scalar_lea.vmem %s308, 16 [#allocation16]
        %4321 = vst.msk [vmem:[%s4320] sm:$0xff] %vm1808, %v4303
        %4322 = vst.msk [vmem:[%s4320 + $0x8] sm:$0xff] %vm1808, %v4317
        %v4323 = vmul.f32 %v4075, 0.5
        %v4324 = vmul.f32 %v4076, 0.5
        %v4325 = vmul.f32 %v4077, 0.5
        %v4326 = vmul.f32 %v4078, 0.5
        %v4327 = vmul.f32 %v4079, 0.5
        %v4328 = vmul.f32 %v4080, 0.5
        %v4329 = vmul.f32 %v4081, 0.5
        %v4330 = vmul.f32 %v4082, 0.5
        %v4331 = vmul.f32 %v4083, 0.5
        %v4332 = vmul.f32 %v4084, 0.5
        %v4333 = vmul.f32 %v4085, 0.5
        %v4334 = vmul.f32 %v4086, 0.5
        %v4335 = vmul.f32 %v4087, 0.5
        %v4336 = vmul.f32 %v4088, 0.5
        %v4337 = vmul.f32 %v4089, 0.5
        %v4338 = vmul.f32 %v4090, 0.5
        %v4339 = vtanh.pop %v4323
        %v4340 = vtanh.pop %v4324
        %v4341 = vtanh.pop %v4325
        %v4342 = vtanh.pop %v4326
        %v4343 = vtanh.pop %v4327
        %v4344 = vtanh.pop %v4328
        %v4345 = vtanh.pop %v4329
        %v4346 = vtanh.pop %v4330
        %v4347 = vtanh.pop %v4331
        %v4348 = vtanh.pop %v4332
        %v4349 = vtanh.pop %v4333
        %v4350 = vtanh.pop %v4334
        %v4351 = vtanh.pop %v4335
        %v4352 = vtanh.pop %v4336
        %v4353 = vtanh.pop %v4337
        %v4354 = vtanh.pop %v4338
        %v4355 = vmul.f32 %v4339, 0.5
        %v4356 = vmul.f32 %v4340, 0.5
        %v4357 = vmul.f32 %v4341, 0.5
        %v4358 = vmul.f32 %v4342, 0.5
        %v4359 = vmul.f32 %v4343, 0.5
        %v4360 = vmul.f32 %v4344, 0.5
        %v4361 = vmul.f32 %v4345, 0.5
        %v4362 = vmul.f32 %v4346, 0.5
        %v4363 = vmul.f32 %v4347, 0.5
        %v4364 = vmul.f32 %v4348, 0.5
        %v4365 = vmul.f32 %v4349, 0.5
        %v4366 = vmul.f32 %v4350, 0.5
        %v4367 = vmul.f32 %v4351, 0.5
        %v4368 = vmul.f32 %v4352, 0.5
        %v4369 = vmul.f32 %v4353, 0.5
        %v4370 = vmul.f32 %v4354, 0.5
        %v4371 = vadd.f32 %v4355, 0.5
        %v4372 = vadd.f32 %v4356, 0.5
        %v4373 = vadd.f32 %v4357, 0.5
        %v4374 = vadd.f32 %v4358, 0.5
        %v4375 = vadd.f32 %v4359, 0.5
        %v4376 = vadd.f32 %v4360, 0.5
        %v4377 = vadd.f32 %v4361, 0.5
        %v4378 = vadd.f32 %v4362, 0.5
        %v4379 = vadd.f32 %v4363, 0.5
        %v4380 = vadd.f32 %v4364, 0.5
        %v4381 = vadd.f32 %v4365, 0.5
        %v4382 = vadd.f32 %v4366, 0.5
        %v4383 = vadd.f32 %v4367, 0.5
        %v4384 = vadd.f32 %v4368, 0.5
        %v4385 = vadd.f32 %v4369, 0.5
        %v4386 = vadd.f32 %v4370, 0.5
        %v4403 = vrot.slane %v4372, 7
        %v4404 = vsel %vm4172, %v4403, %v4371
        %v4405 = vrot.slane %v4373, 6
        %v4406 = vsel %vm4175, %v4405, %v4404
        %v4407 = vrot.slane %v4374, 5
        %v4408 = vsel %vm4178, %v4407, %v4406
        %v4409 = vrot.slane %v4375, 4
        %v4410 = vsel %vm4181, %v4409, %v4408
        %v4411 = vrot.slane %v4376, 3
        %v4412 = vsel %vm4184, %v4411, %v4410
        %v4413 = vrot.slane %v4377, 2
        %v4414 = vsel %vm4187, %v4413, %v4412
        %v4415 = vrot.slane %v4378, 1
        %v4416 = vsel %vm4190, %v4415, %v4414
        %v4417 = vrot.slane %v4380, 7
        %v4418 = vsel %vm4172, %v4417, %v4379
        %v4419 = vrot.slane %v4381, 6
        %v4420 = vsel %vm4175, %v4419, %v4418
        %v4421 = vrot.slane %v4382, 5
        %v4422 = vsel %vm4178, %v4421, %v4420
        %v4423 = vrot.slane %v4383, 4
        %v4424 = vsel %vm4181, %v4423, %v4422
        %v4425 = vrot.slane %v4384, 3
        %v4426 = vsel %vm4184, %v4425, %v4424
        %v4427 = vrot.slane %v4385, 2
        %v4428 = vsel %vm4187, %v4427, %v4426
        %v4429 = vrot.slane %v4386, 1
        %v4430 = vsel %vm4190, %v4429, %v4428
        %s4433 = scalar_lea.vmem %s308, 32 [#allocation16]
        %4434 = vst.msk [vmem:[%s4433] sm:$0xff] %vm1808, %v4416
        %4435 = vst.msk [vmem:[%s4433 + $0x8] sm:$0xff] %vm1808, %v4430
        %s4436 = sand.u32 %s157, 1
        %s4437 = scalar_lea.sflag [#allocation8], %s4436
        %s4438 = sand.u32 %s157, 1
        %s4439 = smul.addr %s4438, 48
        %s4440 = scalar_lea.vmem [#allocation16], %s4439
        // Predicated region
        $region61: #{tpu_custom_call.1} parent=39 // pred_check
          %p4441 = pneg %p167
        $region62: #{tpu_custom_call.1} parent=39 // pred_check_branch
          %4443 = sbr.rel (%p4441) target = $region64
        $region63: #{tpu_custom_call.1} parent=39 // pred_region
          %s4444 = smul.u32 2, %s30
          %s4446 = ssub.s32 768, 768
          %4447 = vsyncadd %s4437, %s4446
          %s4448 = smul.addr %s29, 6
          %s4449 = sadd.s32 %s4444, %s4448
          %s4450 = smul.addr %s4449, 128
          %s4451 = scalar_lea.hbm %s5, %s4450
          %s4452 = sshll.u32 %s4440, 4
          %s4453 = int_to_ptr.vmem [resolvable:$true] %s4452
          %4458 = dma.vmem_to_hbm [thread:$0]  %s4453, 768, %s4451, %s4437, 128, 128, 8
        $region64: #{tpu_custom_call.1} parent=39 // pred_fallthru
          _
      $region40: #{tpu_custom_call.1} parent=5 // pred_fallthru
        _
      %p4459 = scmp.le.s32.totalorder 2, %s20
      // Predicated region
      $region65: #{tpu_custom_call.1} parent=5 // pred_check
        %p4460 = pneg %p4459
      $region66: #{tpu_custom_call.1} parent=5 // pred_check_branch
        %4462 = sbr.rel (%p4460) target = $region68
      $region67: #{tpu_custom_call.1} parent=5 // pred_region
        %s4463 = ssub.s32 %s20, 2
        // Predicated region
        $region69: #{tpu_custom_call.1} parent=67 // pred_check
          %p4464 = pneg %p173
        $region70: #{tpu_custom_call.1} parent=67 // pred_check_branch
          %4466 = sbr.rel (%p4464) target = $region72
        $region71: #{tpu_custom_call.1} parent=67 // pred_region
          %s4467 = sand.u32 %s158, 1
          %s4468 = scalar_lea.sflag [#allocation8], %s4467
          %s4469 = sand.u32 %s158, 1
          %s4470 = smul.addr %s4469, 48
          %s4471 = scalar_lea.vmem [#allocation16], %s4470
          %4472 = dma.done %s4468, 768
        $region72: #{tpu_custom_call.1} parent=67 // pred_fallthru
          _
      $region68: #{tpu_custom_call.1} parent=5 // pred_fallthru
        _
    $region6: #{tpu_custom_call.1} parent=1 // loop_footer
      %s24 = sadd.s32 1, %s20
    $region7: #{tpu_custom_call.1} parent=1 // loop_footer_branch
      %19 = sbr.rel target = $region3
    $region8: #{tpu_custom_call.1} parent=1 // loop_exit
      _
    %4473 = vsyncpa [#allocation7], 1
    %s4474 = scalar_lea.sflag [#allocation7], 1
    %4475 = vsyncpa %s4474, 1
    %4476 = vsyncpa [#allocation11], 1
    %4477 = vsyncpa [#allocation14], 1
    %4478 = vsyncpa [#allocation8], 1
    %s4479 = scalar_lea.sflag [#allocation8], 1
    %4480 = vsyncpa %s4479, 1
    %4481 = vsyncpa [#allocation9], 1
    %s4482 = scalar_lea.sflag [#allocation9], 1
    %4483 = vsyncpa %s4482, 1

</llo_original>
